<compile_context>
chip_gen: v7x
topology: tpu7x:2x2x1
jax: 0.10.0
libtpu: 0.0.40
codegen_flags: <defaults>
</compile_context>

<pallas_src>
import functools

import jax
import jax.numpy as jnp
import numpy as np
from jax import lax
from jax.experimental import pallas as pl
from jax.experimental.pallas import tpu as pltpu


# ----------------------------------------------------------------------------
# Kernel 1: shared 1x1 qkv projection (channel-major matmul, lane axis = H*W).
# ----------------------------------------------------------------------------
def qkv_proj_kernel(x_ref, w_ref, o_ref):
    # x_ref: (1, Cin, HW)   w_ref: (3*Cin, Cin)   o_ref: (1, 3*Cin, HW)
    o_ref[0, :, :] = jnp.dot(
        w_ref[...], x_ref[0, :, :], preferred_element_type=jnp.float32
    ).astype(o_ref.dtype)


# ----------------------------------------------------------------------------
# Kernel 2: depthwise 3x3 (LePE) in a lane-dense (H, W*Cin) interleaved layout.
# ----------------------------------------------------------------------------
def lepe_dw_kernel(vpad_ref, wt_ref, bt_ref, o_ref, *, H, W, Cin):
    # vpad_ref: (1, H+2, (W+2)*Cin)  zero-padded NHWC, channels interleaved in lanes
    # wt_ref:   (9, W*Cin)           per-tap depthwise weights, tiled across W
    # bt_ref:   (1, W*Cin)           depthwise bias, tiled across W
    # o_ref:    (1, H, W*Cin)
    WC = W * Cin
    vp = vpad_ref[0, :, :]
    wt = wt_ref[...]
    acc = jnp.zeros((H, WC), jnp.float32)
    for dy in range(3):                      # 9 taps, fully unrolled, static slices
        for dx in range(3):
            tap = dy * 3 + dx
            patch = vp[dy:dy + H, dx * Cin:dx * Cin + WC]
            acc = acc + patch * wt[tap:tap + 1, :]
    o_ref[0, :, :] = (acc + bt_ref[...]).astype(o_ref.dtype)


# ----------------------------------------------------------------------------
# Kernel 3: windowed multi-head attention + LePE add, lane axis = windows.
# ----------------------------------------------------------------------------
def win_attn_kernel(q_ref, k_ref, v_ref, lepe_ref, bias_ref, o_ref, *, nh, hd):
    # q/k/v/lepe_ref: (T, Cin, NWT) with Cin = hd*nh, channel index = c*nh + head
    # bias_ref:       (T, T, nh, 1) relative-position bias
    # o_ref:          (T, Cin, NWT)
    T = q_ref.shape[0]
    q = q_ref[...]
    k = k_ref[...]
    v = v_ref[...]
    lepe = lepe_ref[...]
    bias = bias_ref[...]

    for p in range(T):                       # query token inside the window (T = sp*sp)
        qp = q[p]                            # (Cin, NWT)
        # scores: reduce over the hd channels of every head via static sublane slices
        s = []
        for j in range(T):
            prod = qp * k[j]                 # (Cin, NWT)
            sj = prod[0:nh, :]
            for c in range(1, hd):
                sj = sj + prod[c * nh:(c + 1) * nh, :]
            s.append(sj + bias[p, j])        # (nh, NWT)
        # softmax over the T key tokens (elementwise across all windows on lanes)
        m = s[0]
        for j in range(1, T):
            m = jnp.maximum(m, s[j])
        e = [jnp.exp(sj - m) for sj in s]
        denom = e[0]
        for j in range(1, T):
            denom = denom + e[j]
        inv = 1.0 / denom                    # (nh, NWT)
        # attn @ v + lepe
        acc = lepe[p]
        for j in range(T):
            a = e[j] * inv                                   # (nh, NWT)
            a_full = jnp.concatenate([a] * hd, axis=0)       # (Cin, NWT), keeps c*nh+head order
            acc = acc + a_full * v[j]
        o_ref[p, :, :] = acc.astype(o_ref.dtype)


# ----------------------------------------------------------------------------
# Wrapper (layout plumbing only) + pure-JAX reference.
# ----------------------------------------------------------------------------
def _relative_position_index(sp):
    coords = np.stack(np.meshgrid(np.arange(sp), np.arange(sp), indexing="ij"))
    cf = coords.reshape(2, -1)
    rel = cf[:, :, None] - cf[:, None, :]
    rel = np.transpose(rel, (1, 2, 0)).copy()
    rel[:, :, 0] += sp - 1
    rel[:, :, 1] += sp - 1
    rel[:, :, 0] *= 2 * sp - 1
    return rel.sum(-1)                       # (sp*sp, sp*sp)


@functools.partial(jax.jit, static_argnames=("split_size", "num_heads", "qk_scale"))
def sa_global_swin(x, w_qkv, w_dw, b_dw, rel_bias_table, *,
                   split_size=2, num_heads=4, qk_scale=None):
    """x: (B, C, H, W). Returns (B, C, H, W), matching PyTorch SA_global_Swin (eval)."""
    B, C, H, W = x.shape
    Cin = C // 2
    nh = num_heads
    hd = Cin // nh
    sp = split_size
    T = sp * sp
    assert H % sp == 0 and W % sp == 0
    h, w = H // sp, W // sp
    SB = 2 * B                               # both channel halves as extra batch
    HW = H * W
    NW = SB * h * w                          # total number of windows
    scale = qk_scale if qk_scale is not None else hd ** (-0.5)
    f32 = jnp.float32

    # --- glue: split halves, fold qk scale into the q rows of the 1x1 conv weight ---
    xs = jnp.stack([x[:, :Cin], x[:, Cin:]], axis=0).reshape(SB, Cin, HW).astype(f32)
    w2d = w_qkv.reshape(3 * Cin, Cin).astype(f32)
    w2d = jnp.concatenate([w2d[:Cin] * scale, w2d[Cin:]], axis=0)

    # --- K1: qkv projection, grid over the 2*B half-images (parallel) ---------------
    qkv = pl.pallas_call(
        qkv_proj_kernel,
        out_shape=jax.ShapeDtypeStruct((SB, 3 * Cin, HW), f32),
        grid=(SB,),
        in_specs=[
            pl.BlockSpec((1, Cin, HW), lambda n: (n, 0, 0)),
            pl.BlockSpec((3 * Cin, Cin), lambda n: (0, 0)),      # weights stay resident
        ],
        out_specs=pl.BlockSpec((1, 3 * Cin, HW), lambda n: (n, 0, 0)),
        compiler_params=pltpu.CompilerParams(dimension_semantics=("parallel",)),
    )(xs, w2d)

    q = qkv[:, :Cin, :]
    k = qkv[:, Cin:2 * Cin, :]
    v = qkv[:, 2 * Cin:, :]

    # --- K2: LePE depthwise 3x3 on v, lane-dense (H, W*Cin) layout -------------------
    v_hwc = jnp.transpose(v.reshape(SB, Cin, H, W), (0, 2, 3, 1))
    v_pad = jnp.pad(v_hwc, ((0, 0), (1, 1), (1, 1), (0, 0)))
    v_pad = v_pad.reshape(SB, H + 2, (W + 2) * Cin)
    wt = jnp.tile(jnp.transpose(w_dw.reshape(Cin, 9).astype(f32)), (1, W))   # (9, W*Cin)
    bt = jnp.tile(b_dw.astype(f32), W).reshape(1, W * Cin)

    lepe_hwc = pl.pallas_call(
        functools.partial(lepe_dw_kernel, H=H, W=W, Cin=Cin),
        out_shape=jax.ShapeDtypeStruct((SB, H, W * Cin), f32),
        grid=(SB,),
        in_specs=[
            pl.BlockSpec((1, H + 2, (W + 2) * Cin), lambda n: (n, 0, 0)),
            pl.BlockSpec((9, W * Cin), lambda n: (0, 0)),
            pl.BlockSpec((1, W * Cin), lambda n: (0, 0)),
        ],
        out_specs=pl.BlockSpec((1, H, W * Cin), lambda n: (n, 0, 0)),
        compiler_params=pltpu.CompilerParams(dimension_semantics=("parallel",)),
    )(v_pad, wt, bt)

    # --- layout plumbing: window partition, windows -> lane axis ---------------------
    def to_win(t):                           # (SB, Cin, H, W) -> (T, Cin, NW)
        t = t.reshape(SB, Cin, h, sp, w, sp)
        return jnp.transpose(t, (3, 5, 1, 0, 2, 4)).reshape(T, Cin, NW)

    q_win = to_win(q.reshape(SB, Cin, H, W))
    k_win = to_win(k.reshape(SB, Cin, H, W))
    v_win = to_win(v.reshape(SB, Cin, H, W))
    lepe_win = jnp.transpose(
        lepe_hwc.reshape(SB, h, sp, w, sp, Cin), (2, 4, 5, 0, 1, 3)
    ).reshape(T, Cin, NW)

    rel_index = _relative_position_index(sp)
    bias4 = rel_bias_table.astype(f32)[rel_index.reshape(-1)]
    bias4 = bias4.reshape(T, T, nh)[..., None]                    # (T, T, nh, 1)

    # --- K3: window attention, grid over 128-window lane chunks (parallel) -----------
    NWT = 128 if NW % 128 == 0 else NW
    attn_out = pl.pallas_call(
        functools.partial(win_attn_kernel, nh=nh, hd=hd),
        out_shape=jax.ShapeDtypeStruct((T, Cin, NW), f32),
        grid=(NW // NWT,),
        in_specs=[
            pl.BlockSpec((T, Cin, NWT), lambda i: (0, 0, i)),
            pl.BlockSpec((T, Cin, NWT), lambda i: (0, 0, i)),
            pl.BlockSpec((T, Cin, NWT), lambda i: (0, 0, i)),
            pl.BlockSpec((T, Cin, NWT), lambda i: (0, 0, i)),
            pl.BlockSpec((T, T, nh, 1), lambda i: (0, 0, 0, 0)),
        ],
        out_specs=pl.BlockSpec((T, Cin, NWT), lambda i: (0, 0, i)),
        compiler_params=pltpu.CompilerParams(dimension_semantics=("parallel",)),
    )(q_win, k_win, v_win, lepe_win, bias4)

    # --- layout plumbing: windows -> image, halves -> channel concat -----------------
    out = attn_out.reshape(sp, sp, Cin, 2, B, h, w)
    out = jnp.transpose(out, (3, 4, 2, 5, 0, 6, 1)).reshape(2, B, Cin, H, W)
    out = jnp.concatenate([out[0], out[1]], axis=1)
    return out.astype(x.dtype)


def reference(x, w_qkv, w_dw, b_dw, rel_bias_table, *,
              split_size=2, num_heads=4, qk_scale=None):
    """Pure-JAX reference with the same math as the PyTorch module (eval mode)."""
    B, C, H, W = x.shape
    Cin = C // 2
    nh = num_heads
    hd = Cin // nh
    sp = split_size
    T = sp * sp
    h, w = H // sp, W // sp
    scale = qk_scale if qk_scale is not None else hd ** (-0.5)
    hp = lax.Precision.HIGHEST

    rel_index = _relative_position_index(sp)
    rel_bias = rel_bias_table[rel_index.reshape(-1)].reshape(T, T, nh)
    rel_bias = jnp.transpose(rel_bias, (2, 0, 1))                 # (nh, T, T)

    outs = []
    for xi in (x[:, :Cin], x[:, Cin:]):
        qkv = lax.conv_general_dilated(
            xi, w_qkv, (1, 1), "VALID",
            dimension_numbers=("NCHW", "OIHW", "NCHW"), precision=hp)
        q, k, v = jnp.split(qkv, 3, axis=1)
        lepe = lax.conv_general_dilated(
            v, w_dw, (1, 1), ((1, 1), (1, 1)),
            dimension_numbers=("NCHW", "OIHW", "NCHW"),
            feature_group_count=Cin, precision=hp)
        lepe = lepe + b_dw[None, :, None, None]

        def rearr(t):
            t = t.reshape(B, hd, nh, h, sp, w, sp)
            t = jnp.transpose(t, (0, 3, 5, 2, 4, 6, 1))
            return t.reshape(B * h * w, nh, T, hd)

        qr, kr, vr, lr = map(rearr, (q, k, v, lepe))
        qr = qr * scale
        attn = jnp.einsum("bhik,bhjk->bhij", qr, kr, precision=hp)
        attn = attn + rel_bias[None]
        attn = jax.nn.softmax(attn, axis=-1)
        xo = jnp.einsum("bhij,bhjd->bhid", attn, vr, precision=hp) + lr
        xo = xo.reshape(B, h, w, nh, sp, sp, hd)
        xo = jnp.transpose(xo, (0, 6, 3, 1, 4, 2, 5)).reshape(B, Cin, H, W)
        outs.append(xo)
    return jnp.concatenate(outs, axis=1)


if __name__ == "__main__":
    # dim = 16 -> per-half dim = 8, num_heads = 4 -> head_dim = 2, split_size = 2.
    B, C, H, W = 2, 16, 16, 16
    sp, nh = 2, 4
    Cin = C // 2

    key = jax.random.PRNGKey(0)
    kx, kw, kd, kb, kt = jax.random.split(key, 5)
    x = jax.random.normal(kx, (B, C, H, W), jnp.float32)
    w_qkv = 0.2 * jax.random.normal(kw, (3 * Cin, Cin, 1, 1), jnp.float32)
    w_dw = 0.2 * jax.random.normal(kd, (Cin, 1, 3, 3), jnp.float32)
    b_dw = 0.1 * jax.random.normal(kb, (Cin,), jnp.float32)
    table = 0.1 * jax.random.normal(kt, ((2 * sp - 1) ** 2, nh), jnp.float32)

    out = sa_global_swin(x, w_qkv, w_dw, b_dw, table, split_size=sp, num_heads=nh)
    out = jax.block_until_ready(out)

    ref = reference(x, w_qkv, w_dw, b_dw, table, split_size=sp, num_heads=nh)
    np.testing.assert_allclose(np.asarray(out), np.asarray(ref), rtol=1e-4, atol=1e-4)
    print("KERNEL_OK")
</pallas_src>

<mosaic_0001>
module attributes {stable_mosaic.version = 11 : i64} {
  func.func @qkv_proj_kernel(%arg0: i32, %arg1: memref<1x8x256xf32, #tpu.memory_space<vmem>>, %arg2: memref<24x8xf32, #tpu.memory_space<vmem>>, %arg3: memref<1x24x256xf32, #tpu.memory_space<vmem>>) attributes {dimension_semantics = [#tpu.dimension_semantics<parallel>], iteration_bounds = array<i64: 4>, scalar_prefetch = 0 : i64, scratch_operands = 0 : i64, tpu.core_type = #tpu.core_type<tc>, window_params = [{transform_indices = @transform_0, window_bounds = array<i64: 1, 8, 256>}, {pipeline_mode = #tpu.pipeline_mode<synchronous>, transform_indices = @transform_1, window_bounds = array<i64: 24, 8>}, {transform_indices = @transform_2, window_bounds = array<i64: 1, 24, 256>}]} {
    %c0 = arith.constant 0 : index
    %c0_0 = arith.constant 0 : index
    %0 = vector.load %arg2[%c0, %c0_0] : memref<24x8xf32, #tpu.memory_space<vmem>>, vector<24x8xf32>
    %c0_1 = arith.constant 0 : index
    %c0_2 = arith.constant 0 : index
    %c0_3 = arith.constant 0 : index
    %1 = vector.load %arg1[%c0_1, %c0_2, %c0_3] : memref<1x8x256xf32, #tpu.memory_space<vmem>>, vector<1x8x256xf32>
    %2 = vector.shape_cast %1 : vector<1x8x256xf32> to vector<8x256xf32>
    %cst = arith.constant dense<0.000000e+00> : vector<24x256xf32>
    %3 = tpu.matmul %0, %2, %cst {dimension_numbers = #tpu.dot_dimension_numbers<[1], [0], [0], [1], [0, 0, 1, 1], [], []>} : vector<24x8xf32>, vector<8x256xf32>, vector<24x256xf32> -> vector<24x256xf32>
    %c0_4 = arith.constant 0 : index
    %c0_5 = arith.constant 0 : index
    %c0_6 = arith.constant 0 : index
    %4 = vector.load %arg3[%c0_4, %c0_5, %c0_6] : memref<1x24x256xf32, #tpu.memory_space<vmem>>, vector<1x24x256xf32>
    %5 = vector.shape_cast %4 : vector<1x24x256xf32> to vector<24x256xf32>
    %6 = vector.shape_cast %3 : vector<24x256xf32> to vector<1x24x256xf32>
    tpu.vector_store %arg3[%c0_4, %c0_5, %c0_6], %6 {strides = array<i32>} : memref<1x24x256xf32, #tpu.memory_space<vmem>>, vector<1x24x256xf32>,
    return
  }
  func.func @transform_0(%arg0: i32) -> (i32, i32, i32) {
    %c0_i32 = arith.constant 0 : i32
    %c0_i32_0 = arith.constant 0 : i32
    %c0_i32_1 = arith.constant 0 : i32
    return %arg0, %c0_i32, %c0_i32_0 : i32, i32, i32
  }
  func.func @transform_1(%arg0: i32) -> (i32, i32) {
    %c0_i32 = arith.constant 0 : i32
    %c0_i32_0 = arith.constant 0 : i32
    %c0_i32_1 = arith.constant 0 : i32
    return %c0_i32, %c0_i32_0 : i32, i32
  }
  func.func @transform_2(%arg0: i32) -> (i32, i32, i32) {
    %c0_i32 = arith.constant 0 : i32
    %c0_i32_0 = arith.constant 0 : i32
    %c0_i32_1 = arith.constant 0 : i32
    return %arg0, %c0_i32, %c0_i32_0 : i32, i32, i32
  }
}

module attributes {stable_mosaic.version = 11 : i64} {
  func.func @lepe_dw_kernel(%arg0: i32, %arg1: memref<1x18x144xf32, #tpu.memory_space<vmem>>, %arg2: memref<9x128xf32, #tpu.memory_space<vmem>>, %arg3: memref<1x128xf32, #tpu.memory_space<vmem>>, %arg4: memref<1x16x128xf32, #tpu.memory_space<vmem>>) attributes {dimension_semantics = [#tpu.dimension_semantics<parallel>], iteration_bounds = array<i64: 4>, scalar_prefetch = 0 : i64, scratch_operands = 0 : i64, tpu.core_type = #tpu.core_type<tc>, window_params = [{transform_indices = @transform_0, window_bounds = array<i64: 1, 18, 144>}, {pipeline_mode = #tpu.pipeline_mode<synchronous>, transform_indices = @transform_1, window_bounds = array<i64: 9, 128>}, {pipeline_mode = #tpu.pipeline_mode<synchronous>, transform_indices = @transform_2, window_bounds = array<i64: 1, 128>}, {transform_indices = @transform_3, window_bounds = array<i64: 1, 16, 128>}]} {
    %c0 = arith.constant 0 : index
    %c0_0 = arith.constant 0 : index
    %c0_1 = arith.constant 0 : index
    %0 = vector.load %arg1[%c0, %c0_0, %c0_1] : memref<1x18x144xf32, #tpu.memory_space<vmem>>, vector<1x18x144xf32>
    %1 = vector.shape_cast %0 : vector<1x18x144xf32> to vector<18x144xf32>
    %c0_2 = arith.constant 0 : index
    %c0_3 = arith.constant 0 : index
    %2 = vector.load %arg2[%c0_2, %c0_3] : memref<9x128xf32, #tpu.memory_space<vmem>>, vector<9x128xf32>
    %cst = arith.constant 0.000000e+00 : f32
    %3 = vector.broadcast %cst : f32 to vector<16x128xf32>
    %4 = vector.extract_strided_slice %1 {offsets = [0, 0], sizes = [16, 128], strides = [1, 1]} : vector<18x144xf32> to vector<16x128xf32>
    %5 = vector.extract_strided_slice %2 {offsets = [0, 0], sizes = [1, 128], strides = [1, 1]} : vector<9x128xf32> to vector<1x128xf32>
    %6 = vector.broadcast %5 : vector<1x128xf32> to vector<16x128xf32>
    %7 = arith.mulf %4, %6 : vector<16x128xf32>
    %8 = arith.addf %3, %7 : vector<16x128xf32>
    %9 = vector.extract_strided_slice %1 {offsets = [0, 8], sizes = [16, 128], strides = [1, 1]} : vector<18x144xf32> to vector<16x128xf32>
    %10 = vector.extract_strided_slice %2 {offsets = [1, 0], sizes = [1, 128], strides = [1, 1]} : vector<9x128xf32> to vector<1x128xf32>
    %11 = vector.broadcast %10 : vector<1x128xf32> to vector<16x128xf32>
    %12 = arith.mulf %9, %11 : vector<16x128xf32>
    %13 = arith.addf %8, %12 : vector<16x128xf32>
    %14 = vector.extract_strided_slice %1 {offsets = [0, 16], sizes = [16, 128], strides = [1, 1]} : vector<18x144xf32> to vector<16x128xf32>
    %15 = vector.extract_strided_slice %2 {offsets = [2, 0], sizes = [1, 128], strides = [1, 1]} : vector<9x128xf32> to vector<1x128xf32>
    %16 = vector.broadcast %15 : vector<1x128xf32> to vector<16x128xf32>
    %17 = arith.mulf %14, %16 : vector<16x128xf32>
    %18 = arith.addf %13, %17 : vector<16x128xf32>
    %19 = vector.extract_strided_slice %1 {offsets = [1, 0], sizes = [16, 128], strides = [1, 1]} : vector<18x144xf32> to vector<16x128xf32>
    %20 = vector.extract_strided_slice %2 {offsets = [3, 0], sizes = [1, 128], strides = [1, 1]} : vector<9x128xf32> to vector<1x128xf32>
    %21 = vector.broadcast %20 : vector<1x128xf32> to vector<16x128xf32>
    %22 = arith.mulf %19, %21 : vector<16x128xf32>
    %23 = arith.addf %18, %22 : vector<16x128xf32>
    %24 = vector.extract_strided_slice %1 {offsets = [1, 8], sizes = [16, 128], strides = [1, 1]} : vector<18x144xf32> to vector<16x128xf32>
    %25 = vector.extract_strided_slice %2 {offsets = [4, 0], sizes = [1, 128], strides = [1, 1]} : vector<9x128xf32> to vector<1x128xf32>
    %26 = vector.broadcast %25 : vector<1x128xf32> to vector<16x128xf32>
    %27 = arith.mulf %24, %26 : vector<16x128xf32>
    %28 = arith.addf %23, %27 : vector<16x128xf32>
    %29 = vector.extract_strided_slice %1 {offsets = [1, 16], sizes = [16, 128], strides = [1, 1]} : vector<18x144xf32> to vector<16x128xf32>
    %30 = vector.extract_strided_slice %2 {offsets = [5, 0], sizes = [1, 128], strides = [1, 1]} : vector<9x128xf32> to vector<1x128xf32>
    %31 = vector.broadcast %30 : vector<1x128xf32> to vector<16x128xf32>
    %32 = arith.mulf %29, %31 : vector<16x128xf32>
    %33 = arith.addf %28, %32 : vector<16x128xf32>
    %34 = vector.extract_strided_slice %1 {offsets = [2, 0], sizes = [16, 128], strides = [1, 1]} : vector<18x144xf32> to vector<16x128xf32>
    %35 = vector.extract_strided_slice %2 {offsets = [6, 0], sizes = [1, 128], strides = [1, 1]} : vector<9x128xf32> to vector<1x128xf32>
    %36 = vector.broadcast %35 : vector<1x128xf32> to vector<16x128xf32>
    %37 = arith.mulf %34, %36 : vector<16x128xf32>
    %38 = arith.addf %33, %37 : vector<16x128xf32>
    %39 = vector.extract_strided_slice %1 {offsets = [2, 8], sizes = [16, 128], strides = [1, 1]} : vector<18x144xf32> to vector<16x128xf32>
    %40 = vector.extract_strided_slice %2 {offsets = [7, 0], sizes = [1, 128], strides = [1, 1]} : vector<9x128xf32> to vector<1x128xf32>
    %41 = vector.broadcast %40 : vector<1x128xf32> to vector<16x128xf32>
    %42 = arith.mulf %39, %41 : vector<16x128xf32>
    %43 = arith.addf %38, %42 : vector<16x128xf32>
    %44 = vector.extract_strided_slice %1 {offsets = [2, 16], sizes = [16, 128], strides = [1, 1]} : vector<18x144xf32> to vector<16x128xf32>
    %45 = vector.extract_strided_slice %2 {offsets = [8, 0], sizes = [1, 128], strides = [1, 1]} : vector<9x128xf32> to vector<1x128xf32>
    %46 = vector.broadcast %45 : vector<1x128xf32> to vector<16x128xf32>
    %47 = arith.mulf %44, %46 : vector<16x128xf32>
    %48 = arith.addf %43, %47 : vector<16x128xf32>
    %c0_4 = arith.constant 0 : index
    %c0_5 = arith.constant 0 : index
    %49 = vector.load %arg3[%c0_4, %c0_5] : memref<1x128xf32, #tpu.memory_space<vmem>>, vector<1x128xf32>
    %50 = vector.broadcast %49 : vector<1x128xf32> to vector<16x128xf32>
    %51 = arith.addf %48, %50 : vector<16x128xf32>
    %c0_6 = arith.constant 0 : index
    %c0_7 = arith.constant 0 : index
    %c0_8 = arith.constant 0 : index
    %52 = vector.load %arg4[%c0_6, %c0_7, %c0_8] : memref<1x16x128xf32, #tpu.memory_space<vmem>>, vector<1x16x128xf32>
    %53 = vector.shape_cast %52 : vector<1x16x128xf32> to vector<16x128xf32>
    %54 = vector.shape_cast %51 : vector<16x128xf32> to vector<1x16x128xf32>
    tpu.vector_store %arg4[%c0_6, %c0_7, %c0_8], %54 {strides = array<i32>} : memref<1x16x128xf32, #tpu.memory_space<vmem>>, vector<1x16x128xf32>,
    return
  }
  func.func @transform_0(%arg0: i32) -> (i32, i32, i32) {
    %c0_i32 = arith.constant 0 : i32
    %c0_i32_0 = arith.constant 0 : i32
    %c0_i32_1 = arith.constant 0 : i32
    return %arg0, %c0_i32, %c0_i32_0 : i32, i32, i32
  }
  func.func @transform_1(%arg0: i32) -> (i32, i32) {
    %c0_i32 = arith.constant 0 : i32
    %c0_i32_0 = arith.constant 0 : i32
    %c0_i32_1 = arith.constant 0 : i32
    return %c0_i32, %c0_i32_0 : i32, i32
  }
  func.func @transform_2(%arg0: i32) -> (i32, i32) {
    %c0_i32 = arith.constant 0 : i32
    %c0_i32_0 = arith.constant 0 : i32
    %c0_i32_1 = arith.constant 0 : i32
    return %c0_i32, %c0_i32_0 : i32, i32
  }
  func.func @transform_3(%arg0: i32) -> (i32, i32, i32) {
    %c0_i32 = arith.constant 0 : i32
    %c0_i32_0 = arith.constant 0 : i32
    %c0_i32_1 = arith.constant 0 : i32
    return %arg0, %c0_i32, %c0_i32_0 : i32, i32, i32
  }
}

module attributes {stable_mosaic.version = 11 : i64} {
  func.func @win_attn_kernel(%arg0: i32, %arg1: memref<4x8x128xf32, #tpu.memory_space<vmem>>, %arg2: memref<4x8x128xf32, #tpu.memory_space<vmem>>, %arg3: memref<4x8x128xf32, #tpu.memory_space<vmem>>, %arg4: memref<4x8x128xf32, #tpu.memory_space<vmem>>, %arg5: memref<4x4x4x1xf32, #tpu.memory_space<vmem>>, %arg6: memref<4x8x128xf32, #tpu.memory_space<vmem>>) attributes {dimension_semantics = [#tpu.dimension_semantics<parallel>], iteration_bounds = array<i64: 2>, scalar_prefetch = 0 : i64, scratch_operands = 0 : i64, tpu.core_type = #tpu.core_type<tc>, window_params = [{transform_indices = @transform_0, window_bounds = array<i64: 4, 8, 128>}, {transform_indices = @transform_1, window_bounds = array<i64: 4, 8, 128>}, {transform_indices = @transform_2, window_bounds = array<i64: 4, 8, 128>}, {transform_indices = @transform_3, window_bounds = array<i64: 4, 8, 128>}, {pipeline_mode = #tpu.pipeline_mode<synchronous>, transform_indices = @transform_4, window_bounds = array<i64: 4, 4, 4, 1>}, {transform_indices = @transform_5, window_bounds = array<i64: 4, 8, 128>}]} {
    %c0 = arith.constant 0 : index
    %c0_0 = arith.constant 0 : index
    %c0_1 = arith.constant 0 : index
    %0 = vector.load %arg1[%c0, %c0_0, %c0_1] : memref<4x8x128xf32, #tpu.memory_space<vmem>>, vector<4x8x128xf32>
    %c0_2 = arith.constant 0 : index
    %c0_3 = arith.constant 0 : index
    %c0_4 = arith.constant 0 : index
    %1 = vector.load %arg2[%c0_2, %c0_3, %c0_4] : memref<4x8x128xf32, #tpu.memory_space<vmem>>, vector<4x8x128xf32>
    %c0_5 = arith.constant 0 : index
    %c0_6 = arith.constant 0 : index
    %c0_7 = arith.constant 0 : index
    %2 = vector.load %arg3[%c0_5, %c0_6, %c0_7] : memref<4x8x128xf32, #tpu.memory_space<vmem>>, vector<4x8x128xf32>
    %c0_8 = arith.constant 0 : index
    %c0_9 = arith.constant 0 : index
    %c0_10 = arith.constant 0 : index
    %3 = vector.load %arg4[%c0_8, %c0_9, %c0_10] : memref<4x8x128xf32, #tpu.memory_space<vmem>>, vector<4x8x128xf32>
    %c0_11 = arith.constant 0 : index
    %c0_12 = arith.constant 0 : index
    %c0_13 = arith.constant 0 : index
    %c0_14 = arith.constant 0 : index
    %4 = vector.load %arg5[%c0_11, %c0_12, %c0_13, %c0_14] : memref<4x4x4x1xf32, #tpu.memory_space<vmem>>, vector<4x4x4x1xf32>
    %5 = vector.extract_strided_slice %0 {offsets = [0, 0, 0], sizes = [1, 8, 128], strides = [1, 1, 1]} : vector<4x8x128xf32> to vector<1x8x128xf32>
    %6 = vector.shape_cast %5 : vector<1x8x128xf32> to vector<8x128xf32>
    %7 = vector.extract_strided_slice %1 {offsets = [0, 0, 0], sizes = [1, 8, 128], strides = [1, 1, 1]} : vector<4x8x128xf32> to vector<1x8x128xf32>
    %8 = vector.shape_cast %7 : vector<1x8x128xf32> to vector<8x128xf32>
    %9 = arith.mulf %6, %8 : vector<8x128xf32>
    %10 = vector.extract_strided_slice %9 {offsets = [0, 0], sizes = [4, 128], strides = [1, 1]} : vector<8x128xf32> to vector<4x128xf32>
    %11 = vector.extract_strided_slice %9 {offsets = [4, 0], sizes = [4, 128], strides = [1, 1]} : vector<8x128xf32> to vector<4x128xf32>
    %12 = arith.addf %10, %11 : vector<4x128xf32>
    %13 = vector.extract_strided_slice %4 {offsets = [0, 0, 0, 0], sizes = [1, 1, 4, 1], strides = [1, 1, 1, 1]} : vector<4x4x4x1xf32> to vector<1x1x4x1xf32>
    %14 = vector.shape_cast %13 : vector<1x1x4x1xf32> to vector<4x1xf32>
    %15 = vector.broadcast %14 : vector<4x1xf32> to vector<4x128xf32>
    %16 = arith.addf %12, %15 : vector<4x128xf32>
    %17 = vector.extract_strided_slice %1 {offsets = [1, 0, 0], sizes = [1, 8, 128], strides = [1, 1, 1]} : vector<4x8x128xf32> to vector<1x8x128xf32>
    %18 = vector.shape_cast %17 : vector<1x8x128xf32> to vector<8x128xf32>
    %19 = arith.mulf %6, %18 : vector<8x128xf32>
    %20 = vector.extract_strided_slice %19 {offsets = [0, 0], sizes = [4, 128], strides = [1, 1]} : vector<8x128xf32> to vector<4x128xf32>
    %21 = vector.extract_strided_slice %19 {offsets = [4, 0], sizes = [4, 128], strides = [1, 1]} : vector<8x128xf32> to vector<4x128xf32>
    %22 = arith.addf %20, %21 : vector<4x128xf32>
    %23 = vector.extract_strided_slice %4 {offsets = [0, 1, 0, 0], sizes = [1, 1, 4, 1], strides = [1, 1, 1, 1]} : vector<4x4x4x1xf32> to vector<1x1x4x1xf32>
    %24 = vector.shape_cast %23 : vector<1x1x4x1xf32> to vector<4x1xf32>
    %25 = vector.broadcast %24 : vector<4x1xf32> to vector<4x128xf32>
    %26 = arith.addf %22, %25 : vector<4x128xf32>
    %27 = vector.extract_strided_slice %1 {offsets = [2, 0, 0], sizes = [1, 8, 128], strides = [1, 1, 1]} : vector<4x8x128xf32> to vector<1x8x128xf32>
    %28 = vector.shape_cast %27 : vector<1x8x128xf32> to vector<8x128xf32>
    %29 = arith.mulf %6, %28 : vector<8x128xf32>
    %30 = vector.extract_strided_slice %29 {offsets = [0, 0], sizes = [4, 128], strides = [1, 1]} : vector<8x128xf32> to vector<4x128xf32>
    %31 = vector.extract_strided_slice %29 {offsets = [4, 0], sizes = [4, 128], strides = [1, 1]} : vector<8x128xf32> to vector<4x128xf32>
    %32 = arith.addf %30, %31 : vector<4x128xf32>
    %33 = vector.extract_strided_slice %4 {offsets = [0, 2, 0, 0], sizes = [1, 1, 4, 1], strides = [1, 1, 1, 1]} : vector<4x4x4x1xf32> to vector<1x1x4x1xf32>
    %34 = vector.shape_cast %33 : vector<1x1x4x1xf32> to vector<4x1xf32>
    %35 = vector.broadcast %34 : vector<4x1xf32> to vector<4x128xf32>
    %36 = arith.addf %32, %35 : vector<4x128xf32>
    %37 = vector.extract_strided_slice %1 {offsets = [3, 0, 0], sizes = [1, 8, 128], strides = [1, 1, 1]} : vector<4x8x128xf32> to vector<1x8x128xf32>
    %38 = vector.shape_cast %37 : vector<1x8x128xf32> to vector<8x128xf32>
    %39 = arith.mulf %6, %38 : vector<8x128xf32>
    %40 = vector.extract_strided_slice %39 {offsets = [0, 0], sizes = [4, 128], strides = [1, 1]} : vector<8x128xf32> to vector<4x128xf32>
    %41 = vector.extract_strided_slice %39 {offsets = [4, 0], sizes = [4, 128], strides = [1, 1]} : vector<8x128xf32> to vector<4x128xf32>
    %42 = arith.addf %40, %41 : vector<4x128xf32>
    %43 = vector.extract_strided_slice %4 {offsets = [0, 3, 0, 0], sizes = [1, 1, 4, 1], strides = [1, 1, 1, 1]} : vector<4x4x4x1xf32> to vector<1x1x4x1xf32>
    %44 = vector.shape_cast %43 : vector<1x1x4x1xf32> to vector<4x1xf32>
    %45 = vector.broadcast %44 : vector<4x1xf32> to vector<4x128xf32>
    %46 = arith.addf %42, %45 : vector<4x128xf32>
    %47 = arith.maximumf %16, %26 : vector<4x128xf32>
    %48 = arith.maximumf %47, %36 : vector<4x128xf32>
    %49 = arith.maximumf %48, %46 : vector<4x128xf32>
    %50 = arith.subf %16, %49 : vector<4x128xf32>
    %51 = math.exp %50 : vector<4x128xf32>
    %52 = arith.subf %26, %49 : vector<4x128xf32>
    %53 = math.exp %52 : vector<4x128xf32>
    %54 = arith.subf %36, %49 : vector<4x128xf32>
    %55 = math.exp %54 : vector<4x128xf32>
    %56 = arith.subf %46, %49 : vector<4x128xf32>
    %57 = math.exp %56 : vector<4x128xf32>
    %58 = arith.addf %51, %53 : vector<4x128xf32>
    %59 = arith.addf %58, %55 : vector<4x128xf32>
    %60 = arith.addf %59, %57 : vector<4x128xf32>
    %cst = arith.constant 1.000000e+00 : f32
    %61 = vector.broadcast %cst : f32 to vector<4x128xf32>
    %62 = arith.divf %61, %60 : vector<4x128xf32>
    %63 = vector.extract_strided_slice %3 {offsets = [0, 0, 0], sizes = [1, 8, 128], strides = [1, 1, 1]} : vector<4x8x128xf32> to vector<1x8x128xf32>
    %64 = vector.shape_cast %63 : vector<1x8x128xf32> to vector<8x128xf32>
    %65 = arith.mulf %51, %62 : vector<4x128xf32>
    %66 = tpu.concatenate %65, %65 in 0 : vector<4x128xf32>, vector<4x128xf32> -> vector<8x128xf32>
    %67 = vector.extract_strided_slice %2 {offsets = [0, 0, 0], sizes = [1, 8, 128], strides = [1, 1, 1]} : vector<4x8x128xf32> to vector<1x8x128xf32>
    %68 = vector.shape_cast %67 : vector<1x8x128xf32> to vector<8x128xf32>
    %69 = arith.mulf %66, %68 : vector<8x128xf32>
    %70 = arith.addf %64, %69 : vector<8x128xf32>
    %71 = arith.mulf %53, %62 : vector<4x128xf32>
    %72 = tpu.concatenate %71, %71 in 0 : vector<4x128xf32>, vector<4x128xf32> -> vector<8x128xf32>
    %73 = vector.extract_strided_slice %2 {offsets = [1, 0, 0], sizes = [1, 8, 128], strides = [1, 1, 1]} : vector<4x8x128xf32> to vector<1x8x128xf32>
    %74 = vector.shape_cast %73 : vector<1x8x128xf32> to vector<8x128xf32>
    %75 = arith.mulf %72, %74 : vector<8x128xf32>
    %76 = arith.addf %70, %75 : vector<8x128xf32>
    %77 = arith.mulf %55, %62 : vector<4x128xf32>
    %78 = tpu.concatenate %77, %77 in 0 : vector<4x128xf32>, vector<4x128xf32> -> vector<8x128xf32>
    %79 = vector.extract_strided_slice %2 {offsets = [2, 0, 0], sizes = [1, 8, 128], strides = [1, 1, 1]} : vector<4x8x128xf32> to vector<1x8x128xf32>
    %80 = vector.shape_cast %79 : vector<1x8x128xf32> to vector<8x128xf32>
    %81 = arith.mulf %78, %80 : vector<8x128xf32>
    %82 = arith.addf %76, %81 : vector<8x128xf32>
    %83 = arith.mulf %57, %62 : vector<4x128xf32>
    %84 = tpu.concatenate %83, %83 in 0 : vector<4x128xf32>, vector<4x128xf32> -> vector<8x128xf32>
    %85 = vector.extract_strided_slice %2 {offsets = [3, 0, 0], sizes = [1, 8, 128], strides = [1, 1, 1]} : vector<4x8x128xf32> to vector<1x8x128xf32>
    %86 = vector.shape_cast %85 : vector<1x8x128xf32> to vector<8x128xf32>
    %87 = arith.mulf %84, %86 : vector<8x128xf32>
    %88 = arith.addf %82, %87 : vector<8x128xf32>
    %c0_15 = arith.constant 0 : index
    %c0_16 = arith.constant 0 : index
    %c0_17 = arith.constant 0 : index
    %89 = vector.load %arg6[%c0_15, %c0_16, %c0_17] : memref<4x8x128xf32, #tpu.memory_space<vmem>>, vector<1x8x128xf32>
    %90 = vector.shape_cast %89 : vector<1x8x128xf32> to vector<8x128xf32>
    %91 = vector.shape_cast %88 : vector<8x128xf32> to vector<1x8x128xf32>
    tpu.vector_store %arg6[%c0_15, %c0_16, %c0_17], %91 {strides = array<i32>} : memref<4x8x128xf32, #tpu.memory_space<vmem>>, vector<1x8x128xf32>,
    %92 = vector.extract_strided_slice %0 {offsets = [1, 0, 0], sizes = [1, 8, 128], strides = [1, 1, 1]} : vector<4x8x128xf32> to vector<1x8x128xf32>
    %93 = vector.shape_cast %92 : vector<1x8x128xf32> to vector<8x128xf32>
    %94 = vector.extract_strided_slice %1 {offsets = [0, 0, 0], sizes = [1, 8, 128], strides = [1, 1, 1]} : vector<4x8x128xf32> to vector<1x8x128xf32>
    %95 = vector.shape_cast %94 : vector<1x8x128xf32> to vector<8x128xf32>
    %96 = arith.mulf %93, %95 : vector<8x128xf32>
    %97 = vector.extract_strided_slice %96 {offsets = [0, 0], sizes = [4, 128], strides = [1, 1]} : vector<8x128xf32> to vector<4x128xf32>
    %98 = vector.extract_strided_slice %96 {offsets = [4, 0], sizes = [4, 128], strides = [1, 1]} : vector<8x128xf32> to vector<4x128xf32>
    %99 = arith.addf %97, %98 : vector<4x128xf32>
    %100 = vector.extract_strided_slice %4 {offsets = [1, 0, 0, 0], sizes = [1, 1, 4, 1], strides = [1, 1, 1, 1]} : vector<4x4x4x1xf32> to vector<1x1x4x1xf32>
    %101 = vector.shape_cast %100 : vector<1x1x4x1xf32> to vector<4x1xf32>
    %102 = vector.broadcast %101 : vector<4x1xf32> to vector<4x128xf32>
    %103 = arith.addf %99, %102 : vector<4x128xf32>
    %104 = vector.extract_strided_slice %1 {offsets = [1, 0, 0], sizes = [1, 8, 128], strides = [1, 1, 1]} : vector<4x8x128xf32> to vector<1x8x128xf32>
    %105 = vector.shape_cast %104 : vector<1x8x128xf32> to vector<8x128xf32>
    %106 = arith.mulf %93, %105 : vector<8x128xf32>
    %107 = vector.extract_strided_slice %106 {offsets = [0, 0], sizes = [4, 128], strides = [1, 1]} : vector<8x128xf32> to vector<4x128xf32>
    %108 = vector.extract_strided_slice %106 {offsets = [4, 0], sizes = [4, 128], strides = [1, 1]} : vector<8x128xf32> to vector<4x128xf32>
    %109 = arith.addf %107, %108 : vector<4x128xf32>
    %110 = vector.extract_strided_slice %4 {offsets = [1, 1, 0, 0], sizes = [1, 1, 4, 1], strides = [1, 1, 1, 1]} : vector<4x4x4x1xf32> to vector<1x1x4x1xf32>
    %111 = vector.shape_cast %110 : vector<1x1x4x1xf32> to vector<4x1xf32>
    %112 = vector.broadcast %111 : vector<4x1xf32> to vector<4x128xf32>
    %113 = arith.addf %109, %112 : vector<4x128xf32>
    %114 = vector.extract_strided_slice %1 {offsets = [2, 0, 0], sizes = [1, 8, 128], strides = [1, 1, 1]} : vector<4x8x128xf32> to vector<1x8x128xf32>
    %115 = vector.shape_cast %114 : vector<1x8x128xf32> to vector<8x128xf32>
    %116 = arith.mulf %93, %115 : vector<8x128xf32>
    %117 = vector.extract_strided_slice %116 {offsets = [0, 0], sizes = [4, 128], strides = [1, 1]} : vector<8x128xf32> to vector<4x128xf32>
    %118 = vector.extract_strided_slice %116 {offsets = [4, 0], sizes = [4, 128], strides = [1, 1]} : vector<8x128xf32> to vector<4x128xf32>
    %119 = arith.addf %117, %118 : vector<4x128xf32>
    %120 = vector.extract_strided_slice %4 {offsets = [1, 2, 0, 0], sizes = [1, 1, 4, 1], strides = [1, 1, 1, 1]} : vector<4x4x4x1xf32> to vector<1x1x4x1xf32>
    %121 = vector.shape_cast %120 : vector<1x1x4x1xf32> to vector<4x1xf32>
    %122 = vector.broadcast %121 : vector<4x1xf32> to vector<4x128xf32>
    %123 = arith.addf %119, %122 : vector<4x128xf32>
    %124 = vector.extract_strided_slice %1 {offsets = [3, 0, 0], sizes = [1, 8, 128], strides = [1, 1, 1]} : vector<4x8x128xf32> to vector<1x8x128xf32>
    %125 = vector.shape_cast %124 : vector<1x8x128xf32> to vector<8x128xf32>
    %126 = arith.mulf %93, %125 : vector<8x128xf32>
    %127 = vector.extract_strided_slice %126 {offsets = [0, 0], sizes = [4, 128], strides = [1, 1]} : vector<8x128xf32> to vector<4x128xf32>
    %128 = vector.extract_strided_slice %126 {offsets = [4, 0], sizes = [4, 128], strides = [1, 1]} : vector<8x128xf32> to vector<4x128xf32>
    %129 = arith.addf %127, %128 : vector<4x128xf32>
    %130 = vector.extract_strided_slice %4 {offsets = [1, 3, 0, 0], sizes = [1, 1, 4, 1], strides = [1, 1, 1, 1]} : vector<4x4x4x1xf32> to vector<1x1x4x1xf32>
    %131 = vector.shape_cast %130 : vector<1x1x4x1xf32> to vector<4x1xf32>
    %132 = vector.broadcast %131 : vector<4x1xf32> to vector<4x128xf32>
    %133 = arith.addf %129, %132 : vector<4x128xf32>
    %134 = arith.maximumf %103, %113 : vector<4x128xf32>
    %135 = arith.maximumf %134, %123 : vector<4x128xf32>
    %136 = arith.maximumf %135, %133 : vector<4x128xf32>
    %137 = arith.subf %103, %136 : vector<4x128xf32>
    %138 = math.exp %137 : vector<4x128xf32>
    %139 = arith.subf %113, %136 : vector<4x128xf32>
    %140 = math.exp %139 : vector<4x128xf32>
    %141 = arith.subf %123, %136 : vector<4x128xf32>
    %142 = math.exp %141 : vector<4x128xf32>
    %143 = arith.subf %133, %136 : vector<4x128xf32>
    %144 = math.exp %143 : vector<4x128xf32>
    %145 = arith.addf %138, %140 : vector<4x128xf32>
    %146 = arith.addf %145, %142 : vector<4x128xf32>
    %147 = arith.addf %146, %144 : vector<4x128xf32>
    %cst_18 = arith.constant 1.000000e+00 : f32
    %148 = vector.broadcast %cst_18 : f32 to vector<4x128xf32>
    %149 = arith.divf %148, %147 : vector<4x128xf32>
    %150 = vector.extract_strided_slice %3 {offsets = [1, 0, 0], sizes = [1, 8, 128], strides = [1, 1, 1]} : vector<4x8x128xf32> to vector<1x8x128xf32>
    %151 = vector.shape_cast %150 : vector<1x8x128xf32> to vector<8x128xf32>
    %152 = arith.mulf %138, %149 : vector<4x128xf32>
    %153 = tpu.concatenate %152, %152 in 0 : vector<4x128xf32>, vector<4x128xf32> -> vector<8x128xf32>
    %154 = vector.extract_strided_slice %2 {offsets = [0, 0, 0], sizes = [1, 8, 128], strides = [1, 1, 1]} : vector<4x8x128xf32> to vector<1x8x128xf32>
    %155 = vector.shape_cast %154 : vector<1x8x128xf32> to vector<8x128xf32>
    %156 = arith.mulf %153, %155 : vector<8x128xf32>
    %157 = arith.addf %151, %156 : vector<8x128xf32>
    %158 = arith.mulf %140, %149 : vector<4x128xf32>
    %159 = tpu.concatenate %158, %158 in 0 : vector<4x128xf32>, vector<4x128xf32> -> vector<8x128xf32>
    %160 = vector.extract_strided_slice %2 {offsets = [1, 0, 0], sizes = [1, 8, 128], strides = [1, 1, 1]} : vector<4x8x128xf32> to vector<1x8x128xf32>
    %161 = vector.shape_cast %160 : vector<1x8x128xf32> to vector<8x128xf32>
    %162 = arith.mulf %159, %161 : vector<8x128xf32>
    %163 = arith.addf %157, %162 : vector<8x128xf32>
    %164 = arith.mulf %142, %149 : vector<4x128xf32>
    %165 = tpu.concatenate %164, %164 in 0 : vector<4x128xf32>, vector<4x128xf32> -> vector<8x128xf32>
    %166 = vector.extract_strided_slice %2 {offsets = [2, 0, 0], sizes = [1, 8, 128], strides = [1, 1, 1]} : vector<4x8x128xf32> to vector<1x8x128xf32>
    %167 = vector.shape_cast %166 : vector<1x8x128xf32> to vector<8x128xf32>
    %168 = arith.mulf %165, %167 : vector<8x128xf32>
    %169 = arith.addf %163, %168 : vector<8x128xf32>
    %170 = arith.mulf %144, %149 : vector<4x128xf32>
    %171 = tpu.concatenate %170, %170 in 0 : vector<4x128xf32>, vector<4x128xf32> -> vector<8x128xf32>
    %172 = vector.extract_strided_slice %2 {offsets = [3, 0, 0], sizes = [1, 8, 128], strides = [1, 1, 1]} : vector<4x8x128xf32> to vector<1x8x128xf32>
    %173 = vector.shape_cast %172 : vector<1x8x128xf32> to vector<8x128xf32>
    %174 = arith.mulf %171, %173 : vector<8x128xf32>
    %175 = arith.addf %169, %174 : vector<8x128xf32>
    %c1 = arith.constant 1 : index
    %c0_19 = arith.constant 0 : index
    %c0_20 = arith.constant 0 : index
    %176 = vector.load %arg6[%c1, %c0_19, %c0_20] : memref<4x8x128xf32, #tpu.memory_space<vmem>>, vector<1x8x128xf32>
    %177 = vector.shape_cast %176 : vector<1x8x128xf32> to vector<8x128xf32>
    %178 = vector.shape_cast %175 : vector<8x128xf32> to vector<1x8x128xf32>
    tpu.vector_store %arg6[%c1, %c0_19, %c0_20], %178 {strides = array<i32>} : memref<4x8x128xf32, #tpu.memory_space<vmem>>, vector<1x8x128xf32>,
    %179 = vector.extract_strided_slice %0 {offsets = [2, 0, 0], sizes = [1, 8, 128], strides = [1, 1, 1]} : vector<4x8x128xf32> to vector<1x8x128xf32>
    %180 = vector.shape_cast %179 : vector<1x8x128xf32> to vector<8x128xf32>
    %181 = vector.extract_strided_slice %1 {offsets = [0, 0, 0], sizes = [1, 8, 128], strides = [1, 1, 1]} : vector<4x8x128xf32> to vector<1x8x128xf32>
    %182 = vector.shape_cast %181 : vector<1x8x128xf32> to vector<8x128xf32>
    %183 = arith.mulf %180, %182 : vector<8x128xf32>
    %184 = vector.extract_strided_slice %183 {offsets = [0, 0], sizes = [4, 128], strides = [1, 1]} : vector<8x128xf32> to vector<4x128xf32>
    %185 = vector.extract_strided_slice %183 {offsets = [4, 0], sizes = [4, 128], strides = [1, 1]} : vector<8x128xf32> to vector<4x128xf32>
    %186 = arith.addf %184, %185 : vector<4x128xf32>
    %187 = vector.extract_strided_slice %4 {offsets = [2, 0, 0, 0], sizes = [1, 1, 4, 1], strides = [1, 1, 1, 1]} : vector<4x4x4x1xf32> to vector<1x1x4x1xf32>
    %188 = vector.shape_cast %187 : vector<1x1x4x1xf32> to vector<4x1xf32>
    %189 = vector.broadcast %188 : vector<4x1xf32> to vector<4x128xf32>
    %190 = arith.addf %186, %189 : vector<4x128xf32>
    %191 = vector.extract_strided_slice %1 {offsets = [1, 0, 0], sizes = [1, 8, 128], strides = [1, 1, 1]} : vector<4x8x128xf32> to vector<1x8x128xf32>
    %192 = vector.shape_cast %191 : vector<1x8x128xf32> to vector<8x128xf32>
    %193 = arith.mulf %180, %192 : vector<8x128xf32>
    %194 = vector.extract_strided_slice %193 {offsets = [0, 0], sizes = [4, 128], strides = [1, 1]} : vector<8x128xf32> to vector<4x128xf32>
    %195 = vector.extract_strided_slice %193 {offsets = [4, 0], sizes = [4, 128], strides = [1, 1]} : vector<8x128xf32> to vector<4x128xf32>
    %196 = arith.addf %194, %195 : vector<4x128xf32>
    %197 = vector.extract_strided_slice %4 {offsets = [2, 1, 0, 0], sizes = [1, 1, 4, 1], strides = [1, 1, 1, 1]} : vector<4x4x4x1xf32> to vector<1x1x4x1xf32>
    %198 = vector.shape_cast %197 : vector<1x1x4x1xf32> to vector<4x1xf32>
    %199 = vector.broadcast %198 : vector<4x1xf32> to vector<4x128xf32>
    %200 = arith.addf %196, %199 : vector<4x128xf32>
    %201 = vector.extract_strided_slice %1 {offsets = [2, 0, 0], sizes = [1, 8, 128], strides = [1, 1, 1]} : vector<4x8x128xf32> to vector<1x8x128xf32>
    %202 = vector.shape_cast %201 : vector<1x8x128xf32> to vector<8x128xf32>
    %203 = arith.mulf %180, %202 : vector<8x128xf32>
    %204 = vector.extract_strided_slice %203 {offsets = [0, 0], sizes = [4, 128], strides = [1, 1]} : vector<8x128xf32> to vector<4x128xf32>
    %205 = vector.extract_strided_slice %203 {offsets = [4, 0], sizes = [4, 128], strides = [1, 1]} : vector<8x128xf32> to vector<4x128xf32>
    %206 = arith.addf %204, %205 : vector<4x128xf32>
    %207 = vector.extract_strided_slice %4 {offsets = [2, 2, 0, 0], sizes = [1, 1, 4, 1], strides = [1, 1, 1, 1]} : vector<4x4x4x1xf32> to vector<1x1x4x1xf32>
    %208 = vector.shape_cast %207 : vector<1x1x4x1xf32> to vector<4x1xf32>
    %209 = vector.broadcast %208 : vector<4x1xf32> to vector<4x128xf32>
    %210 = arith.addf %206, %209 : vector<4x128xf32>
    %211 = vector.extract_strided_slice %1 {offsets = [3, 0, 0], sizes = [1, 8, 128], strides = [1, 1, 1]} : vector<4x8x128xf32> to vector<1x8x128xf32>
    %212 = vector.shape_cast %211 : vector<1x8x128xf32> to vector<8x128xf32>
    %213 = arith.mulf %180, %212 : vector<8x128xf32>
    %214 = vector.extract_strided_slice %213 {offsets = [0, 0], sizes = [4, 128], strides = [1, 1]} : vector<8x128xf32> to vector<4x128xf32>
    %215 = vector.extract_strided_slice %213 {offsets = [4, 0], sizes = [4, 128], strides = [1, 1]} : vector<8x128xf32> to vector<4x128xf32>
    %216 = arith.addf %214, %215 : vector<4x128xf32>
    %217 = vector.extract_strided_slice %4 {offsets = [2, 3, 0, 0], sizes = [1, 1, 4, 1], strides = [1, 1, 1, 1]} : vector<4x4x4x1xf32> to vector<1x1x4x1xf32>
    %218 = vector.shape_cast %217 : vector<1x1x4x1xf32> to vector<4x1xf32>
    %219 = vector.broadcast %218 : vector<4x1xf32> to vector<4x128xf32>
    %220 = arith.addf %216, %219 : vector<4x128xf32>
    %221 = arith.maximumf %190, %200 : vector<4x128xf32>
    %222 = arith.maximumf %221, %210 : vector<4x128xf32>
    %223 = arith.maximumf %222, %220 : vector<4x128xf32>
    %224 = arith.subf %190, %223 : vector<4x128xf32>
    %225 = math.exp %224 : vector<4x128xf32>
    %226 = arith.subf %200, %223 : vector<4x128xf32>
    %227 = math.exp %226 : vector<4x128xf32>
    %228 = arith.subf %210, %223 : vector<4x128xf32>
    %229 = math.exp %228 : vector<4x128xf32>
    %230 = arith.subf %220, %223 : vector<4x128xf32>
    %231 = math.exp %230 : vector<4x128xf32>
    %232 = arith.addf %225, %227 : vector<4x128xf32>
    %233 = arith.addf %232, %229 : vector<4x128xf32>
    %234 = arith.addf %233, %231 : vector<4x128xf32>
    %cst_21 = arith.constant 1.000000e+00 : f32
    %235 = vector.broadcast %cst_21 : f32 to vector<4x128xf32>
    %236 = arith.divf %235, %234 : vector<4x128xf32>
    %237 = vector.extract_strided_slice %3 {offsets = [2, 0, 0], sizes = [1, 8, 128], strides = [1, 1, 1]} : vector<4x8x128xf32> to vector<1x8x128xf32>
    %238 = vector.shape_cast %237 : vector<1x8x128xf32> to vector<8x128xf32>
    %239 = arith.mulf %225, %236 : vector<4x128xf32>
    %240 = tpu.concatenate %239, %239 in 0 : vector<4x128xf32>, vector<4x128xf32> -> vector<8x128xf32>
    %241 = vector.extract_strided_slice %2 {offsets = [0, 0, 0], sizes = [1, 8, 128], strides = [1, 1, 1]} : vector<4x8x128xf32> to vector<1x8x128xf32>
    %242 = vector.shape_cast %241 : vector<1x8x128xf32> to vector<8x128xf32>
    %243 = arith.mulf %240, %242 : vector<8x128xf32>
    %244 = arith.addf %238, %243 : vector<8x128xf32>
    %245 = arith.mulf %227, %236 : vector<4x128xf32>
    %246 = tpu.concatenate %245, %245 in 0 : vector<4x128xf32>, vector<4x128xf32> -> vector<8x128xf32>
    %247 = vector.extract_strided_slice %2 {offsets = [1, 0, 0], sizes = [1, 8, 128], strides = [1, 1, 1]} : vector<4x8x128xf32> to vector<1x8x128xf32>
    %248 = vector.shape_cast %247 : vector<1x8x128xf32> to vector<8x128xf32>
    %249 = arith.mulf %246, %248 : vector<8x128xf32>
    %250 = arith.addf %244, %249 : vector<8x128xf32>
    %251 = arith.mulf %229, %236 : vector<4x128xf32>
    %252 = tpu.concatenate %251, %251 in 0 : vector<4x128xf32>, vector<4x128xf32> -> vector<8x128xf32>
    %253 = vector.extract_strided_slice %2 {offsets = [2, 0, 0], sizes = [1, 8, 128], strides = [1, 1, 1]} : vector<4x8x128xf32> to vector<1x8x128xf32>
    %254 = vector.shape_cast %253 : vector<1x8x128xf32> to vector<8x128xf32>
    %255 = arith.mulf %252, %254 : vector<8x128xf32>
    %256 = arith.addf %250, %255 : vector<8x128xf32>
    %257 = arith.mulf %231, %236 : vector<4x128xf32>
    %258 = tpu.concatenate %257, %257 in 0 : vector<4x128xf32>, vector<4x128xf32> -> vector<8x128xf32>
    %259 = vector.extract_strided_slice %2 {offsets = [3, 0, 0], sizes = [1, 8, 128], strides = [1, 1, 1]} : vector<4x8x128xf32> to vector<1x8x128xf32>
    %260 = vector.shape_cast %259 : vector<1x8x128xf32> to vector<8x128xf32>
    %261 = arith.mulf %258, %260 : vector<8x128xf32>
    %262 = arith.addf %256, %261 : vector<8x128xf32>
    %c2 = arith.constant 2 : index
    %c0_22 = arith.constant 0 : index
    %c0_23 = arith.constant 0 : index
    %263 = vector.load %arg6[%c2, %c0_22, %c0_23] : memref<4x8x128xf32, #tpu.memory_space<vmem>>, vector<1x8x128xf32>
    %264 = vector.shape_cast %263 : vector<1x8x128xf32> to vector<8x128xf32>
    %265 = vector.shape_cast %262 : vector<8x128xf32> to vector<1x8x128xf32>
    tpu.vector_store %arg6[%c2, %c0_22, %c0_23], %265 {strides = array<i32>} : memref<4x8x128xf32, #tpu.memory_space<vmem>>, vector<1x8x128xf32>,
    %266 = vector.extract_strided_slice %0 {offsets = [3, 0, 0], sizes = [1, 8, 128], strides = [1, 1, 1]} : vector<4x8x128xf32> to vector<1x8x128xf32>
    %267 = vector.shape_cast %266 : vector<1x8x128xf32> to vector<8x128xf32>
    %268 = vector.extract_strided_slice %1 {offsets = [0, 0, 0], sizes = [1, 8, 128], strides = [1, 1, 1]} : vector<4x8x128xf32> to vector<1x8x128xf32>
    %269 = vector.shape_cast %268 : vector<1x8x128xf32> to vector<8x128xf32>
    %270 = arith.mulf %267, %269 : vector<8x128xf32>
    %271 = vector.extract_strided_slice %270 {offsets = [0, 0], sizes = [4, 128], strides = [1, 1]} : vector<8x128xf32> to vector<4x128xf32>
    %272 = vector.extract_strided_slice %270 {offsets = [4, 0], sizes = [4, 128], strides = [1, 1]} : vector<8x128xf32> to vector<4x128xf32>
    %273 = arith.addf %271, %272 : vector<4x128xf32>
    %274 = vector.extract_strided_slice %4 {offsets = [3, 0, 0, 0], sizes = [1, 1, 4, 1], strides = [1, 1, 1, 1]} : vector<4x4x4x1xf32> to vector<1x1x4x1xf32>
    %275 = vector.shape_cast %274 : vector<1x1x4x1xf32> to vector<4x1xf32>
    %276 = vector.broadcast %275 : vector<4x1xf32> to vector<4x128xf32>
    %277 = arith.addf %273, %276 : vector<4x128xf32>
    %278 = vector.extract_strided_slice %1 {offsets = [1, 0, 0], sizes = [1, 8, 128], strides = [1, 1, 1]} : vector<4x8x128xf32> to vector<1x8x128xf32>
    %279 = vector.shape_cast %278 : vector<1x8x128xf32> to vector<8x128xf32>
    %280 = arith.mulf %267, %279 : vector<8x128xf32>
    %281 = vector.extract_strided_slice %280 {offsets = [0, 0], sizes = [4, 128], strides = [1, 1]} : vector<8x128xf32> to vector<4x128xf32>
    %282 = vector.extract_strided_slice %280 {offsets = [4, 0], sizes = [4, 128], strides = [1, 1]} : vector<8x128xf32> to vector<4x128xf32>
    %283 = arith.addf %281, %282 : vector<4x128xf32>
    %284 = vector.extract_strided_slice %4 {offsets = [3, 1, 0, 0], sizes = [1, 1, 4, 1], strides = [1, 1, 1, 1]} : vector<4x4x4x1xf32> to vector<1x1x4x1xf32>
    %285 = vector.shape_cast %284 : vector<1x1x4x1xf32> to vector<4x1xf32>
    %286 = vector.broadcast %285 : vector<4x1xf32> to vector<4x128xf32>
    %287 = arith.addf %283, %286 : vector<4x128xf32>
    %288 = vector.extract_strided_slice %1 {offsets = [2, 0, 0], sizes = [1, 8, 128], strides = [1, 1, 1]} : vector<4x8x128xf32> to vector<1x8x128xf32>
    %289 = vector.shape_cast %288 : vector<1x8x128xf32> to vector<8x128xf32>
    %290 = arith.mulf %267, %289 : vector<8x128xf32>
    %291 = vector.extract_strided_slice %290 {offsets = [0, 0], sizes = [4, 128], strides = [1, 1]} : vector<8x128xf32> to vector<4x128xf32>
    %292 = vector.extract_strided_slice %290 {offsets = [4, 0], sizes = [4, 128], strides = [1, 1]} : vector<8x128xf32> to vector<4x128xf32>
    %293 = arith.addf %291, %292 : vector<4x128xf32>
    %294 = vector.extract_strided_slice %4 {offsets = [3, 2, 0, 0], sizes = [1, 1, 4, 1], strides = [1, 1, 1, 1]} : vector<4x4x4x1xf32> to vector<1x1x4x1xf32>
    %295 = vector.shape_cast %294 : vector<1x1x4x1xf32> to vector<4x1xf32>
    %296 = vector.broadcast %295 : vector<4x1xf32> to vector<4x128xf32>
    %297 = arith.addf %293, %296 : vector<4x128xf32>
    %298 = vector.extract_strided_slice %1 {offsets = [3, 0, 0], sizes = [1, 8, 128], strides = [1, 1, 1]} : vector<4x8x128xf32> to vector<1x8x128xf32>
    %299 = vector.shape_cast %298 : vector<1x8x128xf32> to vector<8x128xf32>
    %300 = arith.mulf %267, %299 : vector<8x128xf32>
    %301 = vector.extract_strided_slice %300 {offsets = [0, 0], sizes = [4, 128], strides = [1, 1]} : vector<8x128xf32> to vector<4x128xf32>
    %302 = vector.extract_strided_slice %300 {offsets = [4, 0], sizes = [4, 128], strides = [1, 1]} : vector<8x128xf32> to vector<4x128xf32>
    %303 = arith.addf %301, %302 : vector<4x128xf32>
    %304 = vector.extract_strided_slice %4 {offsets = [3, 3, 0, 0], sizes = [1, 1, 4, 1], strides = [1, 1, 1, 1]} : vector<4x4x4x1xf32> to vector<1x1x4x1xf32>
    %305 = vector.shape_cast %304 : vector<1x1x4x1xf32> to vector<4x1xf32>
    %306 = vector.broadcast %305 : vector<4x1xf32> to vector<4x128xf32>
    %307 = arith.addf %303, %306 : vector<4x128xf32>
    %308 = arith.maximumf %277, %287 : vector<4x128xf32>
    %309 = arith.maximumf %308, %297 : vector<4x128xf32>
    %310 = arith.maximumf %309, %307 : vector<4x128xf32>
    %311 = arith.subf %277, %310 : vector<4x128xf32>
    %312 = math.exp %311 : vector<4x128xf32>
    %313 = arith.subf %287, %310 : vector<4x128xf32>
    %314 = math.exp %313 : vector<4x128xf32>
    %315 = arith.subf %297, %310 : vector<4x128xf32>
    %316 = math.exp %315 : vector<4x128xf32>
    %317 = arith.subf %307, %310 : vector<4x128xf32>
    %318 = math.exp %317 : vector<4x128xf32>
    %319 = arith.addf %312, %314 : vector<4x128xf32>
    %320 = arith.addf %319, %316 : vector<4x128xf32>
    %321 = arith.addf %320, %318 : vector<4x128xf32>
    %cst_24 = arith.constant 1.000000e+00 : f32
    %322 = vector.broadcast %cst_24 : f32 to vector<4x128xf32>
    %323 = arith.divf %322, %321 : vector<4x128xf32>
    %324 = vector.extract_strided_slice %3 {offsets = [3, 0, 0], sizes = [1, 8, 128], strides = [1, 1, 1]} : vector<4x8x128xf32> to vector<1x8x128xf32>
    %325 = vector.shape_cast %324 : vector<1x8x128xf32> to vector<8x128xf32>
    %326 = arith.mulf %312, %323 : vector<4x128xf32>
    %327 = tpu.concatenate %326, %326 in 0 : vector<4x128xf32>, vector<4x128xf32> -> vector<8x128xf32>
    %328 = vector.extract_strided_slice %2 {offsets = [0, 0, 0], sizes = [1, 8, 128], strides = [1, 1, 1]} : vector<4x8x128xf32> to vector<1x8x128xf32>
    %329 = vector.shape_cast %328 : vector<1x8x128xf32> to vector<8x128xf32>
    %330 = arith.mulf %327, %329 : vector<8x128xf32>
    %331 = arith.addf %325, %330 : vector<8x128xf32>
    %332 = arith.mulf %314, %323 : vector<4x128xf32>
    %333 = tpu.concatenate %332, %332 in 0 : vector<4x128xf32>, vector<4x128xf32> -> vector<8x128xf32>
    %334 = vector.extract_strided_slice %2 {offsets = [1, 0, 0], sizes = [1, 8, 128], strides = [1, 1, 1]} : vector<4x8x128xf32> to vector<1x8x128xf32>
    %335 = vector.shape_cast %334 : vector<1x8x128xf32> to vector<8x128xf32>
    %336 = arith.mulf %333, %335 : vector<8x128xf32>
    %337 = arith.addf %331, %336 : vector<8x128xf32>
    %338 = arith.mulf %316, %323 : vector<4x128xf32>
    %339 = tpu.concatenate %338, %338 in 0 : vector<4x128xf32>, vector<4x128xf32> -> vector<8x128xf32>
    %340 = vector.extract_strided_slice %2 {offsets = [2, 0, 0], sizes = [1, 8, 128], strides = [1, 1, 1]} : vector<4x8x128xf32> to vector<1x8x128xf32>
    %341 = vector.shape_cast %340 : vector<1x8x128xf32> to vector<8x128xf32>
    %342 = arith.mulf %339, %341 : vector<8x128xf32>
    %343 = arith.addf %337, %342 : vector<8x128xf32>
    %344 = arith.mulf %318, %323 : vector<4x128xf32>
    %345 = tpu.concatenate %344, %344 in 0 : vector<4x128xf32>, vector<4x128xf32> -> vector<8x128xf32>
    %346 = vector.extract_strided_slice %2 {offsets = [3, 0, 0], sizes = [1, 8, 128], strides = [1, 1, 1]} : vector<4x8x128xf32> to vector<1x8x128xf32>
    %347 = vector.shape_cast %346 : vector<1x8x128xf32> to vector<8x128xf32>
    %348 = arith.mulf %345, %347 : vector<8x128xf32>
    %349 = arith.addf %343, %348 : vector<8x128xf32>
    %c3 = arith.constant 3 : index
    %c0_25 = arith.constant 0 : index
    %c0_26 = arith.constant 0 : index
    %350 = vector.load %arg6[%c3, %c0_25, %c0_26] : memref<4x8x128xf32, #tpu.memory_space<vmem>>, vector<1x8x128xf32>
    %351 = vector.shape_cast %350 : vector<1x8x128xf32> to vector<8x128xf32>
    %352 = vector.shape_cast %349 : vector<8x128xf32> to vector<1x8x128xf32>
    tpu.vector_store %arg6[%c3, %c0_25, %c0_26], %352 {strides = array<i32>} : memref<4x8x128xf32, #tpu.memory_space<vmem>>, vector<1x8x128xf32>,
    return
  }
  func.func @transform_0(%arg0: i32) -> (i32, i32, i32) {
    %c0_i32 = arith.constant 0 : i32
    %c0_i32_0 = arith.constant 0 : i32
    %c0_i32_1 = arith.constant 0 : i32
    return %c0_i32, %c0_i32_0, %arg0 : i32, i32, i32
  }
  func.func @transform_1(%arg0: i32) -> (i32, i32, i32) {
    %c0_i32 = arith.constant 0 : i32
    %c0_i32_0 = arith.constant 0 : i32
    %c0_i32_1 = arith.constant 0 : i32
    return %c0_i32, %c0_i32_0, %arg0 : i32, i32, i32
  }
  func.func @transform_2(%arg0: i32) -> (i32, i32, i32) {
    %c0_i32 = arith.constant 0 : i32
    %c0_i32_0 = arith.constant 0 : i32
    %c0_i32_1 = arith.constant 0 : i32
    return %c0_i32, %c0_i32_0, %arg0 : i32, i32, i32
  }
  func.func @transform_3(%arg0: i32) -> (i32, i32, i32) {
    %c0_i32 = arith.constant 0 : i32
    %c0_i32_0 = arith.constant 0 : i32
    %c0_i32_1 = arith.constant 0 : i32
    return %c0_i32, %c0_i32_0, %arg0 : i32, i32, i32
  }
  func.func @transform_4(%arg0: i32) -> (i32, i32, i32, i32) {
    %c0_i32 = arith.constant 0 : i32
    %c0_i32_0 = arith.constant 0 : i32
    %c0_i32_1 = arith.constant 0 : i32
    %c0_i32_2 = arith.constant 0 : i32
    %c0_i32_3 = arith.constant 0 : i32
    return %c0_i32, %c0_i32_0, %c0_i32_1, %c0_i32_2 : i32, i32, i32, i32
  }
  func.func @transform_5(%arg0: i32) -> (i32, i32, i32) {
    %c0_i32 = arith.constant 0 : i32
    %c0_i32_0 = arith.constant 0 : i32
    %c0_i32_1 = arith.constant 0 : i32
    return %c0_i32, %c0_i32_0, %arg0 : i32, i32, i32
  }
}

</mosaic_0001>

<llo_original>
// kernel: sa_global_swin.3
$region0: #{sa_global_swin.3}
  #allocation0 [shape = 'u32[]', space=smem, size = 0x4, offset = 0x4, fixed_abs, tag = 'smem constant byte address 0x4 - core index']
  #allocation1 [shape = 'u32[144,128]{1,0:T(1,128)}', space=vmem, size = 0x12000, scoped, tag = 'internal scratch']
  %s0 = inlined_call_operand.vmem [shape: f32[4,8,256], index: 0, kind: input, shape index: {}]
  %s1 = inlined_call_operand.vmem [shape: f32[24,8], index: 1, kind: input, shape index: {}]
  %s2 = inlined_call_operand.vmem [shape: f32[4,24,256], index: 2, kind: output, shape index: {}]
  %s3 = sld [smem:[#allocation0]]
  $region41: #{sa_global_swin.3} parent=0
    _
  %s5 = ssub.s32 1, %s3
  %s6 = scalar_select 0, %s5, %s3
  loop: start=0, step=1, limit=6
  $region2: #{sa_global_swin.3} parent=0 // loop_pre_header
    _
  $region3: #{sa_global_swin.3} parent=0 // loop_header
    %s8 = sphi 0, %s12
    %p9 = scmp.ge.s32.totalorder %s8, 6
    %s18 = sphi 0, %s20
    %s21 = sphi 0, %s18
    %s22 = sphi 0, %s21
    %s38 = sphi 0, %s22
    %s42 = sphi 0, %s42
    %s44 = sphi 0, %s42
    %s45 = sphi 0, %s44
    %s59 = sphi 0, %s45
    %s65 = sphi 0, %s67
    %s68 = sphi 0, %s65
    %s69 = sphi 0, %s68
    %s85 = sphi 0, %s69
  $region4: #{sa_global_swin.3} parent=0 // loop_header_branch
    %11 = sbr.rel (%p9) target = $region8
  $region5: #{sa_global_swin.3} parent=0 // loop_body
    %s13 = ssub.s32 %s8, 1
    %s14 = ssub.s32 %s8, 2
    %s15 = sadd.s32 %s8, 1
    %s16 = ssub.s32 %s8, %s15
    %p17 = scmp.eq.s32.totalorder %s16, 0
    %s19 = sadd.s32 %s18, 1
    %s20 = scalar_select %p17, %s18, %s19
    %p23 = pneg %p17
    %p24 = scmp.eq.s32.totalorder %s8, 3
    %p25 = por %p23, %p24
    %p26 = scmp.ne.s32.totalorder %s18, %s21
    %p27 = scmp.eq.s32.totalorder %s8, 0
    %p28 = por %p26, %p27
    %p29 = scmp.ne.s32.totalorder %s18, %s21
    %p30 = scmp.eq.s32.totalorder %s13, 3
    %p31 = por %p29, %p30
    %p32 = scmp.ne.s32.totalorder %s21, %s22
    %p33 = scmp.eq.s32.totalorder %s13, 0
    %p34 = por %p32, %p33
    %p35 = scmp.ne.s32.totalorder %s21, %s22
    %p36 = scmp.eq.s32.totalorder %s14, 3
    %p37 = por %p35, %p36
    %p39 = scmp.ne.s32.totalorder %s22, %s38
    %p40 = scmp.eq.s32.totalorder %s14, 0
    %p41 = por %p39, %p40
    %s43 = sadd.s32 %s42, 1
    %p46 = scmp.eq.s32.totalorder %s8, 3
    %p47 = scmp.ne.s32.totalorder %s42, %s44
    %p48 = scmp.eq.s32.totalorder %s8, 0
    %p49 = por %p47, %p48
    %p50 = scmp.ne.s32.totalorder %s42, %s44
    %p51 = scmp.eq.s32.totalorder %s13, 3
    %p52 = por %p50, %p51
    %p53 = scmp.ne.s32.totalorder %s44, %s45
    %p54 = scmp.eq.s32.totalorder %s13, 0
    %p55 = por %p53, %p54
    %p56 = scmp.ne.s32.totalorder %s44, %s45
    %p57 = scmp.eq.s32.totalorder %s14, 3
    %p58 = por %p56, %p57
    %p60 = scmp.ne.s32.totalorder %s45, %s59
    %p61 = scmp.eq.s32.totalorder %s14, 0
    %p62 = por %p60, %p61
    %s63 = ssub.s32 %s8, %s15
    %p64 = scmp.eq.s32.totalorder %s63, 0
    %s66 = sadd.s32 %s65, 1
    %s67 = scalar_select %p64, %s65, %s66
    %p70 = pneg %p64
    %p71 = scmp.eq.s32.totalorder %s8, 3
    %p72 = por %p70, %p71
    %p73 = scmp.ne.s32.totalorder %s65, %s68
    %p74 = scmp.eq.s32.totalorder %s8, 0
    %p75 = por %p73, %p74
    %p76 = scmp.ne.s32.totalorder %s65, %s68
    %p77 = scmp.eq.s32.totalorder %s13, 3
    %p78 = por %p76, %p77
    %p79 = scmp.ne.s32.totalorder %s68, %s69
    %p80 = scmp.eq.s32.totalorder %s13, 0
    %p81 = por %p79, %p80
    %p82 = scmp.ne.s32.totalorder %s68, %s69
    %p83 = scmp.eq.s32.totalorder %s14, 3
    %p84 = por %p82, %p83
    %p86 = scmp.ne.s32.totalorder %s69, %s85
    %p87 = scmp.eq.s32.totalorder %s14, 0
    %p88 = por %p86, %p87
    %p89 = scmp.le.s32.totalorder 1, %s8
    %p90 = scmp.lt.s32.totalorder %s8, 5
    %p91 = pnand %p89, %p90
    %p92 = pneg %p91
    // Predicated region
    $region9: #{sa_global_swin.3} parent=5 // pred_check
      _
    $region10: #{sa_global_swin.3} parent=5 // pred_check_branch
      %94 = sbr.rel (%p91) target = $region12
    $region11: #{sa_global_swin.3} parent=5 // pred_region
      %s95 = ssub.s32 %s8, 1
      // Predicated region
      $region13: #{sa_global_swin.3} parent=11 // pred_check
        %p96 = pneg %p55
      $region14: #{sa_global_swin.3} parent=11 // pred_check_branch
        %98 = sbr.rel (%p96) target = $region16
      $region15: #{sa_global_swin.3} parent=11 // pred_region
        _
      $region16: #{sa_global_swin.3} parent=11 // pred_fallthru
        _
    $region12: #{sa_global_swin.3} parent=5 // pred_fallthru
      _
    %p99 = scmp.lt.s32.totalorder %s8, 4
    // Predicated region
    $region17: #{sa_global_swin.3} parent=5 // pred_check
      %p100 = pneg %p99
    $region18: #{sa_global_swin.3} parent=5 // pred_check_branch
      %102 = sbr.rel (%p100) target = $region20
    $region19: #{sa_global_swin.3} parent=5 // pred_region
      // Predicated region
      $region21: #{sa_global_swin.3} parent=19 // pred_check
        %p103 = pneg %p28
      $region22: #{sa_global_swin.3} parent=19 // pred_check_branch
        %105 = sbr.rel (%p103) target = $region24
      $region23: #{sa_global_swin.3} parent=19 // pred_region
        %p106 = scmp.lt.s32.totalorder %s8, 3
        %s107 = scalar_select %p106, %s8, 3
        %s108 = smul.addr %s107, 2
        %s109 = smul.addr %s108, 8
        %s110 = scalar_lea.vmem %s0, %s109
      $region24: #{sa_global_swin.3} parent=19 // pred_fallthru
        _
    $region20: #{sa_global_swin.3} parent=5 // pred_fallthru
      _
    %p111 = scmp.le.s32.totalorder 1, %s8
    %p112 = scmp.lt.s32.totalorder %s8, 5
    %p113 = pnand %p111, %p112
    %p114 = pneg %p113
    // Predicated region
    $region25: #{sa_global_swin.3} parent=5 // pred_check
      _
    $region26: #{sa_global_swin.3} parent=5 // pred_check_branch
      %116 = sbr.rel (%p113) target = $region28
    $region27: #{sa_global_swin.3} parent=5 // pred_region
      %s117 = ssub.s32 %s8, 1
      %p118 = scmp.lt.s32.totalorder %s13, 3
      %s119 = scalar_select %p118, %s13, 3
      %s120 = smul.addr %s119, 2
      %s121 = smul.addr %s120, 8
      %s122 = scalar_lea.vmem %s0, %s121
      %p123 = pneg %p34
      %p124 = pneg %p31
      %p125 = pneg %p55
      %p126 = pneg %p52
      %p127 = pneg %p81
      %p128 = pneg %p78
      %p129 = scmp.lt.s32.totalorder %s13, 3
      %s130 = scalar_select %p129, %s13, 3
      %s131 = smul.addr %s130, 6
      %s132 = smul.addr %s131, 8
      %s133 = scalar_lea.vmem %s2, %s132
      %p134 = scmp.lt.s32.totalorder %s13, 3
      %s135 = scalar_select %p134, %s13, 3
      %s136 = smul.addr %s135, 2
      %s137 = smul.addr %s136, 8
      %s138 = scalar_lea.vmem %s0, %s137
      %p139 = scmp.lt.s32.totalorder %s13, 3
      %s140 = scalar_select %p139, %s13, 3
      %s141 = smul.addr %s140, 6
      %s142 = smul.addr %s141, 8
      %s143 = scalar_lea.vmem %s2, %s142
      %v144 = vld [vmem:[%s1] sm:$0xff]
      %v145 = vld [vmem:[%s1 + $0x8] sm:$0xff]
      %v146 = vld [vmem:[%s1 + $0x10] sm:$0xff]
      %v147 = vld [vmem:[%s138] sm:$0xff]
      %v148 = vld [vmem:[%s138 + $0x8] sm:$0xff]
      %vm149 = vcmask 64512
      %v151 = vsel %vm149, %v144, 0
      %v154 = vsel %vm149, %v145, 0
      %v157 = vsel %vm149, %v146, 0
      %159 = vmatprep.subr.mxu0 %v148
      %160 = vmatpush1.msra.mxu0 %v147
      %161 = vmatprep.subr.mxu0 0.0
      %162 = vmatpush1.msra.mxu0 0.0
      %163 = vmatprep.subr.mxu0 0.0
      %164 = vmatpush1.msra.mxu0 0.0
      %165 = vmatprep.subr.mxu0 0.0
      %166 = vmatpush1.msra.mxu0 0.0
      %167 = vmatprep.subr.mxu0 0.0
      %168 = vmatpush1.msra.mxu0 0.0
      %169 = vmatprep.subr.mxu0 0.0
      %170 = vmatpush1.msra.mxu0 0.0
      %171 = vmatprep.subr.mxu0 0.0
      %172 = vmatpush1.msra.mxu0 0.0
      %173 = vmatprep.subr.mxu0 0.0
      %174 = vmatpush1.msra.mxu0 0.0
      %175 = vmatprep.subr.mxu0 0.0
      %176 = vmatpush1.msra.mxu0 0.0
      %177 = vmatprep.subr.mxu0 0.0
      %178 = vmatpush1.msra.mxu0 0.0
      %179 = vmatprep.subr.mxu0 0.0
      %180 = vmatpush1.msra.mxu0 0.0
      %181 = vmatprep.subr.mxu0 0.0
      %182 = vmatpush1.msra.mxu0 0.0
      %183 = vmatprep.subr.mxu0 0.0
      %184 = vmatpush1.msra.mxu0 0.0
      %185 = vmatprep.subr.mxu0 0.0
      %186 = vmatpush1.msra.mxu0 0.0
      %187 = vmatprep.subr.mxu0 0.0
      %188 = vmatpush1.msra.mxu0 0.0
      %189 = vmatprep.subr.mxu0 0.0
      %190 = vmatpush1.msra.mxu0 0.0
      %191 = vmatprep.subr.mxu0 0.0
      %192 = vmatpush1.msra.mxu0 0.0
      %193 = vmatprep.subr.mxu0 0.0
      %194 = vmatpush1.msra.mxu0 0.0
      %195 = vmatprep.subr.mxu0 0.0
      %196 = vmatpush1.msra.mxu0 0.0
      %197 = vmatprep.subr.mxu0 0.0
      %198 = vmatpush1.msra.mxu0 0.0
      %199 = vmatprep.subr.mxu0 0.0
      %200 = vmatpush1.msra.mxu0 0.0
      %201 = vmatprep.subr.mxu0 0.0
      %202 = vmatpush1.msra.mxu0 0.0
      %203 = vmatprep.subr.mxu0 0.0
      %204 = vmatpush1.msra.mxu0 0.0
      %205 = vmatprep.subr.mxu0 0.0
      %206 = vmatpush1.msra.mxu0 0.0
      %207 = vmatprep.subr.mxu0 0.0
      %208 = vmatpush1.msra.mxu0 0.0
      %209 = vmatprep.subr.mxu0 0.0
      %210 = vmatpush1.msra.mxu0 0.0
      %211 = vmatprep.subr.mxu0 0.0
      %212 = vmatpush1.msra.mxu0 0.0
      %213 = vmatprep.subr.mxu0 0.0
      %214 = vmatpush1.msra.mxu0 0.0
      %215 = vmatprep.subr.mxu0 0.0
      %216 = vmatpush1.msra.mxu0 0.0
      %217 = vmatprep.subr.mxu0 0.0
      %218 = vmatpush1.msra.mxu0 0.0
      %219 = vmatprep.subr.mxu0 0.0
      %220 = vmatpush1.msra.mxu0 0.0
      %221 = vmatprep.subr.mxu0 0.0
      %222 = vmatpush1.msra.mxu0 0.0
      %223 = vmatprep.mubr.f32.mxu0 0.0
      %224 = vmatmul.mubr.f32.gmra.mrb[0].mxu0 %v151
      %v225 = vpop.f32.mrb[0].mxu0
      %v226 = vadd.f32 0.0, %v225
      %v227 = vpop.f32.mrb[0].mxu0
      %v228 = vadd.f32 0.0, %v227
      %229 = vmatprep.mubr.f32.mxu0 0.0
      %230 = vmatmul.mubr.f32.gmra.mrb[0].mxu0 %v154
      %v231 = vpop.f32.mrb[0].mxu0
      %v232 = vadd.f32 0.0, %v231
      %v233 = vpop.f32.mrb[0].mxu0
      %v234 = vadd.f32 0.0, %v233
      %235 = vmatprep.mubr.f32.mxu0 0.0
      %236 = vmatmul.mubr.f32.gmra.mrb[0].mxu0 %v157
      %v237 = vpop.f32.mrb[0].mxu0
      %v238 = vadd.f32 0.0, %v237
      %v239 = vpop.f32.mrb[0].mxu0
      %v240 = vadd.f32 0.0, %v239
      %241 = vdwg.mxu0
      %242 = vst [vmem:[%s143] sm:$0xff] %v226
      %243 = vst [vmem:[%s143 + $0x8] sm:$0xff] %v228
      %244 = vst [vmem:[%s143 + $0x10] sm:$0xff] %v232
      %245 = vst [vmem:[%s143 + $0x18] sm:$0xff] %v234
      %246 = vst [vmem:[%s143 + $0x20] sm:$0xff] %v238
      %247 = vst [vmem:[%s143 + $0x28] sm:$0xff] %v240
      %p248 = scmp.lt.s32.totalorder %s13, 3
      %s249 = scalar_select %p248, %s13, 3
      %s250 = smul.addr %s249, 6
      %s251 = smul.addr %s250, 8
      %s252 = scalar_lea.vmem %s2, %s251
      // Predicated region
      $region29: #{sa_global_swin.3} parent=27 // pred_check
        %p253 = pneg %p78
      $region30: #{sa_global_swin.3} parent=27 // pred_check_branch
        %255 = sbr.rel (%p253) target = $region32
      $region31: #{sa_global_swin.3} parent=27 // pred_region
        _
      $region32: #{sa_global_swin.3} parent=27 // pred_fallthru
        _
    $region28: #{sa_global_swin.3} parent=5 // pred_fallthru
      _
    %p256 = scmp.le.s32.totalorder 2, %s8
    // Predicated region
    $region33: #{sa_global_swin.3} parent=5 // pred_check
      %p257 = pneg %p256
    $region34: #{sa_global_swin.3} parent=5 // pred_check_branch
      %259 = sbr.rel (%p257) target = $region36
    $region35: #{sa_global_swin.3} parent=5 // pred_region
      %s260 = ssub.s32 %s8, 2
      // Predicated region
      $region37: #{sa_global_swin.3} parent=35 // pred_check
        %p261 = pneg %p84
      $region38: #{sa_global_swin.3} parent=35 // pred_check_branch
        %263 = sbr.rel (%p261) target = $region40
      $region39: #{sa_global_swin.3} parent=35 // pred_region
        %p264 = scmp.lt.s32.totalorder %s14, 3
        %s265 = scalar_select %p264, %s14, 3
        %s266 = smul.addr %s265, 6
        %s267 = smul.addr %s266, 8
        %s268 = scalar_lea.vmem %s2, %s267
      $region40: #{sa_global_swin.3} parent=35 // pred_fallthru
        _
    $region36: #{sa_global_swin.3} parent=5 // pred_fallthru
      _
  $region6: #{sa_global_swin.3} parent=0 // loop_footer
    %s12 = sadd.s32 1, %s8
  $region7: #{sa_global_swin.3} parent=0 // loop_footer_branch
    %7 = sbr.rel target = $region3
  $region8: #{sa_global_swin.3} parent=0 // loop_exit
    _

// kernel: tile.14
$region0: #{tile.14}
  %s0 = inlined_call_operand.vmem [shape: f32[9,16,8], index: 0, kind: input, shape index: {}]
  %s1 = inlined_call_operand.vmem [shape: f32[9,128], index: 1, kind: output, shape index: {}]
  %s2 = smov 3
  %v3 = vld [vmem:[%s0] ss:$16 sm:%s2]
  %s4 = smov 12
  %v5 = vld [vmem:[%s0] ss:$16 sm:%s4]
  %vm6 = vcmask 1043458
  %v7 = vsel %vm6, %v5, %v3
  %s8 = smov 48
  %v9 = vld [vmem:[%s0] ss:$16 sm:%s8]
  %vm10 = vcmask 1045508
  %v11 = vsel %vm10, %v9, %v7
  %s12 = smov 192
  %v13 = vld [vmem:[%s0] ss:$16 sm:%s12]
  %vm14 = vcmask 1047558
  %v15 = vsel %vm14, %v13, %v11
  %vm16 = vcmask 64512
  %17 = vst.msk [vmem:[%s1] sm:$0xff] %vm16, %v15
  %s18 = scalar_lea.vmem %s0, 128
  %v19 = vld [vmem:[%s18] sm:$0x1]
  %vm20 = vcmask 64512
  %s21 = scalar_lea.vmem %s1, 8
  %22 = vst.msk [vmem:[%s21] sm:$0x1] %vm20, %v19
  %s23 = scalar_lea.vmem %s0, 15
  %s24 = smov 3
  %v25 = vld [vmem:[%s23] ss:$16 sm:%s24]
  %s26 = scalar_lea.vmem %s0, 15
  %s27 = smov 12
  %v28 = vld [vmem:[%s26] ss:$16 sm:%s27]
  %vm29 = vcmask 1043458
  %v30 = vsel %vm29, %v28, %v25
  %s31 = scalar_lea.vmem %s0, 15
  %s32 = smov 48
  %v33 = vld [vmem:[%s31] ss:$16 sm:%s32]
  %vm34 = vcmask 1045508
  %v35 = vsel %vm34, %v33, %v30
  %s36 = scalar_lea.vmem %s0, 15
  %s37 = smov 192
  %v38 = vld [vmem:[%s36] ss:$16 sm:%s37]
  %vm39 = vcmask 1047558
  %v40 = vsel %vm39, %v38, %v35
  %41 = vrot.lane.b32.xlu0 %v40, 120
  %v42 = vpop.permute.xlu0 %41
  %vm43 = vcmask 1048512
  %44 = vst.msk [vmem:[%s1] sm:$0xff] %vm43, %v42
  %s45 = scalar_lea.vmem %s0, 143
  %v46 = vld [vmem:[%s45] sm:$0x1]
  %47 = vrot.lane.b32.xlu0 %v46, 120
  %v48 = vpop.permute.xlu0 %47
  %vm49 = vcmask 1048512
  %s50 = scalar_lea.vmem %s1, 8
  %51 = vst.msk [vmem:[%s50] sm:$0x1] %vm49, %v48
  %s52 = scalar_lea.vmem %s0, 14
  %s53 = smov 3
  %v54 = vld [vmem:[%s52] ss:$16 sm:%s53]
  %s55 = scalar_lea.vmem %s0, 14
  %s56 = smov 12
  %v57 = vld [vmem:[%s55] ss:$16 sm:%s56]
  %vm58 = vcmask 1043458
  %v59 = vsel %vm58, %v57, %v54
  %s60 = scalar_lea.vmem %s0, 14
  %s61 = smov 48
  %v62 = vld [vmem:[%s60] ss:$16 sm:%s61]
  %vm63 = vcmask 1045508
  %v64 = vsel %vm63, %v62, %v59
  %s65 = scalar_lea.vmem %s0, 14
  %s66 = smov 192
  %v67 = vld [vmem:[%s65] ss:$16 sm:%s66]
  %vm68 = vcmask 1047558
  %v69 = vsel %vm68, %v67, %v64
  %70 = vrot.lane.b32.xlu0 %v69, 112
  %v71 = vpop.permute.xlu0 %70
  %vm72 = vcmask 982912
  %73 = vst.msk [vmem:[%s1] sm:$0xff] %vm72, %v71
  %s74 = scalar_lea.vmem %s0, 142
  %v75 = vld [vmem:[%s74] sm:$0x1]
  %76 = vrot.lane.b32.xlu0 %v75, 112
  %v77 = vpop.permute.xlu0 %76
  %vm78 = vcmask 982912
  %s79 = scalar_lea.vmem %s1, 8
  %80 = vst.msk [vmem:[%s79] sm:$0x1] %vm78, %v77
  %s81 = scalar_lea.vmem %s0, 13
  %s82 = smov 3
  %v83 = vld [vmem:[%s81] ss:$16 sm:%s82]
  %s84 = scalar_lea.vmem %s0, 13
  %s85 = smov 12
  %v86 = vld [vmem:[%s84] ss:$16 sm:%s85]
  %vm87 = vcmask 1043458
  %v88 = vsel %vm87, %v86, %v83
  %s89 = scalar_lea.vmem %s0, 13
  %s90 = smov 48
  %v91 = vld [vmem:[%s89] ss:$16 sm:%s90]
  %vm92 = vcmask 1045508
  %v93 = vsel %vm92, %v91, %v88
  %s94 = scalar_lea.vmem %s0, 13
  %s95 = smov 192
  %v96 = vld [vmem:[%s94] ss:$16 sm:%s95]
  %vm97 = vcmask 1047558
  %v98 = vsel %vm97, %v96, %v93
  %99 = vrot.lane.b32.xlu0 %v98, 104
  %v100 = vpop.permute.xlu0 %99
  %vm101 = vcmask 917312
  %102 = vst.msk [vmem:[%s1] sm:$0xff] %vm101, %v100
  %s103 = scalar_lea.vmem %s0, 141
  %v104 = vld [vmem:[%s103] sm:$0x1]
  %105 = vrot.lane.b32.xlu0 %v104, 104
  %v106 = vpop.permute.xlu0 %105
  %vm107 = vcmask 917312
  %s108 = scalar_lea.vmem %s1, 8
  %109 = vst.msk [vmem:[%s108] sm:$0x1] %vm107, %v106
  %s110 = scalar_lea.vmem %s0, 12
  %s111 = smov 3
  %v112 = vld [vmem:[%s110] ss:$16 sm:%s111]
  %s113 = scalar_lea.vmem %s0, 12
  %s114 = smov 12
  %v115 = vld [vmem:[%s113] ss:$16 sm:%s114]
  %vm116 = vcmask 1043458
  %v117 = vsel %vm116, %v115, %v112
  %s118 = scalar_lea.vmem %s0, 12
  %s119 = smov 48
  %v120 = vld [vmem:[%s118] ss:$16 sm:%s119]
  %vm121 = vcmask 1045508
  %v122 = vsel %vm121, %v120, %v117
  %s123 = scalar_lea.vmem %s0, 12
  %s124 = smov 192
  %v125 = vld [vmem:[%s123] ss:$16 sm:%s124]
  %vm126 = vcmask 1047558
  %v127 = vsel %vm126, %v125, %v122
  %128 = vrot.lane.b32.xlu0 %v127, 96
  %v129 = vpop.permute.xlu0 %128
  %vm130 = vcmask 851712
  %131 = vst.msk [vmem:[%s1] sm:$0xff] %vm130, %v129
  %s132 = scalar_lea.vmem %s0, 140
  %v133 = vld [vmem:[%s132] sm:$0x1]
  %134 = vrot.lane.b32.xlu0 %v133, 96
  %v135 = vpop.permute.xlu0 %134
  %vm136 = vcmask 851712
  %s137 = scalar_lea.vmem %s1, 8
  %138 = vst.msk [vmem:[%s137] sm:$0x1] %vm136, %v135
  %s139 = scalar_lea.vmem %s0, 11
  %s140 = smov 3
  %v141 = vld [vmem:[%s139] ss:$16 sm:%s140]
  %s142 = scalar_lea.vmem %s0, 11
  %s143 = smov 12
  %v144 = vld [vmem:[%s142] ss:$16 sm:%s143]
  %vm145 = vcmask 1043458
  %v146 = vsel %vm145, %v144, %v141
  %s147 = scalar_lea.vmem %s0, 11
  %s148 = smov 48
  %v149 = vld [vmem:[%s147] ss:$16 sm:%s148]
  %vm150 = vcmask 1045508
  %v151 = vsel %vm150, %v149, %v146
  %s152 = scalar_lea.vmem %s0, 11
  %s153 = smov 192
  %v154 = vld [vmem:[%s152] ss:$16 sm:%s153]
  %vm155 = vcmask 1047558
  %v156 = vsel %vm155, %v154, %v151
  %157 = vrot.lane.b32.xlu0 %v156, 88
  %v158 = vpop.permute.xlu0 %157
  %vm159 = vcmask 786112
  %160 = vst.msk [vmem:[%s1] sm:$0xff] %vm159, %v158
  %s161 = scalar_lea.vmem %s0, 139
  %v162 = vld [vmem:[%s161] sm:$0x1]
  %163 = vrot.lane.b32.xlu0 %v162, 88
  %v164 = vpop.permute.xlu0 %163
  %vm165 = vcmask 786112
  %s166 = scalar_lea.vmem %s1, 8
  %167 = vst.msk [vmem:[%s166] sm:$0x1] %vm165, %v164
  %s168 = scalar_lea.vmem %s0, 10
  %s169 = smov 3
  %v170 = vld [vmem:[%s168] ss:$16 sm:%s169]
  %s171 = scalar_lea.vmem %s0, 10
  %s172 = smov 12
  %v173 = vld [vmem:[%s171] ss:$16 sm:%s172]
  %vm174 = vcmask 1043458
  %v175 = vsel %vm174, %v173, %v170
  %s176 = scalar_lea.vmem %s0, 10
  %s177 = smov 48
  %v178 = vld [vmem:[%s176] ss:$16 sm:%s177]
  %vm179 = vcmask 1045508
  %v180 = vsel %vm179, %v178, %v175
  %s181 = scalar_lea.vmem %s0, 10
  %s182 = smov 192
  %v183 = vld [vmem:[%s181] ss:$16 sm:%s182]
  %vm184 = vcmask 1047558
  %v185 = vsel %vm184, %v183, %v180
  %186 = vrot.lane.b32.xlu0 %v185, 80
  %v187 = vpop.permute.xlu0 %186
  %vm188 = vcmask 720512
  %189 = vst.msk [vmem:[%s1] sm:$0xff] %vm188, %v187
  %s190 = scalar_lea.vmem %s0, 138
  %v191 = vld [vmem:[%s190] sm:$0x1]
  %192 = vrot.lane.b32.xlu0 %v191, 80
  %v193 = vpop.permute.xlu0 %192
  %vm194 = vcmask 720512
  %s195 = scalar_lea.vmem %s1, 8
  %196 = vst.msk [vmem:[%s195] sm:$0x1] %vm194, %v193
  %s197 = scalar_lea.vmem %s0, 9
  %s198 = smov 3
  %v199 = vld [vmem:[%s197] ss:$16 sm:%s198]
  %s200 = scalar_lea.vmem %s0, 9
  %s201 = smov 12
  %v202 = vld [vmem:[%s200] ss:$16 sm:%s201]
  %vm203 = vcmask 1043458
  %v204 = vsel %vm203, %v202, %v199
  %s205 = scalar_lea.vmem %s0, 9
  %s206 = smov 48
  %v207 = vld [vmem:[%s205] ss:$16 sm:%s206]
  %vm208 = vcmask 1045508
  %v209 = vsel %vm208, %v207, %v204
  %s210 = scalar_lea.vmem %s0, 9
  %s211 = smov 192
  %v212 = vld [vmem:[%s210] ss:$16 sm:%s211]
  %vm213 = vcmask 1047558
  %v214 = vsel %vm213, %v212, %v209
  %215 = vrot.lane.b32.xlu0 %v214, 72
  %v216 = vpop.permute.xlu0 %215
  %vm217 = vcmask 654912
  %218 = vst.msk [vmem:[%s1] sm:$0xff] %vm217, %v216
  %s219 = scalar_lea.vmem %s0, 137
  %v220 = vld [vmem:[%s219] sm:$0x1]
  %221 = vrot.lane.b32.xlu0 %v220, 72
  %v222 = vpop.permute.xlu0 %221
  %vm223 = vcmask 654912
  %s224 = scalar_lea.vmem %s1, 8
  %225 = vst.msk [vmem:[%s224] sm:$0x1] %vm223, %v222
  %s226 = scalar_lea.vmem %s0, 8
  %s227 = smov 3
  %v228 = vld [vmem:[%s226] ss:$16 sm:%s227]
  %s229 = scalar_lea.vmem %s0, 8
  %s230 = smov 12
  %v231 = vld [vmem:[%s229] ss:$16 sm:%s230]
  %vm232 = vcmask 1043458
  %v233 = vsel %vm232, %v231, %v228
  %s234 = scalar_lea.vmem %s0, 8
  %s235 = smov 48
  %v236 = vld [vmem:[%s234] ss:$16 sm:%s235]
  %vm237 = vcmask 1045508
  %v238 = vsel %vm237, %v236, %v233
  %s239 = scalar_lea.vmem %s0, 8
  %s240 = smov 192
  %v241 = vld [vmem:[%s239] ss:$16 sm:%s240]
  %vm242 = vcmask 1047558
  %v243 = vsel %vm242, %v241, %v238
  %244 = vrot.lane.b32.xlu0 %v243, 64
  %v245 = vpop.permute.xlu0 %244
  %vm246 = vcmask 589312
  %247 = vst.msk [vmem:[%s1] sm:$0xff] %vm246, %v245
  %s248 = scalar_lea.vmem %s0, 136
  %v249 = vld [vmem:[%s248] sm:$0x1]
  %250 = vrot.lane.b32.xlu0 %v249, 64
  %v251 = vpop.permute.xlu0 %250
  %vm252 = vcmask 589312
  %s253 = scalar_lea.vmem %s1, 8
  %254 = vst.msk [vmem:[%s253] sm:$0x1] %vm252, %v251
  %s255 = scalar_lea.vmem %s0, 7
  %s256 = smov 3
  %v257 = vld [vmem:[%s255] ss:$16 sm:%s256]
  %s258 = scalar_lea.vmem %s0, 7
  %s259 = smov 12
  %v260 = vld [vmem:[%s258] ss:$16 sm:%s259]
  %vm261 = vcmask 1043458
  %v262 = vsel %vm261, %v260, %v257
  %s263 = scalar_lea.vmem %s0, 7
  %s264 = smov 48
  %v265 = vld [vmem:[%s263] ss:$16 sm:%s264]
  %vm266 = vcmask 1045508
  %v267 = vsel %vm266, %v265, %v262
  %s268 = scalar_lea.vmem %s0, 7
  %s269 = smov 192
  %v270 = vld [vmem:[%s268] ss:$16 sm:%s269]
  %vm271 = vcmask 1047558
  %v272 = vsel %vm271, %v270, %v267
  %273 = vrot.lane.b32.xlu0 %v272, 56
  %v274 = vpop.permute.xlu0 %273
  %vm275 = vcmask 523712
  %276 = vst.msk [vmem:[%s1] sm:$0xff] %vm275, %v274
  %s277 = scalar_lea.vmem %s0, 135
  %v278 = vld [vmem:[%s277] sm:$0x1]
  %279 = vrot.lane.b32.xlu0 %v278, 56
  %v280 = vpop.permute.xlu0 %279
  %vm281 = vcmask 523712
  %s282 = scalar_lea.vmem %s1, 8
  %283 = vst.msk [vmem:[%s282] sm:$0x1] %vm281, %v280
  %s284 = scalar_lea.vmem %s0, 6
  %s285 = smov 3
  %v286 = vld [vmem:[%s284] ss:$16 sm:%s285]
  %s287 = scalar_lea.vmem %s0, 6
  %s288 = smov 12
  %v289 = vld [vmem:[%s287] ss:$16 sm:%s288]
  %vm290 = vcmask 1043458
  %v291 = vsel %vm290, %v289, %v286
  %s292 = scalar_lea.vmem %s0, 6
  %s293 = smov 48
  %v294 = vld [vmem:[%s292] ss:$16 sm:%s293]
  %vm295 = vcmask 1045508
  %v296 = vsel %vm295, %v294, %v291
  %s297 = scalar_lea.vmem %s0, 6
  %s298 = smov 192
  %v299 = vld [vmem:[%s297] ss:$16 sm:%s298]
  %vm300 = vcmask 1047558
  %v301 = vsel %vm300, %v299, %v296
  %302 = vrot.lane.b32.xlu0 %v301, 48
  %v303 = vpop.permute.xlu0 %302
  %vm304 = vcmask 458112
  %305 = vst.msk [vmem:[%s1] sm:$0xff] %vm304, %v303
  %s306 = scalar_lea.vmem %s0, 134
  %v307 = vld [vmem:[%s306] sm:$0x1]
  %308 = vrot.lane.b32.xlu0 %v307, 48
  %v309 = vpop.permute.xlu0 %308
  %vm310 = vcmask 458112
  %s311 = scalar_lea.vmem %s1, 8
  %312 = vst.msk [vmem:[%s311] sm:$0x1] %vm310, %v309
  %s313 = scalar_lea.vmem %s0, 5
  %s314 = smov 3
  %v315 = vld [vmem:[%s313] ss:$16 sm:%s314]
  %s316 = scalar_lea.vmem %s0, 5
  %s317 = smov 12
  %v318 = vld [vmem:[%s316] ss:$16 sm:%s317]
  %vm319 = vcmask 1043458
  %v320 = vsel %vm319, %v318, %v315
  %s321 = scalar_lea.vmem %s0, 5
  %s322 = smov 48
  %v323 = vld [vmem:[%s321] ss:$16 sm:%s322]
  %vm324 = vcmask 1045508
  %v325 = vsel %vm324, %v323, %v320
  %s326 = scalar_lea.vmem %s0, 5
  %s327 = smov 192
  %v328 = vld [vmem:[%s326] ss:$16 sm:%s327]
  %vm329 = vcmask 1047558
  %v330 = vsel %vm329, %v328, %v325
  %331 = vrot.lane.b32.xlu0 %v330, 40
  %v332 = vpop.permute.xlu0 %331
  %vm333 = vcmask 392512
  %334 = vst.msk [vmem:[%s1] sm:$0xff] %vm333, %v332
  %s335 = scalar_lea.vmem %s0, 133
  %v336 = vld [vmem:[%s335] sm:$0x1]
  %337 = vrot.lane.b32.xlu0 %v336, 40
  %v338 = vpop.permute.xlu0 %337
  %vm339 = vcmask 392512
  %s340 = scalar_lea.vmem %s1, 8
  %341 = vst.msk [vmem:[%s340] sm:$0x1] %vm339, %v338
  %s342 = scalar_lea.vmem %s0, 4
  %s343 = smov 3
  %v344 = vld [vmem:[%s342] ss:$16 sm:%s343]
  %s345 = scalar_lea.vmem %s0, 4
  %s346 = smov 12
  %v347 = vld [vmem:[%s345] ss:$16 sm:%s346]
  %vm348 = vcmask 1043458
  %v349 = vsel %vm348, %v347, %v344
  %s350 = scalar_lea.vmem %s0, 4
  %s351 = smov 48
  %v352 = vld [vmem:[%s350] ss:$16 sm:%s351]
  %vm353 = vcmask 1045508
  %v354 = vsel %vm353, %v352, %v349
  %s355 = scalar_lea.vmem %s0, 4
  %s356 = smov 192
  %v357 = vld [vmem:[%s355] ss:$16 sm:%s356]
  %vm358 = vcmask 1047558
  %v359 = vsel %vm358, %v357, %v354
  %360 = vrot.lane.b32.xlu0 %v359, 32
  %v361 = vpop.permute.xlu0 %360
  %vm362 = vcmask 326912
  %363 = vst.msk [vmem:[%s1] sm:$0xff] %vm362, %v361
  %s364 = scalar_lea.vmem %s0, 132
  %v365 = vld [vmem:[%s364] sm:$0x1]
  %366 = vrot.lane.b32.xlu0 %v365, 32
  %v367 = vpop.permute.xlu0 %366
  %vm368 = vcmask 326912
  %s369 = scalar_lea.vmem %s1, 8
  %370 = vst.msk [vmem:[%s369] sm:$0x1] %vm368, %v367
  %s371 = scalar_lea.vmem %s0, 3
  %s372 = smov 3
  %v373 = vld [vmem:[%s371] ss:$16 sm:%s372]
  %s374 = scalar_lea.vmem %s0, 3
  %s375 = smov 12
  %v376 = vld [vmem:[%s374] ss:$16 sm:%s375]
  %vm377 = vcmask 1043458
  %v378 = vsel %vm377, %v376, %v373
  %s379 = scalar_lea.vmem %s0, 3
  %s380 = smov 48
  %v381 = vld [vmem:[%s379] ss:$16 sm:%s380]
  %vm382 = vcmask 1045508
  %v383 = vsel %vm382, %v381, %v378
  %s384 = scalar_lea.vmem %s0, 3
  %s385 = smov 192
  %v386 = vld [vmem:[%s384] ss:$16 sm:%s385]
  %vm387 = vcmask 1047558
  %v388 = vsel %vm387, %v386, %v383
  %389 = vrot.lane.b32.xlu0 %v388, 24
  %v390 = vpop.permute.xlu0 %389
  %vm391 = vcmask 261312
  %392 = vst.msk [vmem:[%s1] sm:$0xff] %vm391, %v390
  %s393 = scalar_lea.vmem %s0, 131
  %v394 = vld [vmem:[%s393] sm:$0x1]
  %395 = vrot.lane.b32.xlu0 %v394, 24
  %v396 = vpop.permute.xlu0 %395
  %vm397 = vcmask 261312
  %s398 = scalar_lea.vmem %s1, 8
  %399 = vst.msk [vmem:[%s398] sm:$0x1] %vm397, %v396
  %s400 = scalar_lea.vmem %s0, 2
  %s401 = smov 3
  %v402 = vld [vmem:[%s400] ss:$16 sm:%s401]
  %s403 = scalar_lea.vmem %s0, 2
  %s404 = smov 12
  %v405 = vld [vmem:[%s403] ss:$16 sm:%s404]
  %vm406 = vcmask 1043458
  %v407 = vsel %vm406, %v405, %v402
  %s408 = scalar_lea.vmem %s0, 2
  %s409 = smov 48
  %v410 = vld [vmem:[%s408] ss:$16 sm:%s409]
  %vm411 = vcmask 1045508
  %v412 = vsel %vm411, %v410, %v407
  %s413 = scalar_lea.vmem %s0, 2
  %s414 = smov 192
  %v415 = vld [vmem:[%s413] ss:$16 sm:%s414]
  %vm416 = vcmask 1047558
  %v417 = vsel %vm416, %v415, %v412
  %418 = vrot.lane.b32.xlu0 %v417, 16
  %v419 = vpop.permute.xlu0 %418
  %vm420 = vcmask 195712
  %421 = vst.msk [vmem:[%s1] sm:$0xff] %vm420, %v419
  %s422 = scalar_lea.vmem %s0, 130
  %v423 = vld [vmem:[%s422] sm:$0x1]
  %424 = vrot.lane.b32.xlu0 %v423, 16
  %v425 = vpop.permute.xlu0 %424
  %vm426 = vcmask 195712
  %s427 = scalar_lea.vmem %s1, 8
  %428 = vst.msk [vmem:[%s427] sm:$0x1] %vm426, %v425
  %s429 = scalar_lea.vmem %s0, 1
  %s430 = smov 3
  %v431 = vld [vmem:[%s429] ss:$16 sm:%s430]
  %s432 = scalar_lea.vmem %s0, 1
  %s433 = smov 12
  %v434 = vld [vmem:[%s432] ss:$16 sm:%s433]
  %vm435 = vcmask 1043458
  %v436 = vsel %vm435, %v434, %v431
  %s437 = scalar_lea.vmem %s0, 1
  %s438 = smov 48
  %v439 = vld [vmem:[%s437] ss:$16 sm:%s438]
  %vm440 = vcmask 1045508
  %v441 = vsel %vm440, %v439, %v436
  %s442 = scalar_lea.vmem %s0, 1
  %s443 = smov 192
  %v444 = vld [vmem:[%s442] ss:$16 sm:%s443]
  %vm445 = vcmask 1047558
  %v446 = vsel %vm445, %v444, %v441
  %447 = vrot.lane.b32.xlu0 %v446, 8
  %v448 = vpop.permute.xlu0 %447
  %vm449 = vcmask 130112
  %450 = vst.msk [vmem:[%s1] sm:$0xff] %vm449, %v448
  %s451 = scalar_lea.vmem %s0, 129
  %v452 = vld [vmem:[%s451] sm:$0x1]
  %453 = vrot.lane.b32.xlu0 %v452, 8
  %v454 = vpop.permute.xlu0 %453
  %vm455 = vcmask 130112
  %s456 = scalar_lea.vmem %s1, 8
  %457 = vst.msk [vmem:[%s456] sm:$0x1] %vm455, %v454

// kernel: tile.18
$region0: #{tile.18}
  #allocation0 [shape = 's32[1]{0}', space=sflag, size = 0x4, scoped, tag = 'scoped memory for tile.18']
  %s0 = inlined_call_operand.vmem [shape: f32[8], index: 0, kind: input, shape index: {}]
  %s1 = inlined_call_operand.vmem [shape: f32[16,8], index: 1, kind: output, shape index: {}]
  // Predicated region
  $region2: #{tile.18} parent=0 // pred_check
    _
  $region3: #{tile.18} parent=0 // pred_check_branch
    %3 = sbr.rel (0) target = $region5
  $region4: #{tile.18} parent=0 // pred_region
    _
  $region5: #{tile.18} parent=0 // pred_fallthru
    _
  %v4 = vld [vmem:[%s0] ss:$0 sm:$0xff]
  %5 = vst [vmem:[%s1] sm:$0xff] %v4
  %s6 = scalar_lea.vmem %s1, 8
  %7 = vst [vmem:[%s6] sm:$0xff] %v4

// kernel: tile.19
$region0: #{tile.19}
  %s0 = inlined_call_operand.vmem [shape: f32[16,8], index: 0, kind: input, shape index: {}]
  %s1 = inlined_call_operand.vmem [shape: f32[1,128], index: 1, kind: output, shape index: {}]
  $region1: #{tile.19} parent=0
    #allocation0 [shape = 'u8[4096]{0}', space=vmem, size = 0x1000, scoped, tag = 'scoped mem for output reshape']
    %v2 = vld [vmem:[%s0] sm:$0x1]
    %vm3 = vcmask 64512
    %4 = vst.msk [vmem:[#allocation0] sm:$0x1] %vm3, %v2
    %s5 = scalar_lea.vmem %s0, 15
    %v6 = vld [vmem:[%s5] sm:$0x1]
    %7 = vrot.lane.b32.xlu0 %v6, 120
    %v8 = vpop.permute.xlu0 %7
    %vm9 = vcmask 1048512
    %10 = vst.msk [vmem:[#allocation0] sm:$0x1] %vm9, %v8
    %s11 = scalar_lea.vmem %s0, 14
    %v12 = vld [vmem:[%s11] sm:$0x1]
    %13 = vrot.lane.b32.xlu0 %v12, 112
    %v14 = vpop.permute.xlu0 %13
    %vm15 = vcmask 982912
    %16 = vst.msk [vmem:[#allocation0] sm:$0x1] %vm15, %v14
    %s17 = scalar_lea.vmem %s0, 13
    %v18 = vld [vmem:[%s17] sm:$0x1]
    %19 = vrot.lane.b32.xlu0 %v18, 104
    %v20 = vpop.permute.xlu0 %19
    %vm21 = vcmask 917312
    %22 = vst.msk [vmem:[#allocation0] sm:$0x1] %vm21, %v20
    %s23 = scalar_lea.vmem %s0, 12
    %v24 = vld [vmem:[%s23] sm:$0x1]
    %25 = vrot.lane.b32.xlu0 %v24, 96
    %v26 = vpop.permute.xlu0 %25
    %vm27 = vcmask 851712
    %28 = vst.msk [vmem:[#allocation0] sm:$0x1] %vm27, %v26
    %s29 = scalar_lea.vmem %s0, 11
    %v30 = vld [vmem:[%s29] sm:$0x1]
    %31 = vrot.lane.b32.xlu0 %v30, 88
    %v32 = vpop.permute.xlu0 %31
    %vm33 = vcmask 786112
    %34 = vst.msk [vmem:[#allocation0] sm:$0x1] %vm33, %v32
    %s35 = scalar_lea.vmem %s0, 10
    %v36 = vld [vmem:[%s35] sm:$0x1]
    %37 = vrot.lane.b32.xlu0 %v36, 80
    %v38 = vpop.permute.xlu0 %37
    %vm39 = vcmask 720512
    %40 = vst.msk [vmem:[#allocation0] sm:$0x1] %vm39, %v38
    %s41 = scalar_lea.vmem %s0, 9
    %v42 = vld [vmem:[%s41] sm:$0x1]
    %43 = vrot.lane.b32.xlu0 %v42, 72
    %v44 = vpop.permute.xlu0 %43
    %vm45 = vcmask 654912
    %46 = vst.msk [vmem:[#allocation0] sm:$0x1] %vm45, %v44
    %s47 = scalar_lea.vmem %s0, 8
    %v48 = vld [vmem:[%s47] sm:$0x1]
    %49 = vrot.lane.b32.xlu0 %v48, 64
    %v50 = vpop.permute.xlu0 %49
    %vm51 = vcmask 589312
    %52 = vst.msk [vmem:[#allocation0] sm:$0x1] %vm51, %v50
    %s53 = scalar_lea.vmem %s0, 7
    %v54 = vld [vmem:[%s53] sm:$0x1]
    %55 = vrot.lane.b32.xlu0 %v54, 56
    %v56 = vpop.permute.xlu0 %55
    %vm57 = vcmask 523712
    %58 = vst.msk [vmem:[#allocation0] sm:$0x1] %vm57, %v56
    %s59 = scalar_lea.vmem %s0, 6
    %v60 = vld [vmem:[%s59] sm:$0x1]
    %61 = vrot.lane.b32.xlu0 %v60, 48
    %v62 = vpop.permute.xlu0 %61
    %vm63 = vcmask 458112
    %64 = vst.msk [vmem:[#allocation0] sm:$0x1] %vm63, %v62
    %s65 = scalar_lea.vmem %s0, 5
    %v66 = vld [vmem:[%s65] sm:$0x1]
    %67 = vrot.lane.b32.xlu0 %v66, 40
    %v68 = vpop.permute.xlu0 %67
    %vm69 = vcmask 392512
    %70 = vst.msk [vmem:[#allocation0] sm:$0x1] %vm69, %v68
    %s71 = scalar_lea.vmem %s0, 4
    %v72 = vld [vmem:[%s71] sm:$0x1]
    %73 = vrot.lane.b32.xlu0 %v72, 32
    %v74 = vpop.permute.xlu0 %73
    %vm75 = vcmask 326912
    %76 = vst.msk [vmem:[#allocation0] sm:$0x1] %vm75, %v74
    %s77 = scalar_lea.vmem %s0, 3
    %v78 = vld [vmem:[%s77] sm:$0x1]
    %79 = vrot.lane.b32.xlu0 %v78, 24
    %v80 = vpop.permute.xlu0 %79
    %vm81 = vcmask 261312
    %82 = vst.msk [vmem:[#allocation0] sm:$0x1] %vm81, %v80
    %s83 = scalar_lea.vmem %s0, 2
    %v84 = vld [vmem:[%s83] sm:$0x1]
    %85 = vrot.lane.b32.xlu0 %v84, 16
    %v86 = vpop.permute.xlu0 %85
    %vm87 = vcmask 195712
    %88 = vst.msk [vmem:[#allocation0] sm:$0x1] %vm87, %v86
    %s89 = scalar_lea.vmem %s0, 1
    %v90 = vld [vmem:[%s89] sm:$0x1]
    %91 = vrot.lane.b32.xlu0 %v90, 8
    %v92 = vpop.permute.xlu0 %91
    %vm93 = vcmask 130112
    %94 = vst.msk [vmem:[#allocation0] sm:$0x1] %vm93, %v92
    %s96 = sshllo.u32 0, 1
    %v98 = vld [vmem:[#allocation0] sm:%s96]
    %s99 = sshllo.u32 0, 1
    %100 = vst [vmem:[%s1] sm:%s99] %v98

// kernel: sa_global_swin.4
$region0: #{sa_global_swin.4}
  #allocation0 [shape = 'u32[]', space=smem, size = 0x4, offset = 0x4, fixed_abs, tag = 'smem constant byte address 0x4 - core index']
  #allocation1 [shape = 'u32[144,128]{1,0:T(1,128)}', space=vmem, size = 0x12000, scoped, tag = 'internal scratch']
  %s0 = inlined_call_operand.vmem [shape: f32[4,18,144], index: 0, kind: input, shape index: {}]
  %s1 = inlined_call_operand.vmem [shape: f32[9,128], index: 1, kind: input, shape index: {}]
  %s2 = inlined_call_operand.vmem [shape: f32[1,128], index: 2, kind: input, shape index: {}]
  %s3 = inlined_call_operand.vmem [shape: f32[4,16,128], index: 3, kind: output, shape index: {}]
  %s4 = sld [smem:[#allocation0]]
  $region45: #{sa_global_swin.4} parent=0
    _
  %s6 = ssub.s32 1, %s4
  %s7 = scalar_select 0, %s6, %s4
  loop: start=0, step=1, limit=6
  $region2: #{sa_global_swin.4} parent=0 // loop_pre_header
    _
  $region3: #{sa_global_swin.4} parent=0 // loop_header
    %s9 = sphi 0, %s13
    %p10 = scmp.ge.s32.totalorder %s9, 6
    %s19 = sphi 0, %s21
    %s22 = sphi 0, %s19
    %s23 = sphi 0, %s22
    %s39 = sphi 0, %s23
    %s43 = sphi 0, %s43
    %s45 = sphi 0, %s43
    %s46 = sphi 0, %s45
    %s60 = sphi 0, %s46
    %s64 = sphi 0, %s64
    %s66 = sphi 0, %s64
    %s67 = sphi 0, %s66
    %s81 = sphi 0, %s67
    %s87 = sphi 0, %s89
    %s90 = sphi 0, %s87
    %s91 = sphi 0, %s90
    %s107 = sphi 0, %s91
  $region4: #{sa_global_swin.4} parent=0 // loop_header_branch
    %12 = sbr.rel (%p10) target = $region8
  $region5: #{sa_global_swin.4} parent=0 // loop_body
    %s14 = ssub.s32 %s9, 1
    %s15 = ssub.s32 %s9, 2
    %s16 = sadd.s32 %s9, 1
    %s17 = ssub.s32 %s9, %s16
    %p18 = scmp.eq.s32.totalorder %s17, 0
    %s20 = sadd.s32 %s19, 1
    %s21 = scalar_select %p18, %s19, %s20
    %p24 = pneg %p18
    %p25 = scmp.eq.s32.totalorder %s9, 3
    %p26 = por %p24, %p25
    %p27 = scmp.ne.s32.totalorder %s19, %s22
    %p28 = scmp.eq.s32.totalorder %s9, 0
    %p29 = por %p27, %p28
    %p30 = scmp.ne.s32.totalorder %s19, %s22
    %p31 = scmp.eq.s32.totalorder %s14, 3
    %p32 = por %p30, %p31
    %p33 = scmp.ne.s32.totalorder %s22, %s23
    %p34 = scmp.eq.s32.totalorder %s14, 0
    %p35 = por %p33, %p34
    %p36 = scmp.ne.s32.totalorder %s22, %s23
    %p37 = scmp.eq.s32.totalorder %s15, 3
    %p38 = por %p36, %p37
    %p40 = scmp.ne.s32.totalorder %s23, %s39
    %p41 = scmp.eq.s32.totalorder %s15, 0
    %p42 = por %p40, %p41
    %s44 = sadd.s32 %s43, 1
    %p47 = scmp.eq.s32.totalorder %s9, 3
    %p48 = scmp.ne.s32.totalorder %s43, %s45
    %p49 = scmp.eq.s32.totalorder %s9, 0
    %p50 = por %p48, %p49
    %p51 = scmp.ne.s32.totalorder %s43, %s45
    %p52 = scmp.eq.s32.totalorder %s14, 3
    %p53 = por %p51, %p52
    %p54 = scmp.ne.s32.totalorder %s45, %s46
    %p55 = scmp.eq.s32.totalorder %s14, 0
    %p56 = por %p54, %p55
    %p57 = scmp.ne.s32.totalorder %s45, %s46
    %p58 = scmp.eq.s32.totalorder %s15, 3
    %p59 = por %p57, %p58
    %p61 = scmp.ne.s32.totalorder %s46, %s60
    %p62 = scmp.eq.s32.totalorder %s15, 0
    %p63 = por %p61, %p62
    %s65 = sadd.s32 %s64, 1
    %p68 = scmp.eq.s32.totalorder %s9, 3
    %p69 = scmp.ne.s32.totalorder %s64, %s66
    %p70 = scmp.eq.s32.totalorder %s9, 0
    %p71 = por %p69, %p70
    %p72 = scmp.ne.s32.totalorder %s64, %s66
    %p73 = scmp.eq.s32.totalorder %s14, 3
    %p74 = por %p72, %p73
    %p75 = scmp.ne.s32.totalorder %s66, %s67
    %p76 = scmp.eq.s32.totalorder %s14, 0
    %p77 = por %p75, %p76
    %p78 = scmp.ne.s32.totalorder %s66, %s67
    %p79 = scmp.eq.s32.totalorder %s15, 3
    %p80 = por %p78, %p79
    %p82 = scmp.ne.s32.totalorder %s67, %s81
    %p83 = scmp.eq.s32.totalorder %s15, 0
    %p84 = por %p82, %p83
    %s85 = ssub.s32 %s9, %s16
    %p86 = scmp.eq.s32.totalorder %s85, 0
    %s88 = sadd.s32 %s87, 1
    %s89 = scalar_select %p86, %s87, %s88
    %p92 = pneg %p86
    %p93 = scmp.eq.s32.totalorder %s9, 3
    %p94 = por %p92, %p93
    %p95 = scmp.ne.s32.totalorder %s87, %s90
    %p96 = scmp.eq.s32.totalorder %s9, 0
    %p97 = por %p95, %p96
    %p98 = scmp.ne.s32.totalorder %s87, %s90
    %p99 = scmp.eq.s32.totalorder %s14, 3
    %p100 = por %p98, %p99
    %p101 = scmp.ne.s32.totalorder %s90, %s91
    %p102 = scmp.eq.s32.totalorder %s14, 0
    %p103 = por %p101, %p102
    %p104 = scmp.ne.s32.totalorder %s90, %s91
    %p105 = scmp.eq.s32.totalorder %s15, 3
    %p106 = por %p104, %p105
    %p108 = scmp.ne.s32.totalorder %s91, %s107
    %p109 = scmp.eq.s32.totalorder %s15, 0
    %p110 = por %p108, %p109
    %p111 = scmp.le.s32.totalorder 1, %s9
    %p112 = scmp.lt.s32.totalorder %s9, 5
    %p113 = pnand %p111, %p112
    %p114 = pneg %p113
    // Predicated region
    $region9: #{sa_global_swin.4} parent=5 // pred_check
      _
    $region10: #{sa_global_swin.4} parent=5 // pred_check_branch
      %116 = sbr.rel (%p113) target = $region12
    $region11: #{sa_global_swin.4} parent=5 // pred_region
      %s117 = ssub.s32 %s9, 1
      // Predicated region
      $region13: #{sa_global_swin.4} parent=11 // pred_check
        %p118 = pneg %p56
      $region14: #{sa_global_swin.4} parent=11 // pred_check_branch
        %120 = sbr.rel (%p118) target = $region16
      $region15: #{sa_global_swin.4} parent=11 // pred_region
        _
      $region16: #{sa_global_swin.4} parent=11 // pred_fallthru
        _
      // Predicated region
      $region17: #{sa_global_swin.4} parent=11 // pred_check
        %p121 = pneg %p77
      $region18: #{sa_global_swin.4} parent=11 // pred_check_branch
        %123 = sbr.rel (%p121) target = $region20
      $region19: #{sa_global_swin.4} parent=11 // pred_region
        _
      $region20: #{sa_global_swin.4} parent=11 // pred_fallthru
        _
    $region12: #{sa_global_swin.4} parent=5 // pred_fallthru
      _
    %p124 = scmp.lt.s32.totalorder %s9, 4
    // Predicated region
    $region21: #{sa_global_swin.4} parent=5 // pred_check
      %p125 = pneg %p124
    $region22: #{sa_global_swin.4} parent=5 // pred_check_branch
      %127 = sbr.rel (%p125) target = $region24
    $region23: #{sa_global_swin.4} parent=5 // pred_region
      // Predicated region
      $region25: #{sa_global_swin.4} parent=23 // pred_check
        %p128 = pneg %p29
      $region26: #{sa_global_swin.4} parent=23 // pred_check_branch
        %130 = sbr.rel (%p128) target = $region28
      $region27: #{sa_global_swin.4} parent=23 // pred_region
        %p131 = scmp.lt.s32.totalorder %s9, 3
        %s132 = scalar_select %p131, %s9, 3
        %s133 = smul.addr %s132, 6
        %s134 = smul.addr %s133, 8
        %s135 = scalar_lea.vmem %s0, %s134
      $region28: #{sa_global_swin.4} parent=23 // pred_fallthru
        _
    $region24: #{sa_global_swin.4} parent=5 // pred_fallthru
      _
    %p136 = scmp.le.s32.totalorder 1, %s9
    %p137 = scmp.lt.s32.totalorder %s9, 5
    %p138 = pnand %p136, %p137
    %p139 = pneg %p138
    // Predicated region
    $region29: #{sa_global_swin.4} parent=5 // pred_check
      _
    $region30: #{sa_global_swin.4} parent=5 // pred_check_branch
      %141 = sbr.rel (%p138) target = $region32
    $region31: #{sa_global_swin.4} parent=5 // pred_region
      %s142 = ssub.s32 %s9, 1
      %p143 = scmp.lt.s32.totalorder %s14, 3
      %s144 = scalar_select %p143, %s14, 3
      %s145 = smul.addr %s144, 6
      %s146 = smul.addr %s145, 8
      %s147 = scalar_lea.vmem %s0, %s146
      %p148 = pneg %p35
      %p149 = pneg %p32
      %p150 = pneg %p56
      %p151 = pneg %p53
      %p152 = pneg %p77
      %p153 = pneg %p74
      %p154 = pneg %p103
      %p155 = pneg %p100
      %p156 = scmp.lt.s32.totalorder %s14, 3
      %s157 = scalar_select %p156, %s14, 3
      %s158 = smul.addr %s157, 2
      %s159 = smul.addr %s158, 8
      %s160 = scalar_lea.vmem %s3, %s159
      %p161 = scmp.lt.s32.totalorder %s14, 3
      %s162 = scalar_select %p161, %s14, 3
      %s163 = smul.addr %s162, 6
      %s164 = smul.addr %s163, 8
      %s165 = scalar_lea.vmem %s0, %s164
      %p166 = scmp.lt.s32.totalorder %s14, 3
      %s167 = scalar_select %p166, %s14, 3
      %s168 = smul.addr %s167, 2
      %s169 = smul.addr %s168, 8
      %s170 = scalar_lea.vmem %s3, %s169
      %v171 = vld [vmem:[%s165] sm:$0xff]
      %v172 = vld [vmem:[%s165 + $0x8] sm:$0xff]
      %v173 = vld [vmem:[%s165 + $0x10] sm:$0xff]
      %v174 = vld [vmem:[%s165 + $0x18] sm:$0xff]
      %v175 = vld [vmem:[%s165 + $0x20] sm:$0x3]
      %v176 = vld [vmem:[%s165 + $0x28] sm:$0x3]
      %v177 = vld [vmem:[%s1] sm:$0xff]
      %v178 = vld [vmem:[%s1 + $0x8] sm:$0x1]
      %v179 = vlaneseq
      %v180 = vshrl.u32 %v179, 7
      %v181 = vsub.s32 0, %v180
      %v182 = vrot.slane %v177, %v181
      %v183 = vmul.f32 %v171, %v182
      %v184 = vmul.f32 %v173, %v182
      %v185 = vadd.f32 %v183, 0.0
      %v186 = vadd.f32 %v184, 0.0
      %v187 = vlaneseq
      %v188 = vshrl.u32 %v187, 7
      %v189 = vsub.s32 1, %v188
      %v190 = vrot.slane %v177, %v189
      %192 = vrot.lane.b32.xlu0 %v190, 8
      %v193 = vpop.permute.xlu0 %192
      %v195 = vmul.f32 %v171, %v193
      %v196 = vmul.f32 %v172, %v193
      %v197 = vmul.f32 %v173, %v193
      %v198 = vmul.f32 %v174, %v193
      %203 = vrot.lane.b32.xlu0 %v195, 120
      %v204 = vpop.permute.xlu0 %203
      %205 = vrot.lane.b32.xlu0 %v196, 120
      %v206 = vpop.permute.xlu0 %205
      %207 = vrot.lane.b32.xlu0 %v197, 120
      %v208 = vpop.permute.xlu0 %207
      %209 = vrot.lane.b32.xlu0 %v198, 120
      %v210 = vpop.permute.xlu0 %209
      %vm211 = vcmask 982016
      %v212 = vsel %vm211, %v204, %v206
      %v213 = vsel %vm211, %v208, %v210
      %v216 = vadd.f32 %v185, %v212
      %v217 = vadd.f32 %v186, %v213
      %v218 = vlaneseq
      %v219 = vshrl.u32 %v218, 7
      %v220 = vsub.s32 2, %v219
      %v221 = vrot.slane %v177, %v220
      %223 = vrot.lane.b32.xlu0 %v221, 16
      %v224 = vpop.permute.xlu0 %223
      %v226 = vmul.f32 %v171, %v224
      %v227 = vmul.f32 %v172, %v224
      %v228 = vmul.f32 %v173, %v224
      %v229 = vmul.f32 %v174, %v224
      %234 = vrot.lane.b32.xlu0 %v226, 112
      %v235 = vpop.permute.xlu0 %234
      %236 = vrot.lane.b32.xlu0 %v227, 112
      %v237 = vpop.permute.xlu0 %236
      %238 = vrot.lane.b32.xlu0 %v228, 112
      %v239 = vpop.permute.xlu0 %238
      %240 = vrot.lane.b32.xlu0 %v229, 112
      %v241 = vpop.permute.xlu0 %240
      %vm242 = vcmask 916480
      %v243 = vsel %vm242, %v235, %v237
      %v244 = vsel %vm242, %v239, %v241
      %v247 = vadd.f32 %v216, %v243
      %v248 = vadd.f32 %v217, %v244
      %v249 = vlaneseq
      %v250 = vshrl.u32 %v249, 7
      %v251 = vsub.s32 3, %v250
      %v252 = vrot.slane %v177, %v251
      %v253 = vmul.f32 %v171, %v252
      %v254 = vmul.f32 %v173, %v252
      %v255 = vmul.f32 %v175, %v252
      %vm259 = vcmask 1046528
      %v260 = vrot.slane %v253, 1
      %v261 = vrot.slane %v254, 1
      %v262 = vsel %vm259, %v260, %v261
      %v263 = vrot.slane %v255, 1
      %v264 = vsel %vm259, %v261, %v263
      %v267 = vadd.f32 %v247, %v262
      %v268 = vadd.f32 %v248, %v264
      %v269 = vlaneseq
      %v270 = vshrl.u32 %v269, 7
      %v271 = vsub.s32 4, %v270
      %v272 = vrot.slane %v177, %v271
      %274 = vrot.lane.b32.xlu0 %v272, 8
      %v275 = vpop.permute.xlu0 %274
      %v277 = vmul.f32 %v171, %v275
      %v278 = vmul.f32 %v172, %v275
      %v279 = vmul.f32 %v173, %v275
      %v280 = vmul.f32 %v174, %v275
      %v281 = vmul.f32 %v175, %v275
      %v282 = vmul.f32 %v176, %v275
      %v289 = vrot.slane %v277, 1
      %v290 = vrot.slane %v279, 1
      %v291 = vsel %vm259, %v289, %v290
      %v292 = vrot.slane %v278, 1
      %v293 = vrot.slane %v280, 1
      %v294 = vsel %vm259, %v292, %v293
      %v295 = vrot.slane %v281, 1
      %v296 = vsel %vm259, %v290, %v295
      %v297 = vrot.slane %v282, 1
      %v298 = vsel %vm259, %v293, %v297
      %299 = vrot.lane.b32.xlu0 %v291, 120
      %v300 = vpop.permute.xlu0 %299
      %301 = vrot.lane.b32.xlu0 %v294, 120
      %v302 = vpop.permute.xlu0 %301
      %303 = vrot.lane.b32.xlu0 %v296, 120
      %v304 = vpop.permute.xlu0 %303
      %305 = vrot.lane.b32.xlu0 %v298, 120
      %v306 = vpop.permute.xlu0 %305
      %v307 = vsel %vm211, %v300, %v302
      %v308 = vsel %vm211, %v304, %v306
      %v311 = vadd.f32 %v267, %v307
      %v312 = vadd.f32 %v268, %v308
      %v313 = vlaneseq
      %v314 = vshrl.u32 %v313, 7
      %v315 = vsub.s32 5, %v314
      %v316 = vrot.slane %v177, %v315
      %318 = vrot.lane.b32.xlu0 %v316, 16
      %v319 = vpop.permute.xlu0 %318
      %v321 = vmul.f32 %v171, %v319
      %v322 = vmul.f32 %v172, %v319
      %v323 = vmul.f32 %v173, %v319
      %v324 = vmul.f32 %v174, %v319
      %v325 = vmul.f32 %v175, %v319
      %v326 = vmul.f32 %v176, %v319
      %v333 = vrot.slane %v321, 1
      %v334 = vrot.slane %v323, 1
      %v335 = vsel %vm259, %v333, %v334
      %v336 = vrot.slane %v322, 1
      %v337 = vrot.slane %v324, 1
      %v338 = vsel %vm259, %v336, %v337
      %v339 = vrot.slane %v325, 1
      %v340 = vsel %vm259, %v334, %v339
      %v341 = vrot.slane %v326, 1
      %v342 = vsel %vm259, %v337, %v341
      %343 = vrot.lane.b32.xlu0 %v335, 112
      %v344 = vpop.permute.xlu0 %343
      %345 = vrot.lane.b32.xlu0 %v338, 112
      %v346 = vpop.permute.xlu0 %345
      %347 = vrot.lane.b32.xlu0 %v340, 112
      %v348 = vpop.permute.xlu0 %347
      %349 = vrot.lane.b32.xlu0 %v342, 112
      %v350 = vpop.permute.xlu0 %349
      %v351 = vsel %vm242, %v344, %v346
      %v352 = vsel %vm242, %v348, %v350
      %v355 = vadd.f32 %v311, %v351
      %v356 = vadd.f32 %v312, %v352
      %v357 = vlaneseq
      %v358 = vshrl.u32 %v357, 7
      %v359 = vsub.s32 6, %v358
      %v360 = vrot.slane %v177, %v359
      %v361 = vmul.f32 %v171, %v360
      %v362 = vmul.f32 %v173, %v360
      %v363 = vmul.f32 %v175, %v360
      %vm367 = vcmask 1045504
      %v368 = vrot.slane %v361, 2
      %v369 = vrot.slane %v362, 2
      %v370 = vsel %vm367, %v368, %v369
      %v371 = vrot.slane %v363, 2
      %v372 = vsel %vm367, %v369, %v371
      %v375 = vadd.f32 %v355, %v370
      %v376 = vadd.f32 %v356, %v372
      %v377 = vlaneseq
      %v378 = vshrl.u32 %v377, 7
      %v379 = vsub.s32 7, %v378
      %v380 = vrot.slane %v177, %v379
      %382 = vrot.lane.b32.xlu0 %v380, 8
      %v383 = vpop.permute.xlu0 %382
      %v385 = vmul.f32 %v171, %v383
      %v386 = vmul.f32 %v172, %v383
      %v387 = vmul.f32 %v173, %v383
      %v388 = vmul.f32 %v174, %v383
      %v389 = vmul.f32 %v175, %v383
      %v390 = vmul.f32 %v176, %v383
      %v397 = vrot.slane %v385, 2
      %v398 = vrot.slane %v387, 2
      %v399 = vsel %vm367, %v397, %v398
      %v400 = vrot.slane %v386, 2
      %v401 = vrot.slane %v388, 2
      %v402 = vsel %vm367, %v400, %v401
      %v403 = vrot.slane %v389, 2
      %v404 = vsel %vm367, %v398, %v403
      %v405 = vrot.slane %v390, 2
      %v406 = vsel %vm367, %v401, %v405
      %407 = vrot.lane.b32.xlu0 %v399, 120
      %v408 = vpop.permute.xlu0 %407
      %409 = vrot.lane.b32.xlu0 %v402, 120
      %v410 = vpop.permute.xlu0 %409
      %411 = vrot.lane.b32.xlu0 %v404, 120
      %v412 = vpop.permute.xlu0 %411
      %413 = vrot.lane.b32.xlu0 %v406, 120
      %v414 = vpop.permute.xlu0 %413
      %v415 = vsel %vm211, %v408, %v410
      %v416 = vsel %vm211, %v412, %v414
      %v419 = vadd.f32 %v375, %v415
      %v420 = vadd.f32 %v376, %v416
      %v421 = vlaneseq
      %v422 = vshrl.u32 %v421, 7
      %v423 = vsub.s32 0, %v422
      %v424 = vrot.slane %v178, %v423
      %426 = vrot.lane.b32.xlu0 %v424, 16
      %v427 = vpop.permute.xlu0 %426
      %v429 = vmul.f32 %v171, %v427
      %v430 = vmul.f32 %v172, %v427
      %v431 = vmul.f32 %v173, %v427
      %v432 = vmul.f32 %v174, %v427
      %v433 = vmul.f32 %v175, %v427
      %v434 = vmul.f32 %v176, %v427
      %v441 = vrot.slane %v429, 2
      %v442 = vrot.slane %v431, 2
      %v443 = vsel %vm367, %v441, %v442
      %v444 = vrot.slane %v430, 2
      %v445 = vrot.slane %v432, 2
      %v446 = vsel %vm367, %v444, %v445
      %v447 = vrot.slane %v433, 2
      %v448 = vsel %vm367, %v442, %v447
      %v449 = vrot.slane %v434, 2
      %v450 = vsel %vm367, %v445, %v449
      %451 = vrot.lane.b32.xlu0 %v443, 112
      %v452 = vpop.permute.xlu0 %451
      %453 = vrot.lane.b32.xlu0 %v446, 112
      %v454 = vpop.permute.xlu0 %453
      %455 = vrot.lane.b32.xlu0 %v448, 112
      %v456 = vpop.permute.xlu0 %455
      %457 = vrot.lane.b32.xlu0 %v450, 112
      %v458 = vpop.permute.xlu0 %457
      %v459 = vsel %vm242, %v452, %v454
      %v460 = vsel %vm242, %v456, %v458
      %v463 = vadd.f32 %v419, %v459
      %v464 = vadd.f32 %v420, %v460
      %v465 = vld [vmem:[%s2] sm:$0x1]
      %v467 = vlaneseq
      %v468 = vshrl.u32 %v467, 7
      %v469 = vsub.s32 0, %v468
      %v470 = vrot.slane %v465, %v469
      %v472 = vadd.f32 %v463, %v470
      %v473 = vadd.f32 %v464, %v470
      %474 = vst [vmem:[%s170] sm:$0xff] %v472
      %475 = vst [vmem:[%s170 + $0x8] sm:$0xff] %v473
      %p476 = scmp.lt.s32.totalorder %s14, 3
      %s477 = scalar_select %p476, %s14, 3
      %s478 = smul.addr %s477, 2
      %s479 = smul.addr %s478, 8
      %s480 = scalar_lea.vmem %s3, %s479
      // Predicated region
      $region33: #{sa_global_swin.4} parent=31 // pred_check
        %p481 = pneg %p100
      $region34: #{sa_global_swin.4} parent=31 // pred_check_branch
        %483 = sbr.rel (%p481) target = $region36
      $region35: #{sa_global_swin.4} parent=31 // pred_region
        _
      $region36: #{sa_global_swin.4} parent=31 // pred_fallthru
        _
    $region32: #{sa_global_swin.4} parent=5 // pred_fallthru
      _
    %p484 = scmp.le.s32.totalorder 2, %s9
    // Predicated region
    $region37: #{sa_global_swin.4} parent=5 // pred_check
      %p485 = pneg %p484
    $region38: #{sa_global_swin.4} parent=5 // pred_check_branch
      %487 = sbr.rel (%p485) target = $region40
    $region39: #{sa_global_swin.4} parent=5 // pred_region
      %s488 = ssub.s32 %s9, 2
      // Predicated region
      $region41: #{sa_global_swin.4} parent=39 // pred_check
        %p489 = pneg %p106
      $region42: #{sa_global_swin.4} parent=39 // pred_check_branch
        %491 = sbr.rel (%p489) target = $region44
      $region43: #{sa_global_swin.4} parent=39 // pred_region
        %p492 = scmp.lt.s32.totalorder %s15, 3
        %s493 = scalar_select %p492, %s15, 3
        %s494 = smul.addr %s493, 2
        %s495 = smul.addr %s494, 8
        %s496 = scalar_lea.vmem %s3, %s495
      $region44: #{sa_global_swin.4} parent=39 // pred_fallthru
        _
    $region40: #{sa_global_swin.4} parent=5 // pred_fallthru
      _
  $region6: #{sa_global_swin.4} parent=0 // loop_footer
    %s13 = sadd.s32 1, %s9
  $region7: #{sa_global_swin.4} parent=0 // loop_footer_branch
    %8 = sbr.rel target = $region3
  $region8: #{sa_global_swin.4} parent=0 // loop_exit
    _

// kernel: sa_global_swin.5
$region0: #{sa_global_swin.5}
  #allocation0 [shape = 'u32[]', space=smem, size = 0x4, offset = 0x4, fixed_abs, tag = 'smem constant byte address 0x4 - core index']
  #allocation1 [shape = 'u32[144,128]{1,0:T(1,128)}', space=vmem, size = 0x12000, scoped, tag = 'internal scratch']
  %s0 = inlined_call_operand.vmem [shape: f32[4,8,256], index: 0, kind: input, shape index: {}]
  %s1 = inlined_call_operand.vmem [shape: f32[4,8,256], index: 1, kind: input, shape index: {}]
  %s2 = inlined_call_operand.vmem [shape: f32[4,8,256], index: 2, kind: input, shape index: {}]
  %s3 = inlined_call_operand.vmem [shape: f32[4,8,256], index: 3, kind: input, shape index: {}]
  %s4 = inlined_call_operand.vmem [shape: f32[4,4,4,1], index: 4, kind: input, shape index: {}]
  %s5 = inlined_call_operand.vmem [shape: f32[4,8,256], index: 5, kind: output, shape index: {}]
  %s6 = sld [smem:[#allocation0]]
  $region239: #{sa_global_swin.5} parent=0
    _
  %s8 = ssub.s32 1, %s6
  %s9 = scalar_select 0, %s8, %s6
  $region1: #{sa_global_swin.5} parent=0
    #allocation2 [shape = 'u8[32768]{0}', space=vmem, size = 0x8000, scoped, tag = 'input window, operand 0']
    #allocation3 [shape = 'u8[32768]{0}', space=vmem, size = 0x8000, scoped, tag = 'input window, operand 1']
    #allocation4 [shape = 'u8[32768]{0}', space=vmem, size = 0x8000, scoped, tag = 'input window, operand 2']
    #allocation5 [shape = 'u8[32768]{0}', space=vmem, size = 0x8000, scoped, tag = 'input window, operand 3']
    #allocation6 [shape = 'u8[32768]{0}', space=vmem, size = 0x8000, scoped, tag = 'output window, operand 0']
    loop: start=0, step=1, limit=4
    $region2: #{sa_global_swin.5} parent=1 // loop_pre_header
      _
    $region3: #{sa_global_swin.5} parent=1 // loop_header
      %s11 = sphi 0, %s15
      %p12 = scmp.ge.s32.totalorder %s11, 4
      %s21 = sphi 0, %s23
      %s24 = sphi 0, %s21
      %s25 = sphi 0, %s24
      %s41 = sphi 0, %s25
      %s47 = sphi 0, %s49
      %s50 = sphi 0, %s47
      %s51 = sphi 0, %s50
      %s67 = sphi 0, %s51
      %s73 = sphi 0, %s75
      %s76 = sphi 0, %s73
      %s77 = sphi 0, %s76
      %s93 = sphi 0, %s77
      %s99 = sphi 0, %s101
      %s102 = sphi 0, %s99
      %s103 = sphi 0, %s102
      %s119 = sphi 0, %s103
      %s123 = sphi 0, %s123
      %s125 = sphi 0, %s123
      %s126 = sphi 0, %s125
      %s140 = sphi 0, %s126
      %s146 = sphi 0, %s148
      %s149 = sphi 0, %s146
      %s150 = sphi 0, %s149
      %s166 = sphi 0, %s150
    $region4: #{sa_global_swin.5} parent=1 // loop_header_branch
      %14 = sbr.rel (%p12) target = $region8
    $region5: #{sa_global_swin.5} parent=1 // loop_body
      %s16 = ssub.s32 %s11, 1
      %s17 = ssub.s32 %s11, 2
      %s18 = sadd.s32 %s11, 1
      %s19 = ssub.s32 %s11, %s18
      %p20 = scmp.eq.s32.totalorder %s19, 0
      %s22 = sadd.s32 %s21, 1
      %s23 = scalar_select %p20, %s21, %s22
      %p26 = pneg %p20
      %p27 = scmp.eq.s32.totalorder %s11, 1
      %p28 = por %p26, %p27
      %p29 = scmp.ne.s32.totalorder %s21, %s24
      %p30 = scmp.eq.s32.totalorder %s11, 0
      %p31 = por %p29, %p30
      %p32 = scmp.ne.s32.totalorder %s21, %s24
      %p33 = scmp.eq.s32.totalorder %s16, 1
      %p34 = por %p32, %p33
      %p35 = scmp.ne.s32.totalorder %s24, %s25
      %p36 = scmp.eq.s32.totalorder %s16, 0
      %p37 = por %p35, %p36
      %p38 = scmp.ne.s32.totalorder %s24, %s25
      %p39 = scmp.eq.s32.totalorder %s17, 1
      %p40 = por %p38, %p39
      %p42 = scmp.ne.s32.totalorder %s25, %s41
      %p43 = scmp.eq.s32.totalorder %s17, 0
      %p44 = por %p42, %p43
      %s45 = ssub.s32 %s11, %s18
      %p46 = scmp.eq.s32.totalorder %s45, 0
      %s48 = sadd.s32 %s47, 1
      %s49 = scalar_select %p46, %s47, %s48
      %p52 = pneg %p46
      %p53 = scmp.eq.s32.totalorder %s11, 1
      %p54 = por %p52, %p53
      %p55 = scmp.ne.s32.totalorder %s47, %s50
      %p56 = scmp.eq.s32.totalorder %s11, 0
      %p57 = por %p55, %p56
      %p58 = scmp.ne.s32.totalorder %s47, %s50
      %p59 = scmp.eq.s32.totalorder %s16, 1
      %p60 = por %p58, %p59
      %p61 = scmp.ne.s32.totalorder %s50, %s51
      %p62 = scmp.eq.s32.totalorder %s16, 0
      %p63 = por %p61, %p62
      %p64 = scmp.ne.s32.totalorder %s50, %s51
      %p65 = scmp.eq.s32.totalorder %s17, 1
      %p66 = por %p64, %p65
      %p68 = scmp.ne.s32.totalorder %s51, %s67
      %p69 = scmp.eq.s32.totalorder %s17, 0
      %p70 = por %p68, %p69
      %s71 = ssub.s32 %s11, %s18
      %p72 = scmp.eq.s32.totalorder %s71, 0
      %s74 = sadd.s32 %s73, 1
      %s75 = scalar_select %p72, %s73, %s74
      %p78 = pneg %p72
      %p79 = scmp.eq.s32.totalorder %s11, 1
      %p80 = por %p78, %p79
      %p81 = scmp.ne.s32.totalorder %s73, %s76
      %p82 = scmp.eq.s32.totalorder %s11, 0
      %p83 = por %p81, %p82
      %p84 = scmp.ne.s32.totalorder %s73, %s76
      %p85 = scmp.eq.s32.totalorder %s16, 1
      %p86 = por %p84, %p85
      %p87 = scmp.ne.s32.totalorder %s76, %s77
      %p88 = scmp.eq.s32.totalorder %s16, 0
      %p89 = por %p87, %p88
      %p90 = scmp.ne.s32.totalorder %s76, %s77
      %p91 = scmp.eq.s32.totalorder %s17, 1
      %p92 = por %p90, %p91
      %p94 = scmp.ne.s32.totalorder %s77, %s93
      %p95 = scmp.eq.s32.totalorder %s17, 0
      %p96 = por %p94, %p95
      %s97 = ssub.s32 %s11, %s18
      %p98 = scmp.eq.s32.totalorder %s97, 0
      %s100 = sadd.s32 %s99, 1
      %s101 = scalar_select %p98, %s99, %s100
      %p104 = pneg %p98
      %p105 = scmp.eq.s32.totalorder %s11, 1
      %p106 = por %p104, %p105
      %p107 = scmp.ne.s32.totalorder %s99, %s102
      %p108 = scmp.eq.s32.totalorder %s11, 0
      %p109 = por %p107, %p108
      %p110 = scmp.ne.s32.totalorder %s99, %s102
      %p111 = scmp.eq.s32.totalorder %s16, 1
      %p112 = por %p110, %p111
      %p113 = scmp.ne.s32.totalorder %s102, %s103
      %p114 = scmp.eq.s32.totalorder %s16, 0
      %p115 = por %p113, %p114
      %p116 = scmp.ne.s32.totalorder %s102, %s103
      %p117 = scmp.eq.s32.totalorder %s17, 1
      %p118 = por %p116, %p117
      %p120 = scmp.ne.s32.totalorder %s103, %s119
      %p121 = scmp.eq.s32.totalorder %s17, 0
      %p122 = por %p120, %p121
      %s124 = sadd.s32 %s123, 1
      %p127 = scmp.eq.s32.totalorder %s11, 1
      %p128 = scmp.ne.s32.totalorder %s123, %s125
      %p129 = scmp.eq.s32.totalorder %s11, 0
      %p130 = por %p128, %p129
      %p131 = scmp.ne.s32.totalorder %s123, %s125
      %p132 = scmp.eq.s32.totalorder %s16, 1
      %p133 = por %p131, %p132
      %p134 = scmp.ne.s32.totalorder %s125, %s126
      %p135 = scmp.eq.s32.totalorder %s16, 0
      %p136 = por %p134, %p135
      %p137 = scmp.ne.s32.totalorder %s125, %s126
      %p138 = scmp.eq.s32.totalorder %s17, 1
      %p139 = por %p137, %p138
      %p141 = scmp.ne.s32.totalorder %s126, %s140
      %p142 = scmp.eq.s32.totalorder %s17, 0
      %p143 = por %p141, %p142
      %s144 = ssub.s32 %s11, %s18
      %p145 = scmp.eq.s32.totalorder %s144, 0
      %s147 = sadd.s32 %s146, 1
      %s148 = scalar_select %p145, %s146, %s147
      %p151 = pneg %p145
      %p152 = scmp.eq.s32.totalorder %s11, 1
      %p153 = por %p151, %p152
      %p154 = scmp.ne.s32.totalorder %s146, %s149
      %p155 = scmp.eq.s32.totalorder %s11, 0
      %p156 = por %p154, %p155
      %p157 = scmp.ne.s32.totalorder %s146, %s149
      %p158 = scmp.eq.s32.totalorder %s16, 1
      %p159 = por %p157, %p158
      %p160 = scmp.ne.s32.totalorder %s149, %s150
      %p161 = scmp.eq.s32.totalorder %s16, 0
      %p162 = por %p160, %p161
      %p163 = scmp.ne.s32.totalorder %s149, %s150
      %p164 = scmp.eq.s32.totalorder %s17, 1
      %p165 = por %p163, %p164
      %p167 = scmp.ne.s32.totalorder %s150, %s166
      %p168 = scmp.eq.s32.totalorder %s17, 0
      %p169 = por %p167, %p168
      %p170 = scmp.le.s32.totalorder 1, %s11
      %p171 = scmp.lt.s32.totalorder %s11, 3
      %p172 = pnand %p170, %p171
      %p173 = pneg %p172
      // Predicated region
      $region9: #{sa_global_swin.5} parent=5 // pred_check
        _
      $region10: #{sa_global_swin.5} parent=5 // pred_check_branch
        %175 = sbr.rel (%p172) target = $region12
      $region11: #{sa_global_swin.5} parent=5 // pred_region
        %s176 = ssub.s32 %s11, 1
        // Predicated region
        $region13: #{sa_global_swin.5} parent=11 // pred_check
          %p177 = pneg %p136
        $region14: #{sa_global_swin.5} parent=11 // pred_check_branch
          %179 = sbr.rel (%p177) target = $region16
        $region15: #{sa_global_swin.5} parent=11 // pred_region
          _
        $region16: #{sa_global_swin.5} parent=11 // pred_fallthru
          _
      $region12: #{sa_global_swin.5} parent=5 // pred_fallthru
        _
      %p180 = scmp.lt.s32.totalorder %s11, 2
      // Predicated region
      $region17: #{sa_global_swin.5} parent=5 // pred_check
        %p181 = pneg %p180
      $region18: #{sa_global_swin.5} parent=5 // pred_check_branch
        %183 = sbr.rel (%p181) target = $region20
      $region19: #{sa_global_swin.5} parent=5 // pred_region
        // Predicated region
        $region21: #{sa_global_swin.5} parent=19 // pred_check
          %p184 = pneg %p31
        $region22: #{sa_global_swin.5} parent=19 // pred_check_branch
          %186 = sbr.rel (%p184) target = $region24
        $region23: #{sa_global_swin.5} parent=19 // pred_region
          %s187 = sand.u32 %s21, 1
          %s188 = sand.u32 %s21, 1
          %s189 = smul.addr %s188, 32
          %s190 = scalar_lea.vmem [#allocation2], %s189
          %s191 = smul.addr %s11, 8
          %s192 = scalar_lea.vmem %s0, %s191
          // Predicated region
          $region25: #{sa_global_swin.5} parent=23 // pred_check
            _
          $region26: #{sa_global_swin.5} parent=23 // pred_check_branch
            %194 = sbr.rel (0) target = $region28
          $region27: #{sa_global_swin.5} parent=23 // pred_region
            // Predicated region
            $region29: #{sa_global_swin.5} parent=27 // pred_check
              _
            $region30: #{sa_global_swin.5} parent=27 // pred_check_branch
              %196 = sbr.rel (0) target = $region32
            $region31: #{sa_global_swin.5} parent=27 // pred_region
              // Predicated region
              $region44: #{sa_global_swin.5} parent=31 // pred_check
                _
              $region45: #{sa_global_swin.5} parent=31 // pred_check_branch
                %217 = sbr.rel (0) target = $region47
              $region46: #{sa_global_swin.5} parent=31 // pred_region
                loop: start=0, step=1, limit=1
                $region48: #{sa_global_swin.5} parent=46 // loop_pre_header
                  _
                $region49: #{sa_global_swin.5} parent=46 // loop_header
                  %s219 = sphi 0, %s223
                  %p220 = scmp.ge.s32.totalorder %s219, 1
                  %s224 = sphi %s192, %s192
                  %s225 = sphi %s190, %s190
                $region50: #{sa_global_swin.5} parent=46 // loop_header_branch
                  %222 = sbr.rel (%p220) target = $region54
                $region51: #{sa_global_swin.5} parent=46 // loop_body
                  %v226 = vld [vmem:[%s224] sm:$0xff]
                  %227 = vst [vmem:[%s225] sm:$0xff] %v226
                  %v228 = vld [vmem:[%s224 + $0x10] sm:$0xff]
                  %229 = vst [vmem:[%s225 + $0x8] sm:$0xff] %v228
                  %v230 = vld [vmem:[%s224 + $0x20] sm:$0xff]
                  %231 = vst [vmem:[%s225 + $0x10] sm:$0xff] %v230
                  %v232 = vld [vmem:[%s224 + $0x30] sm:$0xff]
                  %233 = vst [vmem:[%s225 + $0x18] sm:$0xff] %v232
                $region52: #{sa_global_swin.5} parent=46 // loop_footer
                  %s223 = sadd.s32 1, %s219
                $region53: #{sa_global_swin.5} parent=46 // loop_footer_branch
                  %218 = sbr.rel target = $region49
                $region54: #{sa_global_swin.5} parent=46 // loop_exit
                  _
              $region47: #{sa_global_swin.5} parent=31 // pred_fallthru
                _
              // Predicated region
              $region55: #{sa_global_swin.5} parent=31 // pred_check
                _
              $region56: #{sa_global_swin.5} parent=31 // pred_check_branch
                %235 = sbr.rel target = $region58
              $region57: #{sa_global_swin.5} parent=31 // pred_region
                _
              $region58: #{sa_global_swin.5} parent=31 // pred_fallthru
                _
            $region32: #{sa_global_swin.5} parent=27 // pred_fallthru
              _
            // Predicated region
            $region33: #{sa_global_swin.5} parent=27 // pred_check
              _
            $region34: #{sa_global_swin.5} parent=27 // pred_check_branch
              %198 = sbr.rel target = $region36
            $region35: #{sa_global_swin.5} parent=27 // pred_region
              loop: start=0, step=1, limit=1
              $region37: #{sa_global_swin.5} parent=35 // loop_pre_header
                _
              $region38: #{sa_global_swin.5} parent=35 // loop_header
                %s201 = sphi 0, %s205
                %p202 = scmp.ge.s32.totalorder %s201, 1
                %s206 = sphi %s192, %s192
                %s207 = sphi %s190, %s190
              $region39: #{sa_global_swin.5} parent=35 // loop_header_branch
                %204 = sbr.rel (%p202) target = $region43
              $region40: #{sa_global_swin.5} parent=35 // loop_body
                %v208 = vld [vmem:[%s206] sm:$0xff]
                %209 = vst [vmem:[%s207] sm:$0xff] %v208
                %v210 = vld [vmem:[%s206 + $0x10] sm:$0xff]
                %211 = vst [vmem:[%s207 + $0x8] sm:$0xff] %v210
                %v212 = vld [vmem:[%s206 + $0x20] sm:$0xff]
                %213 = vst [vmem:[%s207 + $0x10] sm:$0xff] %v212
                %v214 = vld [vmem:[%s206 + $0x30] sm:$0xff]
                %215 = vst [vmem:[%s207 + $0x18] sm:$0xff] %v214
              $region41: #{sa_global_swin.5} parent=35 // loop_footer
                %s205 = sadd.s32 1, %s201
              $region42: #{sa_global_swin.5} parent=35 // loop_footer_branch
                %200 = sbr.rel target = $region38
              $region43: #{sa_global_swin.5} parent=35 // loop_exit
                _
            $region36: #{sa_global_swin.5} parent=27 // pred_fallthru
              _
          $region28: #{sa_global_swin.5} parent=23 // pred_fallthru
            _
          %236 = vnop
        $region24: #{sa_global_swin.5} parent=19 // pred_fallthru
          _
        // Predicated region
        $region59: #{sa_global_swin.5} parent=19 // pred_check
          %p237 = pneg %p57
        $region60: #{sa_global_swin.5} parent=19 // pred_check_branch
          %239 = sbr.rel (%p237) target = $region62
        $region61: #{sa_global_swin.5} parent=19 // pred_region
          %s240 = sand.u32 %s47, 1
          %s241 = sand.u32 %s47, 1
          %s242 = smul.addr %s241, 32
          %s243 = scalar_lea.vmem [#allocation3], %s242
          %s244 = smul.addr %s11, 8
          %s245 = scalar_lea.vmem %s1, %s244
          // Predicated region
          $region63: #{sa_global_swin.5} parent=61 // pred_check
            _
          $region64: #{sa_global_swin.5} parent=61 // pred_check_branch
            %247 = sbr.rel (0) target = $region66
          $region65: #{sa_global_swin.5} parent=61 // pred_region
            // Predicated region
            $region67: #{sa_global_swin.5} parent=65 // pred_check
              _
            $region68: #{sa_global_swin.5} parent=65 // pred_check_branch
              %249 = sbr.rel (0) target = $region70
            $region69: #{sa_global_swin.5} parent=65 // pred_region
              // Predicated region
              $region82: #{sa_global_swin.5} parent=69 // pred_check
                _
              $region83: #{sa_global_swin.5} parent=69 // pred_check_branch
                %270 = sbr.rel (0) target = $region85
              $region84: #{sa_global_swin.5} parent=69 // pred_region
                loop: start=0, step=1, limit=1
                $region86: #{sa_global_swin.5} parent=84 // loop_pre_header
                  _
                $region87: #{sa_global_swin.5} parent=84 // loop_header
                  %s272 = sphi 0, %s276
                  %p273 = scmp.ge.s32.totalorder %s272, 1
                  %s277 = sphi %s245, %s245
                  %s278 = sphi %s243, %s243
                $region88: #{sa_global_swin.5} parent=84 // loop_header_branch
                  %275 = sbr.rel (%p273) target = $region92
                $region89: #{sa_global_swin.5} parent=84 // loop_body
                  %v279 = vld [vmem:[%s277] sm:$0xff]
                  %280 = vst [vmem:[%s278] sm:$0xff] %v279
                  %v281 = vld [vmem:[%s277 + $0x10] sm:$0xff]
                  %282 = vst [vmem:[%s278 + $0x8] sm:$0xff] %v281
                  %v283 = vld [vmem:[%s277 + $0x20] sm:$0xff]
                  %284 = vst [vmem:[%s278 + $0x10] sm:$0xff] %v283
                  %v285 = vld [vmem:[%s277 + $0x30] sm:$0xff]
                  %286 = vst [vmem:[%s278 + $0x18] sm:$0xff] %v285
                $region90: #{sa_global_swin.5} parent=84 // loop_footer
                  %s276 = sadd.s32 1, %s272
                $region91: #{sa_global_swin.5} parent=84 // loop_footer_branch
                  %271 = sbr.rel target = $region87
                $region92: #{sa_global_swin.5} parent=84 // loop_exit
                  _
              $region85: #{sa_global_swin.5} parent=69 // pred_fallthru
                _
              // Predicated region
              $region93: #{sa_global_swin.5} parent=69 // pred_check
                _
              $region94: #{sa_global_swin.5} parent=69 // pred_check_branch
                %288 = sbr.rel target = $region96
              $region95: #{sa_global_swin.5} parent=69 // pred_region
                _
              $region96: #{sa_global_swin.5} parent=69 // pred_fallthru
                _
            $region70: #{sa_global_swin.5} parent=65 // pred_fallthru
              _
            // Predicated region
            $region71: #{sa_global_swin.5} parent=65 // pred_check
              _
            $region72: #{sa_global_swin.5} parent=65 // pred_check_branch
              %251 = sbr.rel target = $region74
            $region73: #{sa_global_swin.5} parent=65 // pred_region
              loop: start=0, step=1, limit=1
              $region75: #{sa_global_swin.5} parent=73 // loop_pre_header
                _
              $region76: #{sa_global_swin.5} parent=73 // loop_header
                %s254 = sphi 0, %s258
                %p255 = scmp.ge.s32.totalorder %s254, 1
                %s259 = sphi %s245, %s245
                %s260 = sphi %s243, %s243
              $region77: #{sa_global_swin.5} parent=73 // loop_header_branch
                %257 = sbr.rel (%p255) target = $region81
              $region78: #{sa_global_swin.5} parent=73 // loop_body
                %v261 = vld [vmem:[%s259] sm:$0xff]
                %262 = vst [vmem:[%s260] sm:$0xff] %v261
                %v263 = vld [vmem:[%s259 + $0x10] sm:$0xff]
                %264 = vst [vmem:[%s260 + $0x8] sm:$0xff] %v263
                %v265 = vld [vmem:[%s259 + $0x20] sm:$0xff]
                %266 = vst [vmem:[%s260 + $0x10] sm:$0xff] %v265
                %v267 = vld [vmem:[%s259 + $0x30] sm:$0xff]
                %268 = vst [vmem:[%s260 + $0x18] sm:$0xff] %v267
              $region79: #{sa_global_swin.5} parent=73 // loop_footer
                %s258 = sadd.s32 1, %s254
              $region80: #{sa_global_swin.5} parent=73 // loop_footer_branch
                %253 = sbr.rel target = $region76
              $region81: #{sa_global_swin.5} parent=73 // loop_exit
                _
            $region74: #{sa_global_swin.5} parent=65 // pred_fallthru
              _
          $region66: #{sa_global_swin.5} parent=61 // pred_fallthru
            _
          %289 = vnop
        $region62: #{sa_global_swin.5} parent=19 // pred_fallthru
          _
        // Predicated region
        $region97: #{sa_global_swin.5} parent=19 // pred_check
          %p290 = pneg %p83
        $region98: #{sa_global_swin.5} parent=19 // pred_check_branch
          %292 = sbr.rel (%p290) target = $region100
        $region99: #{sa_global_swin.5} parent=19 // pred_region
          %s293 = sand.u32 %s73, 1
          %s294 = sand.u32 %s73, 1
          %s295 = smul.addr %s294, 32
          %s296 = scalar_lea.vmem [#allocation4], %s295
          %s297 = smul.addr %s11, 8
          %s298 = scalar_lea.vmem %s2, %s297
          // Predicated region
          $region101: #{sa_global_swin.5} parent=99 // pred_check
            _
          $region102: #{sa_global_swin.5} parent=99 // pred_check_branch
            %300 = sbr.rel (0) target = $region104
          $region103: #{sa_global_swin.5} parent=99 // pred_region
            // Predicated region
            $region105: #{sa_global_swin.5} parent=103 // pred_check
              _
            $region106: #{sa_global_swin.5} parent=103 // pred_check_branch
              %302 = sbr.rel (0) target = $region108
            $region107: #{sa_global_swin.5} parent=103 // pred_region
              // Predicated region
              $region120: #{sa_global_swin.5} parent=107 // pred_check
                _
              $region121: #{sa_global_swin.5} parent=107 // pred_check_branch
                %323 = sbr.rel (0) target = $region123
              $region122: #{sa_global_swin.5} parent=107 // pred_region
                loop: start=0, step=1, limit=1
                $region124: #{sa_global_swin.5} parent=122 // loop_pre_header
                  _
                $region125: #{sa_global_swin.5} parent=122 // loop_header
                  %s325 = sphi 0, %s329
                  %p326 = scmp.ge.s32.totalorder %s325, 1
                  %s330 = sphi %s298, %s298
                  %s331 = sphi %s296, %s296
                $region126: #{sa_global_swin.5} parent=122 // loop_header_branch
                  %328 = sbr.rel (%p326) target = $region130
                $region127: #{sa_global_swin.5} parent=122 // loop_body
                  %v332 = vld [vmem:[%s330] sm:$0xff]
                  %333 = vst [vmem:[%s331] sm:$0xff] %v332
                  %v334 = vld [vmem:[%s330 + $0x10] sm:$0xff]
                  %335 = vst [vmem:[%s331 + $0x8] sm:$0xff] %v334
                  %v336 = vld [vmem:[%s330 + $0x20] sm:$0xff]
                  %337 = vst [vmem:[%s331 + $0x10] sm:$0xff] %v336
                  %v338 = vld [vmem:[%s330 + $0x30] sm:$0xff]
                  %339 = vst [vmem:[%s331 + $0x18] sm:$0xff] %v338
                $region128: #{sa_global_swin.5} parent=122 // loop_footer
                  %s329 = sadd.s32 1, %s325
                $region129: #{sa_global_swin.5} parent=122 // loop_footer_branch
                  %324 = sbr.rel target = $region125
                $region130: #{sa_global_swin.5} parent=122 // loop_exit
                  _
              $region123: #{sa_global_swin.5} parent=107 // pred_fallthru
                _
              // Predicated region
              $region131: #{sa_global_swin.5} parent=107 // pred_check
                _
              $region132: #{sa_global_swin.5} parent=107 // pred_check_branch
                %341 = sbr.rel target = $region134
              $region133: #{sa_global_swin.5} parent=107 // pred_region
                _
              $region134: #{sa_global_swin.5} parent=107 // pred_fallthru
                _
            $region108: #{sa_global_swin.5} parent=103 // pred_fallthru
              _
            // Predicated region
            $region109: #{sa_global_swin.5} parent=103 // pred_check
              _
            $region110: #{sa_global_swin.5} parent=103 // pred_check_branch
              %304 = sbr.rel target = $region112
            $region111: #{sa_global_swin.5} parent=103 // pred_region
              loop: start=0, step=1, limit=1
              $region113: #{sa_global_swin.5} parent=111 // loop_pre_header
                _
              $region114: #{sa_global_swin.5} parent=111 // loop_header
                %s307 = sphi 0, %s311
                %p308 = scmp.ge.s32.totalorder %s307, 1
                %s312 = sphi %s298, %s298
                %s313 = sphi %s296, %s296
              $region115: #{sa_global_swin.5} parent=111 // loop_header_branch
                %310 = sbr.rel (%p308) target = $region119
              $region116: #{sa_global_swin.5} parent=111 // loop_body
                %v314 = vld [vmem:[%s312] sm:$0xff]
                %315 = vst [vmem:[%s313] sm:$0xff] %v314
                %v316 = vld [vmem:[%s312 + $0x10] sm:$0xff]
                %317 = vst [vmem:[%s313 + $0x8] sm:$0xff] %v316
                %v318 = vld [vmem:[%s312 + $0x20] sm:$0xff]
                %319 = vst [vmem:[%s313 + $0x10] sm:$0xff] %v318
                %v320 = vld [vmem:[%s312 + $0x30] sm:$0xff]
                %321 = vst [vmem:[%s313 + $0x18] sm:$0xff] %v320
              $region117: #{sa_global_swin.5} parent=111 // loop_footer
                %s311 = sadd.s32 1, %s307
              $region118: #{sa_global_swin.5} parent=111 // loop_footer_branch
                %306 = sbr.rel target = $region114
              $region119: #{sa_global_swin.5} parent=111 // loop_exit
                _
            $region112: #{sa_global_swin.5} parent=103 // pred_fallthru
              _
          $region104: #{sa_global_swin.5} parent=99 // pred_fallthru
            _
          %342 = vnop
        $region100: #{sa_global_swin.5} parent=19 // pred_fallthru
          _
        // Predicated region
        $region135: #{sa_global_swin.5} parent=19 // pred_check
          %p343 = pneg %p109
        $region136: #{sa_global_swin.5} parent=19 // pred_check_branch
          %345 = sbr.rel (%p343) target = $region138
        $region137: #{sa_global_swin.5} parent=19 // pred_region
          %s346 = sand.u32 %s99, 1
          %s347 = sand.u32 %s99, 1
          %s348 = smul.addr %s347, 32
          %s349 = scalar_lea.vmem [#allocation5], %s348
          %s350 = smul.addr %s11, 8
          %s351 = scalar_lea.vmem %s3, %s350
          // Predicated region
          $region139: #{sa_global_swin.5} parent=137 // pred_check
            _
          $region140: #{sa_global_swin.5} parent=137 // pred_check_branch
            %353 = sbr.rel (0) target = $region142
          $region141: #{sa_global_swin.5} parent=137 // pred_region
            // Predicated region
            $region143: #{sa_global_swin.5} parent=141 // pred_check
              _
            $region144: #{sa_global_swin.5} parent=141 // pred_check_branch
              %355 = sbr.rel (0) target = $region146
            $region145: #{sa_global_swin.5} parent=141 // pred_region
              // Predicated region
              $region158: #{sa_global_swin.5} parent=145 // pred_check
                _
              $region159: #{sa_global_swin.5} parent=145 // pred_check_branch
                %376 = sbr.rel (0) target = $region161
              $region160: #{sa_global_swin.5} parent=145 // pred_region
                loop: start=0, step=1, limit=1
                $region162: #{sa_global_swin.5} parent=160 // loop_pre_header
                  _
                $region163: #{sa_global_swin.5} parent=160 // loop_header
                  %s378 = sphi 0, %s382
                  %p379 = scmp.ge.s32.totalorder %s378, 1
                  %s383 = sphi %s351, %s351
                  %s384 = sphi %s349, %s349
                $region164: #{sa_global_swin.5} parent=160 // loop_header_branch
                  %381 = sbr.rel (%p379) target = $region168
                $region165: #{sa_global_swin.5} parent=160 // loop_body
                  %v385 = vld [vmem:[%s383] sm:$0xff]
                  %386 = vst [vmem:[%s384] sm:$0xff] %v385
                  %v387 = vld [vmem:[%s383 + $0x10] sm:$0xff]
                  %388 = vst [vmem:[%s384 + $0x8] sm:$0xff] %v387
                  %v389 = vld [vmem:[%s383 + $0x20] sm:$0xff]
                  %390 = vst [vmem:[%s384 + $0x10] sm:$0xff] %v389
                  %v391 = vld [vmem:[%s383 + $0x30] sm:$0xff]
                  %392 = vst [vmem:[%s384 + $0x18] sm:$0xff] %v391
                $region166: #{sa_global_swin.5} parent=160 // loop_footer
                  %s382 = sadd.s32 1, %s378
                $region167: #{sa_global_swin.5} parent=160 // loop_footer_branch
                  %377 = sbr.rel target = $region163
                $region168: #{sa_global_swin.5} parent=160 // loop_exit
                  _
              $region161: #{sa_global_swin.5} parent=145 // pred_fallthru
                _
              // Predicated region
              $region169: #{sa_global_swin.5} parent=145 // pred_check
                _
              $region170: #{sa_global_swin.5} parent=145 // pred_check_branch
                %394 = sbr.rel target = $region172
              $region171: #{sa_global_swin.5} parent=145 // pred_region
                _
              $region172: #{sa_global_swin.5} parent=145 // pred_fallthru
                _
            $region146: #{sa_global_swin.5} parent=141 // pred_fallthru
              _
            // Predicated region
            $region147: #{sa_global_swin.5} parent=141 // pred_check
              _
            $region148: #{sa_global_swin.5} parent=141 // pred_check_branch
              %357 = sbr.rel target = $region150
            $region149: #{sa_global_swin.5} parent=141 // pred_region
              loop: start=0, step=1, limit=1
              $region151: #{sa_global_swin.5} parent=149 // loop_pre_header
                _
              $region152: #{sa_global_swin.5} parent=149 // loop_header
                %s360 = sphi 0, %s364
                %p361 = scmp.ge.s32.totalorder %s360, 1
                %s365 = sphi %s351, %s351
                %s366 = sphi %s349, %s349
              $region153: #{sa_global_swin.5} parent=149 // loop_header_branch
                %363 = sbr.rel (%p361) target = $region157
              $region154: #{sa_global_swin.5} parent=149 // loop_body
                %v367 = vld [vmem:[%s365] sm:$0xff]
                %368 = vst [vmem:[%s366] sm:$0xff] %v367
                %v369 = vld [vmem:[%s365 + $0x10] sm:$0xff]
                %370 = vst [vmem:[%s366 + $0x8] sm:$0xff] %v369
                %v371 = vld [vmem:[%s365 + $0x20] sm:$0xff]
                %372 = vst [vmem:[%s366 + $0x10] sm:$0xff] %v371
                %v373 = vld [vmem:[%s365 + $0x30] sm:$0xff]
                %374 = vst [vmem:[%s366 + $0x18] sm:$0xff] %v373
              $region155: #{sa_global_swin.5} parent=149 // loop_footer
                %s364 = sadd.s32 1, %s360
              $region156: #{sa_global_swin.5} parent=149 // loop_footer_branch
                %359 = sbr.rel target = $region152
              $region157: #{sa_global_swin.5} parent=149 // loop_exit
                _
            $region150: #{sa_global_swin.5} parent=141 // pred_fallthru
              _
          $region142: #{sa_global_swin.5} parent=137 // pred_fallthru
            _
          %395 = vnop
        $region138: #{sa_global_swin.5} parent=19 // pred_fallthru
          _
      $region20: #{sa_global_swin.5} parent=5 // pred_fallthru
        _
      %p396 = scmp.le.s32.totalorder 1, %s11
      %p397 = scmp.lt.s32.totalorder %s11, 3
      %p398 = pnand %p396, %p397
      %p399 = pneg %p398
      // Predicated region
      $region173: #{sa_global_swin.5} parent=5 // pred_check
        _
      $region174: #{sa_global_swin.5} parent=5 // pred_check_branch
        %401 = sbr.rel (%p398) target = $region176
      $region175: #{sa_global_swin.5} parent=5 // pred_region
        %s402 = ssub.s32 %s11, 1
        %s403 = sand.u32 %s24, 1
        %s404 = sand.u32 %s24, 1
        %s405 = smul.addr %s404, 32
        %s406 = scalar_lea.vmem [#allocation2], %s405
        // Predicated region
        $region177: #{sa_global_swin.5} parent=175 // pred_check
          %p407 = pneg %p37
        $region178: #{sa_global_swin.5} parent=175 // pred_check_branch
          %409 = sbr.rel (%p407) target = $region180
        $region179: #{sa_global_swin.5} parent=175 // pred_region
          _
        $region180: #{sa_global_swin.5} parent=175 // pred_fallthru
          _
        %s410 = sand.u32 %s50, 1
        %s411 = sand.u32 %s50, 1
        %s412 = smul.addr %s411, 32
        %s413 = scalar_lea.vmem [#allocation3], %s412
        // Predicated region
        $region181: #{sa_global_swin.5} parent=175 // pred_check
          %p414 = pneg %p63
        $region182: #{sa_global_swin.5} parent=175 // pred_check_branch
          %416 = sbr.rel (%p414) target = $region184
        $region183: #{sa_global_swin.5} parent=175 // pred_region
          _
        $region184: #{sa_global_swin.5} parent=175 // pred_fallthru
          _
        %s417 = sand.u32 %s76, 1
        %s418 = sand.u32 %s76, 1
        %s419 = smul.addr %s418, 32
        %s420 = scalar_lea.vmem [#allocation4], %s419
        // Predicated region
        $region185: #{sa_global_swin.5} parent=175 // pred_check
          %p421 = pneg %p89
        $region186: #{sa_global_swin.5} parent=175 // pred_check_branch
          %423 = sbr.rel (%p421) target = $region188
        $region187: #{sa_global_swin.5} parent=175 // pred_region
          _
        $region188: #{sa_global_swin.5} parent=175 // pred_fallthru
          _
        %s424 = sand.u32 %s102, 1
        %s425 = sand.u32 %s102, 1
        %s426 = smul.addr %s425, 32
        %s427 = scalar_lea.vmem [#allocation5], %s426
        // Predicated region
        $region189: #{sa_global_swin.5} parent=175 // pred_check
          %p428 = pneg %p115
        $region190: #{sa_global_swin.5} parent=175 // pred_check_branch
          %430 = sbr.rel (%p428) target = $region192
        $region191: #{sa_global_swin.5} parent=175 // pred_region
          _
        $region192: #{sa_global_swin.5} parent=175 // pred_fallthru
          _
        %s431 = sand.u32 %s24, 1
        %s432 = sand.u32 %s24, 1
        %s433 = smul.addr %s432, 32
        %s434 = scalar_lea.vmem [#allocation2], %s433
        %p435 = pneg %p37
        %p436 = pneg %p34
        %s437 = sand.u32 %s50, 1
        %s438 = sand.u32 %s50, 1
        %s439 = smul.addr %s438, 32
        %s440 = scalar_lea.vmem [#allocation3], %s439
        %p441 = pneg %p63
        %p442 = pneg %p60
        %s443 = sand.u32 %s76, 1
        %s444 = sand.u32 %s76, 1
        %s445 = smul.addr %s444, 32
        %s446 = scalar_lea.vmem [#allocation4], %s445
        %p447 = pneg %p89
        %p448 = pneg %p86
        %s449 = sand.u32 %s102, 1
        %s450 = sand.u32 %s102, 1
        %s451 = smul.addr %s450, 32
        %s452 = scalar_lea.vmem [#allocation5], %s451
        %p453 = pneg %p115
        %p454 = pneg %p112
        %p455 = pneg %p136
        %p456 = pneg %p133
        %p457 = pneg %p162
        %p458 = pneg %p159
        %s459 = sand.u32 %s149, 1
        %s460 = sand.u32 %s149, 1
        %s461 = smul.addr %s460, 32
        %s462 = scalar_lea.vmem [#allocation6], %s461
        %v463 = vld [vmem:[%s406] sm:$0xff]
        %v464 = vld [vmem:[%s406 + $0x8] sm:$0xff]
        %v465 = vld [vmem:[%s406 + $0x10] sm:$0xff]
        %v466 = vld [vmem:[%s406 + $0x18] sm:$0xff]
        %v467 = vld [vmem:[%s413] sm:$0xff]
        %v468 = vld [vmem:[%s413 + $0x8] sm:$0xff]
        %v469 = vld [vmem:[%s413 + $0x10] sm:$0xff]
        %v470 = vld [vmem:[%s413 + $0x18] sm:$0xff]
        %v471 = vld [vmem:[%s420] sm:$0xff]
        %v472 = vld [vmem:[%s420 + $0x8] sm:$0xff]
        %v473 = vld [vmem:[%s420 + $0x10] sm:$0xff]
        %v474 = vld [vmem:[%s420 + $0x18] sm:$0xff]
        %v475 = vld [vmem:[%s427] sm:$0xff]
        %v476 = vld [vmem:[%s427 + $0x8] sm:$0xff]
        %v477 = vld [vmem:[%s427 + $0x10] sm:$0xff]
        %v478 = vld [vmem:[%s427 + $0x18] sm:$0xff]
        %v479 = vld [vmem:[%s4] sm:$0xf]
        %v480 = vld [vmem:[%s4 + $0x4] sm:$0xf]
        %v481 = vld [vmem:[%s4 + $0x8] sm:$0xf]
        %v482 = vld [vmem:[%s4 + $0xc] sm:$0xf]
        %v483 = vld [vmem:[%s4 + $0x10] sm:$0xf]
        %v484 = vld [vmem:[%s4 + $0x14] sm:$0xf]
        %v485 = vld [vmem:[%s4 + $0x18] sm:$0xf]
        %v486 = vld [vmem:[%s4 + $0x1c] sm:$0xf]
        %v487 = vld [vmem:[%s4 + $0x20] sm:$0xf]
        %v488 = vld [vmem:[%s4 + $0x24] sm:$0xf]
        %v489 = vld [vmem:[%s4 + $0x28] sm:$0xf]
        %v490 = vld [vmem:[%s4 + $0x2c] sm:$0xf]
        %v491 = vld [vmem:[%s4 + $0x30] sm:$0xf]
        %v492 = vld [vmem:[%s4 + $0x34] sm:$0xf]
        %v493 = vld [vmem:[%s4 + $0x38] sm:$0xf]
        %v494 = vld [vmem:[%s4 + $0x3c] sm:$0xf]
        %v495 = vmul.f32 %v463, %v467
        %v497 = vrot.slane %v495, 4
        %v499 = vadd.f32 %v495, %v497
        %501 = vset.pattern.permute.xlu0 0
        %502 = vperm.xlu0 %501, %v479
        %v503 = vpop.permute.xlu0 %502
        %v505 = vadd.f32 %v499, %v503
        %v506 = vmul.f32 %v463, %v468
        %v508 = vrot.slane %v506, 4
        %v510 = vadd.f32 %v506, %v508
        %512 = vset.pattern.permute.xlu0 0
        %513 = vperm.xlu0 %512, %v480
        %v514 = vpop.permute.xlu0 %513
        %v516 = vadd.f32 %v510, %v514
        %v517 = vmul.f32 %v463, %v469
        %v519 = vrot.slane %v517, 4
        %v521 = vadd.f32 %v517, %v519
        %523 = vset.pattern.permute.xlu0 0
        %524 = vperm.xlu0 %523, %v481
        %v525 = vpop.permute.xlu0 %524
        %v527 = vadd.f32 %v521, %v525
        %v528 = vmul.f32 %v463, %v470
        %v530 = vrot.slane %v528, 4
        %v532 = vadd.f32 %v528, %v530
        %534 = vset.pattern.permute.xlu0 0
        %535 = vperm.xlu0 %534, %v482
        %v536 = vpop.permute.xlu0 %535
        %v538 = vadd.f32 %v532, %v536
        %v539 = vmax.f32 %v505, %v516
        %v540 = vmax.f32 %v539, %v527
        %v541 = vmax.f32 %v540, %v538
        %v542 = vsub.f32 %v505, %v541
        %v543 = vmul.f32 %v542, 1.442695
        %v544 = vpow.pop %v543
        %v545 = vsub.f32 %v516, %v541
        %v546 = vmul.f32 %v545, 1.442695
        %v547 = vpow.pop %v546
        %v548 = vsub.f32 %v527, %v541
        %v549 = vmul.f32 %v548, 1.442695
        %v550 = vpow.pop %v549
        %v551 = vsub.f32 %v538, %v541
        %v552 = vmul.f32 %v551, 1.442695
        %v553 = vpow.pop %v552
        %v554 = vadd.f32 %v544, %v547
        %v555 = vadd.f32 %v554, %v550
        %v556 = vadd.f32 %v555, %v553
        %v557 = vrcp.pop %v556
        %v558 = vmul.f32 1.0, %v557
        %v559 = vmul.f32 %v544, %v558
        %v561 = vrot.slane %v559, 4
        %vm563 = vcmask 1043456
        %v564 = vsel %vm563, %v559, %v561
        %v565 = vmul.f32 %v564, %v471
        %v566 = vadd.f32 %v475, %v565
        %v567 = vmul.f32 %v547, %v558
        %v569 = vrot.slane %v567, 4
        %v571 = vsel %vm563, %v567, %v569
        %v572 = vmul.f32 %v571, %v472
        %v573 = vadd.f32 %v566, %v572
        %v574 = vmul.f32 %v550, %v558
        %v576 = vrot.slane %v574, 4
        %v578 = vsel %vm563, %v574, %v576
        %v579 = vmul.f32 %v578, %v473
        %v580 = vadd.f32 %v573, %v579
        %v581 = vmul.f32 %v553, %v558
        %v583 = vrot.slane %v581, 4
        %v585 = vsel %vm563, %v581, %v583
        %v586 = vmul.f32 %v585, %v474
        %v587 = vadd.f32 %v580, %v586
        %588 = vst [vmem:[%s462] sm:$0xff] %v587
        %v589 = vmul.f32 %v464, %v467
        %v591 = vrot.slane %v589, 4
        %v593 = vadd.f32 %v589, %v591
        %595 = vset.pattern.permute.xlu0 0
        %596 = vperm.xlu0 %595, %v483
        %v597 = vpop.permute.xlu0 %596
        %v599 = vadd.f32 %v593, %v597
        %v600 = vmul.f32 %v464, %v468
        %v602 = vrot.slane %v600, 4
        %v604 = vadd.f32 %v600, %v602
        %606 = vset.pattern.permute.xlu0 0
        %607 = vperm.xlu0 %606, %v484
        %v608 = vpop.permute.xlu0 %607
        %v610 = vadd.f32 %v604, %v608
        %v611 = vmul.f32 %v464, %v469
        %v613 = vrot.slane %v611, 4
        %v615 = vadd.f32 %v611, %v613
        %617 = vset.pattern.permute.xlu0 0
        %618 = vperm.xlu0 %617, %v485
        %v619 = vpop.permute.xlu0 %618
        %v621 = vadd.f32 %v615, %v619
        %v622 = vmul.f32 %v464, %v470
        %v624 = vrot.slane %v622, 4
        %v626 = vadd.f32 %v622, %v624
        %628 = vset.pattern.permute.xlu0 0
        %629 = vperm.xlu0 %628, %v486
        %v630 = vpop.permute.xlu0 %629
        %v632 = vadd.f32 %v626, %v630
        %v633 = vmax.f32 %v599, %v610
        %v634 = vmax.f32 %v633, %v621
        %v635 = vmax.f32 %v634, %v632
        %v636 = vsub.f32 %v599, %v635
        %v637 = vmul.f32 %v636, 1.442695
        %v638 = vpow.pop %v637
        %v639 = vsub.f32 %v610, %v635
        %v640 = vmul.f32 %v639, 1.442695
        %v641 = vpow.pop %v640
        %v642 = vsub.f32 %v621, %v635
        %v643 = vmul.f32 %v642, 1.442695
        %v644 = vpow.pop %v643
        %v645 = vsub.f32 %v632, %v635
        %v646 = vmul.f32 %v645, 1.442695
        %v647 = vpow.pop %v646
        %v648 = vadd.f32 %v638, %v641
        %v649 = vadd.f32 %v648, %v644
        %v650 = vadd.f32 %v649, %v647
        %v651 = vrcp.pop %v650
        %v652 = vmul.f32 1.0, %v651
        %v653 = vmul.f32 %v638, %v652
        %v655 = vrot.slane %v653, 4
        %v657 = vsel %vm563, %v653, %v655
        %v658 = vmul.f32 %v657, %v471
        %v659 = vadd.f32 %v476, %v658
        %v660 = vmul.f32 %v641, %v652
        %v662 = vrot.slane %v660, 4
        %v664 = vsel %vm563, %v660, %v662
        %v665 = vmul.f32 %v664, %v472
        %v666 = vadd.f32 %v659, %v665
        %v667 = vmul.f32 %v644, %v652
        %v669 = vrot.slane %v667, 4
        %v671 = vsel %vm563, %v667, %v669
        %v672 = vmul.f32 %v671, %v473
        %v673 = vadd.f32 %v666, %v672
        %v674 = vmul.f32 %v647, %v652
        %v676 = vrot.slane %v674, 4
        %v678 = vsel %vm563, %v674, %v676
        %v679 = vmul.f32 %v678, %v474
        %v680 = vadd.f32 %v673, %v679
        %s681 = scalar_lea.vmem %s462, 8 [#allocation6]
        %682 = vst [vmem:[%s681] sm:$0xff] %v680
        %v683 = vmul.f32 %v465, %v467
        %v685 = vrot.slane %v683, 4
        %v687 = vadd.f32 %v683, %v685
        %689 = vset.pattern.permute.xlu0 0
        %690 = vperm.xlu0 %689, %v487
        %v691 = vpop.permute.xlu0 %690
        %v693 = vadd.f32 %v687, %v691
        %v694 = vmul.f32 %v465, %v468
        %v696 = vrot.slane %v694, 4
        %v698 = vadd.f32 %v694, %v696
        %700 = vset.pattern.permute.xlu0 0
        %701 = vperm.xlu0 %700, %v488
        %v702 = vpop.permute.xlu0 %701
        %v704 = vadd.f32 %v698, %v702
        %v705 = vmul.f32 %v465, %v469
        %v707 = vrot.slane %v705, 4
        %v709 = vadd.f32 %v705, %v707
        %711 = vset.pattern.permute.xlu0 0
        %712 = vperm.xlu0 %711, %v489
        %v713 = vpop.permute.xlu0 %712
        %v715 = vadd.f32 %v709, %v713
        %v716 = vmul.f32 %v465, %v470
        %v718 = vrot.slane %v716, 4
        %v720 = vadd.f32 %v716, %v718
        %722 = vset.pattern.permute.xlu0 0
        %723 = vperm.xlu0 %722, %v490
        %v724 = vpop.permute.xlu0 %723
        %v726 = vadd.f32 %v720, %v724
        %v727 = vmax.f32 %v693, %v704
        %v728 = vmax.f32 %v727, %v715
        %v729 = vmax.f32 %v728, %v726
        %v730 = vsub.f32 %v693, %v729
        %v731 = vmul.f32 %v730, 1.442695
        %v732 = vpow.pop %v731
        %v733 = vsub.f32 %v704, %v729
        %v734 = vmul.f32 %v733, 1.442695
        %v735 = vpow.pop %v734
        %v736 = vsub.f32 %v715, %v729
        %v737 = vmul.f32 %v736, 1.442695
        %v738 = vpow.pop %v737
        %v739 = vsub.f32 %v726, %v729
        %v740 = vmul.f32 %v739, 1.442695
        %v741 = vpow.pop %v740
        %v742 = vadd.f32 %v732, %v735
        %v743 = vadd.f32 %v742, %v738
        %v744 = vadd.f32 %v743, %v741
        %v745 = vrcp.pop %v744
        %v746 = vmul.f32 1.0, %v745
        %v747 = vmul.f32 %v732, %v746
        %v749 = vrot.slane %v747, 4
        %v751 = vsel %vm563, %v747, %v749
        %v752 = vmul.f32 %v751, %v471
        %v753 = vadd.f32 %v477, %v752
        %v754 = vmul.f32 %v735, %v746
        %v756 = vrot.slane %v754, 4
        %v758 = vsel %vm563, %v754, %v756
        %v759 = vmul.f32 %v758, %v472
        %v760 = vadd.f32 %v753, %v759
        %v761 = vmul.f32 %v738, %v746
        %v763 = vrot.slane %v761, 4
        %v765 = vsel %vm563, %v761, %v763
        %v766 = vmul.f32 %v765, %v473
        %v767 = vadd.f32 %v760, %v766
        %v768 = vmul.f32 %v741, %v746
        %v770 = vrot.slane %v768, 4
        %v772 = vsel %vm563, %v768, %v770
        %v773 = vmul.f32 %v772, %v474
        %v774 = vadd.f32 %v767, %v773
        %s775 = scalar_lea.vmem %s462, 16 [#allocation6]
        %776 = vst [vmem:[%s775] sm:$0xff] %v774
        %v777 = vmul.f32 %v466, %v467
        %v779 = vrot.slane %v777, 4
        %v781 = vadd.f32 %v777, %v779
        %783 = vset.pattern.permute.xlu0 0
        %784 = vperm.xlu0 %783, %v491
        %v785 = vpop.permute.xlu0 %784
        %v787 = vadd.f32 %v781, %v785
        %v788 = vmul.f32 %v466, %v468
        %v790 = vrot.slane %v788, 4
        %v792 = vadd.f32 %v788, %v790
        %794 = vset.pattern.permute.xlu0 0
        %795 = vperm.xlu0 %794, %v492
        %v796 = vpop.permute.xlu0 %795
        %v798 = vadd.f32 %v792, %v796
        %v799 = vmul.f32 %v466, %v469
        %v801 = vrot.slane %v799, 4
        %v803 = vadd.f32 %v799, %v801
        %805 = vset.pattern.permute.xlu0 0
        %806 = vperm.xlu0 %805, %v493
        %v807 = vpop.permute.xlu0 %806
        %v809 = vadd.f32 %v803, %v807
        %v810 = vmul.f32 %v466, %v470
        %v812 = vrot.slane %v810, 4
        %v814 = vadd.f32 %v810, %v812
        %816 = vset.pattern.permute.xlu0 0
        %817 = vperm.xlu0 %816, %v494
        %v818 = vpop.permute.xlu0 %817
        %v820 = vadd.f32 %v814, %v818
        %v821 = vmax.f32 %v787, %v798
        %v822 = vmax.f32 %v821, %v809
        %v823 = vmax.f32 %v822, %v820
        %v824 = vsub.f32 %v787, %v823
        %v825 = vmul.f32 %v824, 1.442695
        %v826 = vpow.pop %v825
        %v827 = vsub.f32 %v798, %v823
        %v828 = vmul.f32 %v827, 1.442695
        %v829 = vpow.pop %v828
        %v830 = vsub.f32 %v809, %v823
        %v831 = vmul.f32 %v830, 1.442695
        %v832 = vpow.pop %v831
        %v833 = vsub.f32 %v820, %v823
        %v834 = vmul.f32 %v833, 1.442695
        %v835 = vpow.pop %v834
        %v836 = vadd.f32 %v826, %v829
        %v837 = vadd.f32 %v836, %v832
        %v838 = vadd.f32 %v837, %v835
        %v839 = vrcp.pop %v838
        %v840 = vmul.f32 1.0, %v839
        %v841 = vmul.f32 %v826, %v840
        %v843 = vrot.slane %v841, 4
        %v845 = vsel %vm563, %v841, %v843
        %v846 = vmul.f32 %v845, %v471
        %v847 = vadd.f32 %v478, %v846
        %v848 = vmul.f32 %v829, %v840
        %v850 = vrot.slane %v848, 4
        %v852 = vsel %vm563, %v848, %v850
        %v853 = vmul.f32 %v852, %v472
        %v854 = vadd.f32 %v847, %v853
        %v855 = vmul.f32 %v832, %v840
        %v857 = vrot.slane %v855, 4
        %v859 = vsel %vm563, %v855, %v857
        %v860 = vmul.f32 %v859, %v473
        %v861 = vadd.f32 %v854, %v860
        %v862 = vmul.f32 %v835, %v840
        %v864 = vrot.slane %v862, 4
        %v866 = vsel %vm563, %v862, %v864
        %v867 = vmul.f32 %v866, %v474
        %v868 = vadd.f32 %v861, %v867
        %s869 = scalar_lea.vmem %s462, 24 [#allocation6]
        %870 = vst [vmem:[%s869] sm:$0xff] %v868
        %s871 = sand.u32 %s149, 1
        %s872 = sand.u32 %s149, 1
        %s873 = smul.addr %s872, 32
        %s874 = scalar_lea.vmem [#allocation6], %s873
        // Predicated region
        $region193: #{sa_global_swin.5} parent=175 // pred_check
          %p875 = pneg %p159
        $region194: #{sa_global_swin.5} parent=175 // pred_check_branch
          %877 = sbr.rel (%p875) target = $region196
        $region195: #{sa_global_swin.5} parent=175 // pred_region
          %s878 = smul.addr %s16, 8
          %s879 = scalar_lea.vmem %s5, %s878
          // Predicated region
          $region197: #{sa_global_swin.5} parent=195 // pred_check
            _
          $region198: #{sa_global_swin.5} parent=195 // pred_check_branch
            %881 = sbr.rel (0) target = $region200
          $region199: #{sa_global_swin.5} parent=195 // pred_region
            // Predicated region
            $region201: #{sa_global_swin.5} parent=199 // pred_check
              _
            $region202: #{sa_global_swin.5} parent=199 // pred_check_branch
              %883 = sbr.rel (0) target = $region204
            $region203: #{sa_global_swin.5} parent=199 // pred_region
              // Predicated region
              $region216: #{sa_global_swin.5} parent=203 // pred_check
                _
              $region217: #{sa_global_swin.5} parent=203 // pred_check_branch
                %904 = sbr.rel (0) target = $region219
              $region218: #{sa_global_swin.5} parent=203 // pred_region
                loop: start=0, step=1, limit=1
                $region220: #{sa_global_swin.5} parent=218 // loop_pre_header
                  _
                $region221: #{sa_global_swin.5} parent=218 // loop_header
                  %s906 = sphi 0, %s910
                  %p907 = scmp.ge.s32.totalorder %s906, 1
                  %s911 = sphi %s874, %s874
                  %s912 = sphi %s879, %s879
                $region222: #{sa_global_swin.5} parent=218 // loop_header_branch
                  %909 = sbr.rel (%p907) target = $region226
                $region223: #{sa_global_swin.5} parent=218 // loop_body
                  %v913 = vld [vmem:[%s911] sm:$0xff]
                  %914 = vst [vmem:[%s912] sm:$0xff] %v913
                  %v915 = vld [vmem:[%s911 + $0x8] sm:$0xff]
                  %916 = vst [vmem:[%s912 + $0x10] sm:$0xff] %v915
                  %v917 = vld [vmem:[%s911 + $0x10] sm:$0xff]
                  %918 = vst [vmem:[%s912 + $0x20] sm:$0xff] %v917
                  %v919 = vld [vmem:[%s911 + $0x18] sm:$0xff]
                  %920 = vst [vmem:[%s912 + $0x30] sm:$0xff] %v919
                $region224: #{sa_global_swin.5} parent=218 // loop_footer
                  %s910 = sadd.s32 1, %s906
                $region225: #{sa_global_swin.5} parent=218 // loop_footer_branch
                  %905 = sbr.rel target = $region221
                $region226: #{sa_global_swin.5} parent=218 // loop_exit
                  _
              $region219: #{sa_global_swin.5} parent=203 // pred_fallthru
                _
              // Predicated region
              $region227: #{sa_global_swin.5} parent=203 // pred_check
                _
              $region228: #{sa_global_swin.5} parent=203 // pred_check_branch
                %922 = sbr.rel target = $region230
              $region229: #{sa_global_swin.5} parent=203 // pred_region
                _
              $region230: #{sa_global_swin.5} parent=203 // pred_fallthru
                _
            $region204: #{sa_global_swin.5} parent=199 // pred_fallthru
              _
            // Predicated region
            $region205: #{sa_global_swin.5} parent=199 // pred_check
              _
            $region206: #{sa_global_swin.5} parent=199 // pred_check_branch
              %885 = sbr.rel target = $region208
            $region207: #{sa_global_swin.5} parent=199 // pred_region
              loop: start=0, step=1, limit=1
              $region209: #{sa_global_swin.5} parent=207 // loop_pre_header
                _
              $region210: #{sa_global_swin.5} parent=207 // loop_header
                %s888 = sphi 0, %s892
                %p889 = scmp.ge.s32.totalorder %s888, 1
                %s893 = sphi %s874, %s874
                %s894 = sphi %s879, %s879
              $region211: #{sa_global_swin.5} parent=207 // loop_header_branch
                %891 = sbr.rel (%p889) target = $region215
              $region212: #{sa_global_swin.5} parent=207 // loop_body
                %v895 = vld [vmem:[%s893] sm:$0xff]
                %896 = vst [vmem:[%s894] sm:$0xff] %v895
                %v897 = vld [vmem:[%s893 + $0x8] sm:$0xff]
                %898 = vst [vmem:[%s894 + $0x10] sm:$0xff] %v897
                %v899 = vld [vmem:[%s893 + $0x10] sm:$0xff]
                %900 = vst [vmem:[%s894 + $0x20] sm:$0xff] %v899
                %v901 = vld [vmem:[%s893 + $0x18] sm:$0xff]
                %902 = vst [vmem:[%s894 + $0x30] sm:$0xff] %v901
              $region213: #{sa_global_swin.5} parent=207 // loop_footer
                %s892 = sadd.s32 1, %s888
              $region214: #{sa_global_swin.5} parent=207 // loop_footer_branch
                %887 = sbr.rel target = $region210
              $region215: #{sa_global_swin.5} parent=207 // loop_exit
                _
            $region208: #{sa_global_swin.5} parent=199 // pred_fallthru
              _
          $region200: #{sa_global_swin.5} parent=195 // pred_fallthru
            _
          %923 = vnop
        $region196: #{sa_global_swin.5} parent=175 // pred_fallthru
          _
      $region176: #{sa_global_swin.5} parent=5 // pred_fallthru
        _
      %p924 = scmp.le.s32.totalorder 2, %s11
      // Predicated region
      $region231: #{sa_global_swin.5} parent=5 // pred_check
        %p925 = pneg %p924
      $region232: #{sa_global_swin.5} parent=5 // pred_check_branch
        %927 = sbr.rel (%p925) target = $region234
      $region233: #{sa_global_swin.5} parent=5 // pred_region
        %s928 = ssub.s32 %s11, 2
        // Predicated region
        $region235: #{sa_global_swin.5} parent=233 // pred_check
          %p929 = pneg %p165
        $region236: #{sa_global_swin.5} parent=233 // pred_check_branch
          %931 = sbr.rel (%p929) target = $region238
        $region237: #{sa_global_swin.5} parent=233 // pred_region
          %s932 = sand.u32 %s150, 1
          %s933 = sand.u32 %s150, 1
          %s934 = smul.addr %s933, 32
          %s935 = scalar_lea.vmem [#allocation6], %s934
        $region238: #{sa_global_swin.5} parent=233 // pred_fallthru
          _
      $region234: #{sa_global_swin.5} parent=5 // pred_fallthru
        _
    $region6: #{sa_global_swin.5} parent=1 // loop_footer
      %s15 = sadd.s32 1, %s11
    $region7: #{sa_global_swin.5} parent=1 // loop_footer_branch
      %10 = sbr.rel target = $region3
    $region8: #{sa_global_swin.5} parent=1 // loop_exit
      _

</llo_original>
